<compile_context>
chip_gen: v5e
topology: v5e:2x2
jax: 0.10.0
libtpu: 0.0.40
codegen_flags: <defaults>
</compile_context>

<pallas_src>
import functools

import jax
import jax.numpy as jnp
from jax import lax
from jax.experimental import pallas as pl
from jax.experimental.pallas import tpu as pltpu

_LN_EPS = 1e-5
_BN_EPS = 1e-5


def _round_up(x, m):
    return (x + m - 1) // m * m


# -----------------------------------------------------------------------------
# kernel 1: LayerNorm over channels + ConvTranspose2d(k=2, s=2) as 4 matmuls
# -----------------------------------------------------------------------------
def _ln_convt_kernel(x_ref, g_ref, b_ref, wt_ref, ub_ref, y_ref):
    x = x_ref[0]                                           # (Cin, H*W)
    mu = jnp.mean(x, axis=0, keepdims=True)                # (1, H*W)
    xc = x - mu
    var = jnp.mean(xc * xc, axis=0, keepdims=True)
    xn = xc * lax.rsqrt(var + _LN_EPS)
    xn = xn * g_ref[...] + b_ref[...]                      # (Cin,1) broadcast
    for k in range(4):                                     # k = kh*2 + kw
        y_ref[0, k] = (jnp.dot(wt_ref[k], xn,
                               preferred_element_type=jnp.float32)
                       + ub_ref[...])


# -----------------------------------------------------------------------------
# kernel 2: Conv2d 3x3 (pad 1) + BatchNorm2d (inference) + ReLU
#   input plane is zero-padded and flattened to (C, P); each of the 9 taps is a
#   contiguous lane-shifted slab copied into an im2col scratch, then one matmul.
# -----------------------------------------------------------------------------
def _conv3_bn_relu_kernel(xf_ref, w_ref, cb_ref, s_ref, t_ref, y_ref,
                          patch_ref, *, H, Wp):
    C = w_ref.shape[0]
    L = H * Wp
    for dy in range(3):
        for dx in range(3):
            tap = dy * 3 + dx
            start = dy * Wp + dx
            patch_ref[tap * C:(tap + 1) * C, :] = xf_ref[0, :, start:start + L]
    y = jnp.dot(w_ref[...], patch_ref[...],
                preferred_element_type=jnp.float32)        # (C, L)
    y = (y + cb_ref[...]) * s_ref[...] + t_ref[...]        # conv bias + BN affine
    y_ref[0] = jnp.maximum(y, 0.0)                         # ReLU


# -----------------------------------------------------------------------------
# wrappers
# -----------------------------------------------------------------------------
def _patch_expanding(x, lp):
    """LayerNorm(C) + ConvTranspose2d(C -> C//2, kernel=2, stride=2)."""
    N, Cin, H, W = x.shape
    Cout = Cin // 2
    HW = H * W
    x2 = x.reshape(N, Cin, HW)
    # wt[kh*2+kw, o, i] = up_w[i, o, kh, kw]
    wt = lp["up_w"].transpose(2, 3, 1, 0).reshape(4, Cout, Cin)
    up = pl.pallas_call(
        _ln_convt_kernel,
        grid=(N,),
        in_specs=[pl.BlockSpec((1, Cin, HW), lambda n: (n, 0, 0)),
                  pl.BlockSpec((Cin, 1), lambda n: (0, 0)),
                  pl.BlockSpec((Cin, 1), lambda n: (0, 0)),
                  pl.BlockSpec((4, Cout, Cin), lambda n: (0, 0, 0)),
                  pl.BlockSpec((Cout, 1), lambda n: (0, 0))],
        out_specs=pl.BlockSpec((1, 4, Cout, HW), lambda n: (n, 0, 0, 0)),
        out_shape=jax.ShapeDtypeStruct((N, 4, Cout, HW), jnp.float32),
        compiler_params=pltpu.CompilerParams(
            dimension_semantics=("parallel",)),
    )(x2, lp["ln_g"].reshape(Cin, 1), lp["ln_b"].reshape(Cin, 1), wt,
      lp["up_b"].reshape(Cout, 1))
    # stride-2 interleave of the 4 taps: out[n,o,2h+kh,2w+kw] = up[n,kh*2+kw,o,h*W+w]
    return (up.reshape(N, 2, 2, Cout, H, W)
              .transpose(0, 3, 4, 1, 5, 2)
              .reshape(N, Cout, 2 * H, 2 * W))


def _block_up(x, blk):
    """Conv2d 3x3 pad 1 + BatchNorm2d (inference) + ReLU."""
    N, C, H, W = x.shape
    Wp = W + 2
    L = H * Wp
    flat = (H + 2) * Wp
    P = _round_up(flat + 2, 128)           # +2: last tap slab overruns by 2 zeros
    xf = jnp.pad(x, ((0, 0), (0, 0), (1, 1), (1, 1))).reshape(N, C, flat)
    xf = jnp.pad(xf, ((0, 0), (0, 0), (0, P - flat)))
    # wf[o, (dy*3+dx)*C + i] = w[o, i, dy, dx]
    wf = blk["w"].transpose(0, 2, 3, 1).reshape(C, 9 * C)
    s = blk["bn_g"] * lax.rsqrt(blk["bn_v"] + _BN_EPS)
    t = blk["bn_b"] - blk["bn_m"] * s
    yf = pl.pallas_call(
        functools.partial(_conv3_bn_relu_kernel, H=H, Wp=Wp),
        grid=(N,),
        in_specs=[pl.BlockSpec((1, C, P), lambda n: (n, 0, 0)),
                  pl.BlockSpec((C, 9 * C), lambda n: (0, 0)),
                  pl.BlockSpec((C, 1), lambda n: (0, 0)),
                  pl.BlockSpec((C, 1), lambda n: (0, 0)),
                  pl.BlockSpec((C, 1), lambda n: (0, 0))],
        out_specs=pl.BlockSpec((1, C, L), lambda n: (n, 0, 0)),
        out_shape=jax.ShapeDtypeStruct((N, C, L), jnp.float32),
        scratch_shapes=[pltpu.VMEM((9 * C, L), jnp.float32)],
        compiler_params=pltpu.CompilerParams(
            dimension_semantics=("parallel",)),
    )(xf, wf, blk["b"].reshape(C, 1), s.reshape(C, 1), t.reshape(C, 1))
    # drop the 2 garbage columns per row that come from the W+2 row stride
    return yf.reshape(N, C, H, Wp)[:, :, :, :W]


def decoder_forward(x, skips, params):
    """Pallas forward of `decoder.forward(x, skips)` (drop_rate=0 -> identity)."""
    layers = params["layers"]
    num_layers = len(layers)
    outs = []
    for k, lp in enumerate(layers):          # processing order == reversed i
        x_up = _patch_expanding(x, lp)
        x = x_up + skips[num_layers - 1 - k]
        for blk in lp["blocks"]:
            x = _block_up(x, blk)
        outs.append(x)
    return outs


# -----------------------------------------------------------------------------
# deterministic parameter init (shapes follow decoder.__init__)
# -----------------------------------------------------------------------------
def init_params(key, embed_dim, depths):
    # TODO(synk): BatchNorm2d uses inference (running-stats) semantics here;
    # train-mode batch statistics are not computed.
    num_layers = len(depths)
    keys = iter(jax.random.split(key, 1024))
    nrm = lambda s: 0.2 * jax.random.normal(next(keys), s, jnp.float32)
    layers = []
    for k in range(num_layers):
        D = embed_dim * 2 ** (num_layers - 1 - k)   # dim of the k-th processed layer
        Cin = 2 * D
        blocks = []
        for _ in range(depths[k]):
            blocks.append(dict(
                w=nrm((D, D, 3, 3)), b=nrm((D,)),
                bn_g=1.0 + nrm((D,)), bn_b=nrm((D,)),
                bn_m=nrm((D,)), bn_v=jnp.abs(nrm((D,))) + 0.5))
        layers.append(dict(
            ln_g=1.0 + nrm((Cin,)), ln_b=nrm((Cin,)),
            up_w=nrm((Cin, D, 2, 2)), up_b=nrm((D,)),
            blocks=blocks))
    return dict(layers=layers)


# -----------------------------------------------------------------------------
# pure-JAX reference (for correctness check)
# -----------------------------------------------------------------------------
def ref_decoder(x, skips, params):
    hi = lax.Precision.HIGHEST
    layers = params["layers"]
    num_layers = len(layers)
    outs = []
    for k, lp in enumerate(layers):
        # Patch_Expanding: LayerNorm over channels (NHWC) + ConvTranspose2d 2x2/2
        mu = jnp.mean(x, axis=1, keepdims=True)
        var = jnp.mean((x - mu) ** 2, axis=1, keepdims=True)
        xn = (x - mu) / jnp.sqrt(var + _LN_EPS)
        xn = xn * lp["ln_g"][None, :, None, None] + lp["ln_b"][None, :, None, None]
        t = jnp.einsum("nihw,iokl->nohkwl", xn, lp["up_w"], precision=hi)
        Nb, Co, Hh, _, Ww, _ = t.shape
        x_up = t.reshape(Nb, Co, 2 * Hh, 2 * Ww) + lp["up_b"][None, :, None, None]
        x = x_up + skips[num_layers - 1 - k]
        for blk in lp["blocks"]:
            y = lax.conv_general_dilated(
                x, blk["w"], (1, 1), ((1, 1), (1, 1)),
                dimension_numbers=("NCHW", "OIHW", "NCHW"), precision=hi)
            y = y + blk["b"][None, :, None, None]
            s = blk["bn_g"] / jnp.sqrt(blk["bn_v"] + _BN_EPS)
            y = ((y - blk["bn_m"][None, :, None, None]) * s[None, :, None, None]
                 + blk["bn_b"][None, :, None, None])
            x = jnp.maximum(y, 0.0)
        outs.append(x)
    return outs


if __name__ == "__main__":
    key = jax.random.PRNGKey(0)
    k_x, k_s, k_p = jax.random.split(key, 3)

    # small decoder: embed_dim=8, 2 layers, depth 2 each, 8x8 bottleneck, batch 2
    N, E, H0, W0 = 2, 8, 8, 8
    depths = (2, 2)
    num_layers = len(depths)

    x = jax.random.normal(k_x, (N, E * 2 ** num_layers, H0, W0), jnp.float32)
    skip_keys = jax.random.split(k_s, num_layers)
    skips = []
    for i in range(num_layers):
        Ci = E * 2 ** i
        Hi = H0 * 2 ** (num_layers - i)
        skips.append(jax.random.normal(skip_keys[i], (N, Ci, Hi, Hi), jnp.float32))

    P = init_params(k_p, E, depths)

    outs = jax.block_until_ready(jax.jit(decoder_forward)(x, skips, P))
    refs = ref_decoder(x, skips, P)

    assert len(outs) == num_layers
    assert outs[0].shape == (N, 2 * E, 2 * H0, 2 * W0)
    assert outs[1].shape == (N, E, 4 * H0, 4 * W0)
    for o, r in zip(outs, refs):
        assert o.shape == r.shape
        err = float(jnp.max(jnp.abs(o - r)))
        scale = 1.0 + float(jnp.max(jnp.abs(r)))
        assert err < 1e-3 * scale, f"mismatch vs reference: max abs err = {err}"
    print("KERNEL_OK")
</pallas_src>

<mosaic_0001>
module attributes {stable_mosaic.version = 11 : i64} {
  func.func @_ln_convt_kernel(%arg0: i32, %arg1: memref<1x32x64xf32, #tpu.memory_space<vmem>>, %arg2: memref<32x1xf32, #tpu.memory_space<vmem>>, %arg3: memref<32x1xf32, #tpu.memory_space<vmem>>, %arg4: memref<4x16x32xf32, #tpu.memory_space<vmem>>, %arg5: memref<16x1xf32, #tpu.memory_space<vmem>>, %arg6: memref<1x4x16x64xf32, #tpu.memory_space<vmem>>) attributes {dimension_semantics = [#tpu.dimension_semantics<parallel>], iteration_bounds = array<i64: 2>, scalar_prefetch = 0 : i64, scratch_operands = 0 : i64, tpu.core_type = #tpu.core_type<tc>, window_params = [{transform_indices = @transform_0, window_bounds = array<i64: 1, 32, 64>}, {pipeline_mode = #tpu.pipeline_mode<synchronous>, transform_indices = @transform_1, window_bounds = array<i64: 32, 1>}, {pipeline_mode = #tpu.pipeline_mode<synchronous>, transform_indices = @transform_2, window_bounds = array<i64: 32, 1>}, {pipeline_mode = #tpu.pipeline_mode<synchronous>, transform_indices = @transform_3, window_bounds = array<i64: 4, 16, 32>}, {pipeline_mode = #tpu.pipeline_mode<synchronous>, transform_indices = @transform_4, window_bounds = array<i64: 16, 1>}, {transform_indices = @transform_5, window_bounds = array<i64: 1, 4, 16, 64>}]} {
    %c0 = arith.constant 0 : index
    %c0_0 = arith.constant 0 : index
    %c0_1 = arith.constant 0 : index
    %0 = vector.load %arg1[%c0, %c0_0, %c0_1] : memref<1x32x64xf32, #tpu.memory_space<vmem>>, vector<1x32x64xf32>
    %1 = vector.shape_cast %0 : vector<1x32x64xf32> to vector<32x64xf32>
    %cst = arith.constant dense<0.000000e+00> : vector<64xf32>
    %2 = vector.multi_reduction <add>, %1, %cst [0] : vector<32x64xf32> to vector<64xf32>
    %3 = vector.shape_cast %2 : vector<64xf32> to vector<1x64xf32>
    %cst_2 = arith.constant 3.200000e+01 : f32
    %4 = vector.broadcast %cst_2 : f32 to vector<1x64xf32>
    %5 = arith.divf %3, %4 : vector<1x64xf32>
    %6 = vector.broadcast %5 : vector<1x64xf32> to vector<32x64xf32>
    %7 = arith.subf %1, %6 : vector<32x64xf32>
    %8 = arith.mulf %7, %7 : vector<32x64xf32>
    %cst_3 = arith.constant dense<0.000000e+00> : vector<64xf32>
    %9 = vector.multi_reduction <add>, %8, %cst_3 [0] : vector<32x64xf32> to vector<64xf32>
    %10 = vector.shape_cast %9 : vector<64xf32> to vector<1x64xf32>
    %cst_4 = arith.constant 3.200000e+01 : f32
    %11 = vector.broadcast %cst_4 : f32 to vector<1x64xf32>
    %12 = arith.divf %10, %11 : vector<1x64xf32>
    %cst_5 = arith.constant 9.99999974E-6 : f32
    %13 = vector.broadcast %cst_5 : f32 to vector<1x64xf32>
    %14 = arith.addf %12, %13 : vector<1x64xf32>
    %15 = math.rsqrt %14 : vector<1x64xf32>
    %16 = vector.broadcast %15 : vector<1x64xf32> to vector<32x64xf32>
    %17 = arith.mulf %7, %16 : vector<32x64xf32>
    %c0_6 = arith.constant 0 : index
    %c0_7 = arith.constant 0 : index
    %18 = vector.load %arg2[%c0_6, %c0_7] : memref<32x1xf32, #tpu.memory_space<vmem>>, vector<32x1xf32>
    %19 = vector.broadcast %18 : vector<32x1xf32> to vector<32x64xf32>
    %20 = arith.mulf %17, %19 : vector<32x64xf32>
    %c0_8 = arith.constant 0 : index
    %c0_9 = arith.constant 0 : index
    %21 = vector.load %arg3[%c0_8, %c0_9] : memref<32x1xf32, #tpu.memory_space<vmem>>, vector<32x1xf32>
    %22 = vector.broadcast %21 : vector<32x1xf32> to vector<32x64xf32>
    %23 = arith.addf %20, %22 : vector<32x64xf32>
    %c0_10 = arith.constant 0 : index
    %c0_11 = arith.constant 0 : index
    %c0_12 = arith.constant 0 : index
    %24 = vector.load %arg4[%c0_10, %c0_11, %c0_12] : memref<4x16x32xf32, #tpu.memory_space<vmem>>, vector<1x16x32xf32>
    %25 = vector.shape_cast %24 : vector<1x16x32xf32> to vector<16x32xf32>
    %cst_13 = arith.constant dense<0.000000e+00> : vector<16x64xf32>
    %26 = tpu.matmul %25, %23, %cst_13 {dimension_numbers = #tpu.dot_dimension_numbers<[1], [0], [0], [1], [0, 0, 1, 1], [], []>} : vector<16x32xf32>, vector<32x64xf32>, vector<16x64xf32> -> vector<16x64xf32>
    %c0_14 = arith.constant 0 : index
    %c0_15 = arith.constant 0 : index
    %27 = vector.load %arg5[%c0_14, %c0_15] : memref<16x1xf32, #tpu.memory_space<vmem>>, vector<16x1xf32>
    %28 = vector.broadcast %27 : vector<16x1xf32> to vector<16x64xf32>
    %29 = arith.addf %26, %28 : vector<16x64xf32>
    %c0_16 = arith.constant 0 : index
    %c0_17 = arith.constant 0 : index
    %c0_18 = arith.constant 0 : index
    %c0_19 = arith.constant 0 : index
    %30 = vector.load %arg6[%c0_16, %c0_17, %c0_18, %c0_19] : memref<1x4x16x64xf32, #tpu.memory_space<vmem>>, vector<1x1x16x64xf32>
    %31 = vector.shape_cast %30 : vector<1x1x16x64xf32> to vector<16x64xf32>
    %32 = vector.shape_cast %29 : vector<16x64xf32> to vector<1x1x16x64xf32>
    tpu.vector_store %arg6[%c0_16, %c0_17, %c0_18, %c0_19], %32 {strides = array<i32>} : memref<1x4x16x64xf32, #tpu.memory_space<vmem>>, vector<1x1x16x64xf32>,
    %c1 = arith.constant 1 : index
    %c0_20 = arith.constant 0 : index
    %c0_21 = arith.constant 0 : index
    %33 = vector.load %arg4[%c1, %c0_20, %c0_21] : memref<4x16x32xf32, #tpu.memory_space<vmem>>, vector<1x16x32xf32>
    %34 = vector.shape_cast %33 : vector<1x16x32xf32> to vector<16x32xf32>
    %cst_22 = arith.constant dense<0.000000e+00> : vector<16x64xf32>
    %35 = tpu.matmul %34, %23, %cst_22 {dimension_numbers = #tpu.dot_dimension_numbers<[1], [0], [0], [1], [0, 0, 1, 1], [], []>} : vector<16x32xf32>, vector<32x64xf32>, vector<16x64xf32> -> vector<16x64xf32>
    %c0_23 = arith.constant 0 : index
    %c0_24 = arith.constant 0 : index
    %36 = vector.load %arg5[%c0_23, %c0_24] : memref<16x1xf32, #tpu.memory_space<vmem>>, vector<16x1xf32>
    %37 = vector.broadcast %36 : vector<16x1xf32> to vector<16x64xf32>
    %38 = arith.addf %35, %37 : vector<16x64xf32>
    %c0_25 = arith.constant 0 : index
    %c1_26 = arith.constant 1 : index
    %c0_27 = arith.constant 0 : index
    %c0_28 = arith.constant 0 : index
    %39 = vector.load %arg6[%c0_25, %c1_26, %c0_27, %c0_28] : memref<1x4x16x64xf32, #tpu.memory_space<vmem>>, vector<1x1x16x64xf32>
    %40 = vector.shape_cast %39 : vector<1x1x16x64xf32> to vector<16x64xf32>
    %41 = vector.shape_cast %38 : vector<16x64xf32> to vector<1x1x16x64xf32>
    tpu.vector_store %arg6[%c0_25, %c1_26, %c0_27, %c0_28], %41 {strides = array<i32>} : memref<1x4x16x64xf32, #tpu.memory_space<vmem>>, vector<1x1x16x64xf32>,
    %c2 = arith.constant 2 : index
    %c0_29 = arith.constant 0 : index
    %c0_30 = arith.constant 0 : index
    %42 = vector.load %arg4[%c2, %c0_29, %c0_30] : memref<4x16x32xf32, #tpu.memory_space<vmem>>, vector<1x16x32xf32>
    %43 = vector.shape_cast %42 : vector<1x16x32xf32> to vector<16x32xf32>
    %cst_31 = arith.constant dense<0.000000e+00> : vector<16x64xf32>
    %44 = tpu.matmul %43, %23, %cst_31 {dimension_numbers = #tpu.dot_dimension_numbers<[1], [0], [0], [1], [0, 0, 1, 1], [], []>} : vector<16x32xf32>, vector<32x64xf32>, vector<16x64xf32> -> vector<16x64xf32>
    %c0_32 = arith.constant 0 : index
    %c0_33 = arith.constant 0 : index
    %45 = vector.load %arg5[%c0_32, %c0_33] : memref<16x1xf32, #tpu.memory_space<vmem>>, vector<16x1xf32>
    %46 = vector.broadcast %45 : vector<16x1xf32> to vector<16x64xf32>
    %47 = arith.addf %44, %46 : vector<16x64xf32>
    %c0_34 = arith.constant 0 : index
    %c2_35 = arith.constant 2 : index
    %c0_36 = arith.constant 0 : index
    %c0_37 = arith.constant 0 : index
    %48 = vector.load %arg6[%c0_34, %c2_35, %c0_36, %c0_37] : memref<1x4x16x64xf32, #tpu.memory_space<vmem>>, vector<1x1x16x64xf32>
    %49 = vector.shape_cast %48 : vector<1x1x16x64xf32> to vector<16x64xf32>
    %50 = vector.shape_cast %47 : vector<16x64xf32> to vector<1x1x16x64xf32>
    tpu.vector_store %arg6[%c0_34, %c2_35, %c0_36, %c0_37], %50 {strides = array<i32>} : memref<1x4x16x64xf32, #tpu.memory_space<vmem>>, vector<1x1x16x64xf32>,
    %c3 = arith.constant 3 : index
    %c0_38 = arith.constant 0 : index
    %c0_39 = arith.constant 0 : index
    %51 = vector.load %arg4[%c3, %c0_38, %c0_39] : memref<4x16x32xf32, #tpu.memory_space<vmem>>, vector<1x16x32xf32>
    %52 = vector.shape_cast %51 : vector<1x16x32xf32> to vector<16x32xf32>
    %cst_40 = arith.constant dense<0.000000e+00> : vector<16x64xf32>
    %53 = tpu.matmul %52, %23, %cst_40 {dimension_numbers = #tpu.dot_dimension_numbers<[1], [0], [0], [1], [0, 0, 1, 1], [], []>} : vector<16x32xf32>, vector<32x64xf32>, vector<16x64xf32> -> vector<16x64xf32>
    %c0_41 = arith.constant 0 : index
    %c0_42 = arith.constant 0 : index
    %54 = vector.load %arg5[%c0_41, %c0_42] : memref<16x1xf32, #tpu.memory_space<vmem>>, vector<16x1xf32>
    %55 = vector.broadcast %54 : vector<16x1xf32> to vector<16x64xf32>
    %56 = arith.addf %53, %55 : vector<16x64xf32>
    %c0_43 = arith.constant 0 : index
    %c3_44 = arith.constant 3 : index
    %c0_45 = arith.constant 0 : index
    %c0_46 = arith.constant 0 : index
    %57 = vector.load %arg6[%c0_43, %c3_44, %c0_45, %c0_46] : memref<1x4x16x64xf32, #tpu.memory_space<vmem>>, vector<1x1x16x64xf32>
    %58 = vector.shape_cast %57 : vector<1x1x16x64xf32> to vector<16x64xf32>
    %59 = vector.shape_cast %56 : vector<16x64xf32> to vector<1x1x16x64xf32>
    tpu.vector_store %arg6[%c0_43, %c3_44, %c0_45, %c0_46], %59 {strides = array<i32>} : memref<1x4x16x64xf32, #tpu.memory_space<vmem>>, vector<1x1x16x64xf32>,
    return
  }
  func.func @transform_0(%arg0: i32) -> (i32, i32, i32) {
    %c0_i32 = arith.constant 0 : i32
    %c0_i32_0 = arith.constant 0 : i32
    %c0_i32_1 = arith.constant 0 : i32
    return %arg0, %c0_i32, %c0_i32_0 : i32, i32, i32
  }
  func.func @transform_1(%arg0: i32) -> (i32, i32) {
    %c0_i32 = arith.constant 0 : i32
    %c0_i32_0 = arith.constant 0 : i32
    %c0_i32_1 = arith.constant 0 : i32
    return %c0_i32, %c0_i32_0 : i32, i32
  }
  func.func @transform_2(%arg0: i32) -> (i32, i32) {
    %c0_i32 = arith.constant 0 : i32
    %c0_i32_0 = arith.constant 0 : i32
    %c0_i32_1 = arith.constant 0 : i32
    return %c0_i32, %c0_i32_0 : i32, i32
  }
  func.func @transform_3(%arg0: i32) -> (i32, i32, i32) {
    %c0_i32 = arith.constant 0 : i32
    %c0_i32_0 = arith.constant 0 : i32
    %c0_i32_1 = arith.constant 0 : i32
    %c0_i32_2 = arith.constant 0 : i32
    return %c0_i32, %c0_i32_0, %c0_i32_1 : i32, i32, i32
  }
  func.func @transform_4(%arg0: i32) -> (i32, i32) {
    %c0_i32 = arith.constant 0 : i32
    %c0_i32_0 = arith.constant 0 : i32
    %c0_i32_1 = arith.constant 0 : i32
    return %c0_i32, %c0_i32_0 : i32, i32
  }
  func.func @transform_5(%arg0: i32) -> (i32, i32, i32, i32) {
    %c0_i32 = arith.constant 0 : i32
    %c0_i32_0 = arith.constant 0 : i32
    %c0_i32_1 = arith.constant 0 : i32
    %c0_i32_2 = arith.constant 0 : i32
    return %arg0, %c0_i32, %c0_i32_0, %c0_i32_1 : i32, i32, i32, i32
  }
}

module attributes {stable_mosaic.version = 11 : i64} {
  func.func @_conv3_bn_relu_kernel(%arg0: i32, %arg1: memref<1x16x384xf32, #tpu.memory_space<vmem>>, %arg2: memref<16x144xf32, #tpu.memory_space<vmem>>, %arg3: memref<16x1xf32, #tpu.memory_space<vmem>>, %arg4: memref<16x1xf32, #tpu.memory_space<vmem>>, %arg5: memref<16x1xf32, #tpu.memory_space<vmem>>, %arg6: memref<1x16x288xf32, #tpu.memory_space<vmem>>, %arg7: memref<144x288xf32, #tpu.memory_space<vmem>>) attributes {dimension_semantics = [#tpu.dimension_semantics<parallel>], iteration_bounds = array<i64: 2>, scalar_prefetch = 0 : i64, scratch_operands = 1 : i64, tpu.core_type = #tpu.core_type<tc>, window_params = [{transform_indices = @transform_0, window_bounds = array<i64: 1, 16, 384>}, {pipeline_mode = #tpu.pipeline_mode<synchronous>, transform_indices = @transform_1, window_bounds = array<i64: 16, 144>}, {pipeline_mode = #tpu.pipeline_mode<synchronous>, transform_indices = @transform_2, window_bounds = array<i64: 16, 1>}, {pipeline_mode = #tpu.pipeline_mode<synchronous>, transform_indices = @transform_3, window_bounds = array<i64: 16, 1>}, {pipeline_mode = #tpu.pipeline_mode<synchronous>, transform_indices = @transform_4, window_bounds = array<i64: 16, 1>}, {transform_indices = @transform_5, window_bounds = array<i64: 1, 16, 288>}]} {
    %c0 = arith.constant 0 : index
    %c0_0 = arith.constant 0 : index
    %c0_1 = arith.constant 0 : index
    %0 = vector.load %arg1[%c0, %c0_0, %c0_1] : memref<1x16x384xf32, #tpu.memory_space<vmem>>, vector<1x16x288xf32>
    %1 = vector.shape_cast %0 : vector<1x16x288xf32> to vector<16x288xf32>
    %c0_2 = arith.constant 0 : index
    %c0_3 = arith.constant 0 : index
    %2 = vector.load %arg7[%c0_2, %c0_3] : memref<144x288xf32, #tpu.memory_space<vmem>>, vector<16x288xf32>
    tpu.vector_store %arg7[%c0_2, %c0_3], %1 {strides = array<i32>} : memref<144x288xf32, #tpu.memory_space<vmem>>, vector<16x288xf32>,
    %c0_4 = arith.constant 0 : index
    %c0_5 = arith.constant 0 : index
    %c1 = arith.constant 1 : index
    %3 = vector.load %arg1[%c0_4, %c0_5, %c1] : memref<1x16x384xf32, #tpu.memory_space<vmem>>, vector<1x16x288xf32>
    %4 = vector.shape_cast %3 : vector<1x16x288xf32> to vector<16x288xf32>
    %c16 = arith.constant 16 : index
    %c0_6 = arith.constant 0 : index
    %5 = vector.load %arg7[%c16, %c0_6] : memref<144x288xf32, #tpu.memory_space<vmem>>, vector<16x288xf32>
    tpu.vector_store %arg7[%c16, %c0_6], %4 {strides = array<i32>} : memref<144x288xf32, #tpu.memory_space<vmem>>, vector<16x288xf32>,
    %c0_7 = arith.constant 0 : index
    %c0_8 = arith.constant 0 : index
    %c2 = arith.constant 2 : index
    %6 = vector.load %arg1[%c0_7, %c0_8, %c2] : memref<1x16x384xf32, #tpu.memory_space<vmem>>, vector<1x16x288xf32>
    %7 = vector.shape_cast %6 : vector<1x16x288xf32> to vector<16x288xf32>
    %c32 = arith.constant 32 : index
    %c0_9 = arith.constant 0 : index
    %8 = vector.load %arg7[%c32, %c0_9] : memref<144x288xf32, #tpu.memory_space<vmem>>, vector<16x288xf32>
    tpu.vector_store %arg7[%c32, %c0_9], %7 {strides = array<i32>} : memref<144x288xf32, #tpu.memory_space<vmem>>, vector<16x288xf32>,
    %c0_10 = arith.constant 0 : index
    %c0_11 = arith.constant 0 : index
    %c18 = arith.constant 18 : index
    %9 = vector.load %arg1[%c0_10, %c0_11, %c18] : memref<1x16x384xf32, #tpu.memory_space<vmem>>, vector<1x16x288xf32>
    %10 = vector.shape_cast %9 : vector<1x16x288xf32> to vector<16x288xf32>
    %c48 = arith.constant 48 : index
    %c0_12 = arith.constant 0 : index
    %11 = vector.load %arg7[%c48, %c0_12] : memref<144x288xf32, #tpu.memory_space<vmem>>, vector<16x288xf32>
    tpu.vector_store %arg7[%c48, %c0_12], %10 {strides = array<i32>} : memref<144x288xf32, #tpu.memory_space<vmem>>, vector<16x288xf32>,
    %c0_13 = arith.constant 0 : index
    %c0_14 = arith.constant 0 : index
    %c19 = arith.constant 19 : index
    %12 = vector.load %arg1[%c0_13, %c0_14, %c19] : memref<1x16x384xf32, #tpu.memory_space<vmem>>, vector<1x16x288xf32>
    %13 = vector.shape_cast %12 : vector<1x16x288xf32> to vector<16x288xf32>
    %c64 = arith.constant 64 : index
    %c0_15 = arith.constant 0 : index
    %14 = vector.load %arg7[%c64, %c0_15] : memref<144x288xf32, #tpu.memory_space<vmem>>, vector<16x288xf32>
    tpu.vector_store %arg7[%c64, %c0_15], %13 {strides = array<i32>} : memref<144x288xf32, #tpu.memory_space<vmem>>, vector<16x288xf32>,
    %c0_16 = arith.constant 0 : index
    %c0_17 = arith.constant 0 : index
    %c20 = arith.constant 20 : index
    %15 = vector.load %arg1[%c0_16, %c0_17, %c20] : memref<1x16x384xf32, #tpu.memory_space<vmem>>, vector<1x16x288xf32>
    %16 = vector.shape_cast %15 : vector<1x16x288xf32> to vector<16x288xf32>
    %c80 = arith.constant 80 : index
    %c0_18 = arith.constant 0 : index
    %17 = vector.load %arg7[%c80, %c0_18] : memref<144x288xf32, #tpu.memory_space<vmem>>, vector<16x288xf32>
    tpu.vector_store %arg7[%c80, %c0_18], %16 {strides = array<i32>} : memref<144x288xf32, #tpu.memory_space<vmem>>, vector<16x288xf32>,
    %c0_19 = arith.constant 0 : index
    %c0_20 = arith.constant 0 : index
    %c36 = arith.constant 36 : index
    %18 = vector.load %arg1[%c0_19, %c0_20, %c36] : memref<1x16x384xf32, #tpu.memory_space<vmem>>, vector<1x16x288xf32>
    %19 = vector.shape_cast %18 : vector<1x16x288xf32> to vector<16x288xf32>
    %c96 = arith.constant 96 : index
    %c0_21 = arith.constant 0 : index
    %20 = vector.load %arg7[%c96, %c0_21] : memref<144x288xf32, #tpu.memory_space<vmem>>, vector<16x288xf32>
    tpu.vector_store %arg7[%c96, %c0_21], %19 {strides = array<i32>} : memref<144x288xf32, #tpu.memory_space<vmem>>, vector<16x288xf32>,
    %c0_22 = arith.constant 0 : index
    %c0_23 = arith.constant 0 : index
    %c37 = arith.constant 37 : index
    %21 = vector.load %arg1[%c0_22, %c0_23, %c37] : memref<1x16x384xf32, #tpu.memory_space<vmem>>, vector<1x16x288xf32>
    %22 = vector.shape_cast %21 : vector<1x16x288xf32> to vector<16x288xf32>
    %c112 = arith.constant 112 : index
    %c0_24 = arith.constant 0 : index
    %23 = vector.load %arg7[%c112, %c0_24] : memref<144x288xf32, #tpu.memory_space<vmem>>, vector<16x288xf32>
    tpu.vector_store %arg7[%c112, %c0_24], %22 {strides = array<i32>} : memref<144x288xf32, #tpu.memory_space<vmem>>, vector<16x288xf32>,
    %c0_25 = arith.constant 0 : index
    %c0_26 = arith.constant 0 : index
    %c38 = arith.constant 38 : index
    %24 = vector.load %arg1[%c0_25, %c0_26, %c38] : memref<1x16x384xf32, #tpu.memory_space<vmem>>, vector<1x16x288xf32>
    %25 = vector.shape_cast %24 : vector<1x16x288xf32> to vector<16x288xf32>
    %c128 = arith.constant 128 : index
    %c0_27 = arith.constant 0 : index
    %26 = vector.load %arg7[%c128, %c0_27] : memref<144x288xf32, #tpu.memory_space<vmem>>, vector<16x288xf32>
    tpu.vector_store %arg7[%c128, %c0_27], %25 {strides = array<i32>} : memref<144x288xf32, #tpu.memory_space<vmem>>, vector<16x288xf32>,
    %c0_28 = arith.constant 0 : index
    %c0_29 = arith.constant 0 : index
    %27 = vector.load %arg2[%c0_28, %c0_29] : memref<16x144xf32, #tpu.memory_space<vmem>>, vector<16x144xf32>
    %c0_30 = arith.constant 0 : index
    %c0_31 = arith.constant 0 : index
    %28 = vector.load %arg7[%c0_30, %c0_31] : memref<144x288xf32, #tpu.memory_space<vmem>>, vector<144x288xf32>
    %cst = arith.constant dense<0.000000e+00> : vector<16x288xf32>
    %29 = tpu.matmul %27, %28, %cst {dimension_numbers = #tpu.dot_dimension_numbers<[1], [0], [0], [1], [0, 0, 1, 1], [], []>} : vector<16x144xf32>, vector<144x288xf32>, vector<16x288xf32> -> vector<16x288xf32>
    %c0_32 = arith.constant 0 : index
    %c0_33 = arith.constant 0 : index
    %30 = vector.load %arg3[%c0_32, %c0_33] : memref<16x1xf32, #tpu.memory_space<vmem>>, vector<16x1xf32>
    %31 = vector.broadcast %30 : vector<16x1xf32> to vector<16x288xf32>
    %32 = arith.addf %29, %31 : vector<16x288xf32>
    %c0_34 = arith.constant 0 : index
    %c0_35 = arith.constant 0 : index
    %33 = vector.load %arg4[%c0_34, %c0_35] : memref<16x1xf32, #tpu.memory_space<vmem>>, vector<16x1xf32>
    %34 = vector.broadcast %33 : vector<16x1xf32> to vector<16x288xf32>
    %35 = arith.mulf %32, %34 : vector<16x288xf32>
    %c0_36 = arith.constant 0 : index
    %c0_37 = arith.constant 0 : index
    %36 = vector.load %arg5[%c0_36, %c0_37] : memref<16x1xf32, #tpu.memory_space<vmem>>, vector<16x1xf32>
    %37 = vector.broadcast %36 : vector<16x1xf32> to vector<16x288xf32>
    %38 = arith.addf %35, %37 : vector<16x288xf32>
    %cst_38 = arith.constant 0.000000e+00 : f32
    %39 = vector.broadcast %cst_38 : f32 to vector<16x288xf32>
    %40 = arith.maximumf %38, %39 : vector<16x288xf32>
    %c0_39 = arith.constant 0 : index
    %c0_40 = arith.constant 0 : index
    %c0_41 = arith.constant 0 : index
    %41 = vector.load %arg6[%c0_39, %c0_40, %c0_41] : memref<1x16x288xf32, #tpu.memory_space<vmem>>, vector<1x16x288xf32>
    %42 = vector.shape_cast %41 : vector<1x16x288xf32> to vector<16x288xf32>
    %43 = vector.shape_cast %40 : vector<16x288xf32> to vector<1x16x288xf32>
    tpu.vector_store %arg6[%c0_39, %c0_40, %c0_41], %43 {strides = array<i32>} : memref<1x16x288xf32, #tpu.memory_space<vmem>>, vector<1x16x288xf32>,
    return
  }
  func.func @transform_0(%arg0: i32) -> (i32, i32, i32) {
    %c0_i32 = arith.constant 0 : i32
    %c0_i32_0 = arith.constant 0 : i32
    %c0_i32_1 = arith.constant 0 : i32
    return %arg0, %c0_i32, %c0_i32_0 : i32, i32, i32
  }
  func.func @transform_1(%arg0: i32) -> (i32, i32) {
    %c0_i32 = arith.constant 0 : i32
    %c0_i32_0 = arith.constant 0 : i32
    %c0_i32_1 = arith.constant 0 : i32
    return %c0_i32, %c0_i32_0 : i32, i32
  }
  func.func @transform_2(%arg0: i32) -> (i32, i32) {
    %c0_i32 = arith.constant 0 : i32
    %c0_i32_0 = arith.constant 0 : i32
    %c0_i32_1 = arith.constant 0 : i32
    return %c0_i32, %c0_i32_0 : i32, i32
  }
  func.func @transform_3(%arg0: i32) -> (i32, i32) {
    %c0_i32 = arith.constant 0 : i32
    %c0_i32_0 = arith.constant 0 : i32
    %c0_i32_1 = arith.constant 0 : i32
    return %c0_i32, %c0_i32_0 : i32, i32
  }
  func.func @transform_4(%arg0: i32) -> (i32, i32) {
    %c0_i32 = arith.constant 0 : i32
    %c0_i32_0 = arith.constant 0 : i32
    %c0_i32_1 = arith.constant 0 : i32
    return %c0_i32, %c0_i32_0 : i32, i32
  }
  func.func @transform_5(%arg0: i32) -> (i32, i32, i32) {
    %c0_i32 = arith.constant 0 : i32
    %c0_i32_0 = arith.constant 0 : i32
    %c0_i32_1 = arith.constant 0 : i32
    return %arg0, %c0_i32, %c0_i32_0 : i32, i32, i32
  }
}

module attributes {stable_mosaic.version = 11 : i64} {
  func.func @_ln_convt_kernel(%arg0: i32, %arg1: memref<1x16x256xf32, #tpu.memory_space<vmem>>, %arg2: memref<16x1xf32, #tpu.memory_space<vmem>>, %arg3: memref<16x1xf32, #tpu.memory_space<vmem>>, %arg4: memref<4x8x16xf32, #tpu.memory_space<vmem>>, %arg5: memref<8x1xf32, #tpu.memory_space<vmem>>, %arg6: memref<1x4x8x256xf32, #tpu.memory_space<vmem>>) attributes {dimension_semantics = [#tpu.dimension_semantics<parallel>], iteration_bounds = array<i64: 2>, scalar_prefetch = 0 : i64, scratch_operands = 0 : i64, tpu.core_type = #tpu.core_type<tc>, window_params = [{transform_indices = @transform_0, window_bounds = array<i64: 1, 16, 256>}, {pipeline_mode = #tpu.pipeline_mode<synchronous>, transform_indices = @transform_1, window_bounds = array<i64: 16, 1>}, {pipeline_mode = #tpu.pipeline_mode<synchronous>, transform_indices = @transform_2, window_bounds = array<i64: 16, 1>}, {pipeline_mode = #tpu.pipeline_mode<synchronous>, transform_indices = @transform_3, window_bounds = array<i64: 4, 8, 16>}, {pipeline_mode = #tpu.pipeline_mode<synchronous>, transform_indices = @transform_4, window_bounds = array<i64: 8, 1>}, {transform_indices = @transform_5, window_bounds = array<i64: 1, 4, 8, 256>}]} {
    %c0 = arith.constant 0 : index
    %c0_0 = arith.constant 0 : index
    %c0_1 = arith.constant 0 : index
    %0 = vector.load %arg1[%c0, %c0_0, %c0_1] : memref<1x16x256xf32, #tpu.memory_space<vmem>>, vector<1x16x256xf32>
    %1 = vector.shape_cast %0 : vector<1x16x256xf32> to vector<16x256xf32>
    %cst = arith.constant dense<0.000000e+00> : vector<256xf32>
    %2 = vector.multi_reduction <add>, %1, %cst [0] : vector<16x256xf32> to vector<256xf32>
    %3 = vector.shape_cast %2 : vector<256xf32> to vector<1x256xf32>
    %cst_2 = arith.constant 1.600000e+01 : f32
    %4 = vector.broadcast %cst_2 : f32 to vector<1x256xf32>
    %5 = arith.divf %3, %4 : vector<1x256xf32>
    %6 = vector.broadcast %5 : vector<1x256xf32> to vector<16x256xf32>
    %7 = arith.subf %1, %6 : vector<16x256xf32>
    %8 = arith.mulf %7, %7 : vector<16x256xf32>
    %cst_3 = arith.constant dense<0.000000e+00> : vector<256xf32>
    %9 = vector.multi_reduction <add>, %8, %cst_3 [0] : vector<16x256xf32> to vector<256xf32>
    %10 = vector.shape_cast %9 : vector<256xf32> to vector<1x256xf32>
    %cst_4 = arith.constant 1.600000e+01 : f32
    %11 = vector.broadcast %cst_4 : f32 to vector<1x256xf32>
    %12 = arith.divf %10, %11 : vector<1x256xf32>
    %cst_5 = arith.constant 9.99999974E-6 : f32
    %13 = vector.broadcast %cst_5 : f32 to vector<1x256xf32>
    %14 = arith.addf %12, %13 : vector<1x256xf32>
    %15 = math.rsqrt %14 : vector<1x256xf32>
    %16 = vector.broadcast %15 : vector<1x256xf32> to vector<16x256xf32>
    %17 = arith.mulf %7, %16 : vector<16x256xf32>
    %c0_6 = arith.constant 0 : index
    %c0_7 = arith.constant 0 : index
    %18 = vector.load %arg2[%c0_6, %c0_7] : memref<16x1xf32, #tpu.memory_space<vmem>>, vector<16x1xf32>
    %19 = vector.broadcast %18 : vector<16x1xf32> to vector<16x256xf32>
    %20 = arith.mulf %17, %19 : vector<16x256xf32>
    %c0_8 = arith.constant 0 : index
    %c0_9 = arith.constant 0 : index
    %21 = vector.load %arg3[%c0_8, %c0_9] : memref<16x1xf32, #tpu.memory_space<vmem>>, vector<16x1xf32>
    %22 = vector.broadcast %21 : vector<16x1xf32> to vector<16x256xf32>
    %23 = arith.addf %20, %22 : vector<16x256xf32>
    %c0_10 = arith.constant 0 : index
    %c0_11 = arith.constant 0 : index
    %c0_12 = arith.constant 0 : index
    %24 = vector.load %arg4[%c0_10, %c0_11, %c0_12] : memref<4x8x16xf32, #tpu.memory_space<vmem>>, vector<1x8x16xf32>
    %25 = vector.shape_cast %24 : vector<1x8x16xf32> to vector<8x16xf32>
    %cst_13 = arith.constant dense<0.000000e+00> : vector<8x256xf32>
    %26 = tpu.matmul %25, %23, %cst_13 {dimension_numbers = #tpu.dot_dimension_numbers<[1], [0], [0], [1], [0, 0, 1, 1], [], []>} : vector<8x16xf32>, vector<16x256xf32>, vector<8x256xf32> -> vector<8x256xf32>
    %c0_14 = arith.constant 0 : index
    %c0_15 = arith.constant 0 : index
    %27 = vector.load %arg5[%c0_14, %c0_15] : memref<8x1xf32, #tpu.memory_space<vmem>>, vector<8x1xf32>
    %28 = vector.broadcast %27 : vector<8x1xf32> to vector<8x256xf32>
    %29 = arith.addf %26, %28 : vector<8x256xf32>
    %c0_16 = arith.constant 0 : index
    %c0_17 = arith.constant 0 : index
    %c0_18 = arith.constant 0 : index
    %c0_19 = arith.constant 0 : index
    %30 = vector.load %arg6[%c0_16, %c0_17, %c0_18, %c0_19] : memref<1x4x8x256xf32, #tpu.memory_space<vmem>>, vector<1x1x8x256xf32>
    %31 = vector.shape_cast %30 : vector<1x1x8x256xf32> to vector<8x256xf32>
    %32 = vector.shape_cast %29 : vector<8x256xf32> to vector<1x1x8x256xf32>
    tpu.vector_store %arg6[%c0_16, %c0_17, %c0_18, %c0_19], %32 {strides = array<i32>} : memref<1x4x8x256xf32, #tpu.memory_space<vmem>>, vector<1x1x8x256xf32>,
    %c1 = arith.constant 1 : index
    %c0_20 = arith.constant 0 : index
    %c0_21 = arith.constant 0 : index
    %33 = vector.load %arg4[%c1, %c0_20, %c0_21] : memref<4x8x16xf32, #tpu.memory_space<vmem>>, vector<1x8x16xf32>
    %34 = vector.shape_cast %33 : vector<1x8x16xf32> to vector<8x16xf32>
    %cst_22 = arith.constant dense<0.000000e+00> : vector<8x256xf32>
    %35 = tpu.matmul %34, %23, %cst_22 {dimension_numbers = #tpu.dot_dimension_numbers<[1], [0], [0], [1], [0, 0, 1, 1], [], []>} : vector<8x16xf32>, vector<16x256xf32>, vector<8x256xf32> -> vector<8x256xf32>
    %c0_23 = arith.constant 0 : index
    %c0_24 = arith.constant 0 : index
    %36 = vector.load %arg5[%c0_23, %c0_24] : memref<8x1xf32, #tpu.memory_space<vmem>>, vector<8x1xf32>
    %37 = vector.broadcast %36 : vector<8x1xf32> to vector<8x256xf32>
    %38 = arith.addf %35, %37 : vector<8x256xf32>
    %c0_25 = arith.constant 0 : index
    %c1_26 = arith.constant 1 : index
    %c0_27 = arith.constant 0 : index
    %c0_28 = arith.constant 0 : index
    %39 = vector.load %arg6[%c0_25, %c1_26, %c0_27, %c0_28] : memref<1x4x8x256xf32, #tpu.memory_space<vmem>>, vector<1x1x8x256xf32>
    %40 = vector.shape_cast %39 : vector<1x1x8x256xf32> to vector<8x256xf32>
    %41 = vector.shape_cast %38 : vector<8x256xf32> to vector<1x1x8x256xf32>
    tpu.vector_store %arg6[%c0_25, %c1_26, %c0_27, %c0_28], %41 {strides = array<i32>} : memref<1x4x8x256xf32, #tpu.memory_space<vmem>>, vector<1x1x8x256xf32>,
    %c2 = arith.constant 2 : index
    %c0_29 = arith.constant 0 : index
    %c0_30 = arith.constant 0 : index
    %42 = vector.load %arg4[%c2, %c0_29, %c0_30] : memref<4x8x16xf32, #tpu.memory_space<vmem>>, vector<1x8x16xf32>
    %43 = vector.shape_cast %42 : vector<1x8x16xf32> to vector<8x16xf32>
    %cst_31 = arith.constant dense<0.000000e+00> : vector<8x256xf32>
    %44 = tpu.matmul %43, %23, %cst_31 {dimension_numbers = #tpu.dot_dimension_numbers<[1], [0], [0], [1], [0, 0, 1, 1], [], []>} : vector<8x16xf32>, vector<16x256xf32>, vector<8x256xf32> -> vector<8x256xf32>
    %c0_32 = arith.constant 0 : index
    %c0_33 = arith.constant 0 : index
    %45 = vector.load %arg5[%c0_32, %c0_33] : memref<8x1xf32, #tpu.memory_space<vmem>>, vector<8x1xf32>
    %46 = vector.broadcast %45 : vector<8x1xf32> to vector<8x256xf32>
    %47 = arith.addf %44, %46 : vector<8x256xf32>
    %c0_34 = arith.constant 0 : index
    %c2_35 = arith.constant 2 : index
    %c0_36 = arith.constant 0 : index
    %c0_37 = arith.constant 0 : index
    %48 = vector.load %arg6[%c0_34, %c2_35, %c0_36, %c0_37] : memref<1x4x8x256xf32, #tpu.memory_space<vmem>>, vector<1x1x8x256xf32>
    %49 = vector.shape_cast %48 : vector<1x1x8x256xf32> to vector<8x256xf32>
    %50 = vector.shape_cast %47 : vector<8x256xf32> to vector<1x1x8x256xf32>
    tpu.vector_store %arg6[%c0_34, %c2_35, %c0_36, %c0_37], %50 {strides = array<i32>} : memref<1x4x8x256xf32, #tpu.memory_space<vmem>>, vector<1x1x8x256xf32>,
    %c3 = arith.constant 3 : index
    %c0_38 = arith.constant 0 : index
    %c0_39 = arith.constant 0 : index
    %51 = vector.load %arg4[%c3, %c0_38, %c0_39] : memref<4x8x16xf32, #tpu.memory_space<vmem>>, vector<1x8x16xf32>
    %52 = vector.shape_cast %51 : vector<1x8x16xf32> to vector<8x16xf32>
    %cst_40 = arith.constant dense<0.000000e+00> : vector<8x256xf32>
    %53 = tpu.matmul %52, %23, %cst_40 {dimension_numbers = #tpu.dot_dimension_numbers<[1], [0], [0], [1], [0, 0, 1, 1], [], []>} : vector<8x16xf32>, vector<16x256xf32>, vector<8x256xf32> -> vector<8x256xf32>
    %c0_41 = arith.constant 0 : index
    %c0_42 = arith.constant 0 : index
    %54 = vector.load %arg5[%c0_41, %c0_42] : memref<8x1xf32, #tpu.memory_space<vmem>>, vector<8x1xf32>
    %55 = vector.broadcast %54 : vector<8x1xf32> to vector<8x256xf32>
    %56 = arith.addf %53, %55 : vector<8x256xf32>
    %c0_43 = arith.constant 0 : index
    %c3_44 = arith.constant 3 : index
    %c0_45 = arith.constant 0 : index
    %c0_46 = arith.constant 0 : index
    %57 = vector.load %arg6[%c0_43, %c3_44, %c0_45, %c0_46] : memref<1x4x8x256xf32, #tpu.memory_space<vmem>>, vector<1x1x8x256xf32>
    %58 = vector.shape_cast %57 : vector<1x1x8x256xf32> to vector<8x256xf32>
    %59 = vector.shape_cast %56 : vector<8x256xf32> to vector<1x1x8x256xf32>
    tpu.vector_store %arg6[%c0_43, %c3_44, %c0_45, %c0_46], %59 {strides = array<i32>} : memref<1x4x8x256xf32, #tpu.memory_space<vmem>>, vector<1x1x8x256xf32>,
    return
  }
  func.func @transform_0(%arg0: i32) -> (i32, i32, i32) {
    %c0_i32 = arith.constant 0 : i32
    %c0_i32_0 = arith.constant 0 : i32
    %c0_i32_1 = arith.constant 0 : i32
    return %arg0, %c0_i32, %c0_i32_0 : i32, i32, i32
  }
  func.func @transform_1(%arg0: i32) -> (i32, i32) {
    %c0_i32 = arith.constant 0 : i32
    %c0_i32_0 = arith.constant 0 : i32
    %c0_i32_1 = arith.constant 0 : i32
    return %c0_i32, %c0_i32_0 : i32, i32
  }
  func.func @transform_2(%arg0: i32) -> (i32, i32) {
    %c0_i32 = arith.constant 0 : i32
    %c0_i32_0 = arith.constant 0 : i32
    %c0_i32_1 = arith.constant 0 : i32
    return %c0_i32, %c0_i32_0 : i32, i32
  }
  func.func @transform_3(%arg0: i32) -> (i32, i32, i32) {
    %c0_i32 = arith.constant 0 : i32
    %c0_i32_0 = arith.constant 0 : i32
    %c0_i32_1 = arith.constant 0 : i32
    %c0_i32_2 = arith.constant 0 : i32
    return %c0_i32, %c0_i32_0, %c0_i32_1 : i32, i32, i32
  }
  func.func @transform_4(%arg0: i32) -> (i32, i32) {
    %c0_i32 = arith.constant 0 : i32
    %c0_i32_0 = arith.constant 0 : i32
    %c0_i32_1 = arith.constant 0 : i32
    return %c0_i32, %c0_i32_0 : i32, i32
  }
  func.func @transform_5(%arg0: i32) -> (i32, i32, i32, i32) {
    %c0_i32 = arith.constant 0 : i32
    %c0_i32_0 = arith.constant 0 : i32
    %c0_i32_1 = arith.constant 0 : i32
    %c0_i32_2 = arith.constant 0 : i32
    return %arg0, %c0_i32, %c0_i32_0, %c0_i32_1 : i32, i32, i32, i32
  }
}

module attributes {stable_mosaic.version = 11 : i64} {
  func.func @_conv3_bn_relu_kernel(%arg0: i32, %arg1: memref<1x8x1280xf32, #tpu.memory_space<vmem>>, %arg2: memref<8x72xf32, #tpu.memory_space<vmem>>, %arg3: memref<8x1xf32, #tpu.memory_space<vmem>>, %arg4: memref<8x1xf32, #tpu.memory_space<vmem>>, %arg5: memref<8x1xf32, #tpu.memory_space<vmem>>, %arg6: memref<1x8x1088xf32, #tpu.memory_space<vmem>>, %arg7: memref<72x1088xf32, #tpu.memory_space<vmem>>) attributes {dimension_semantics = [#tpu.dimension_semantics<parallel>], iteration_bounds = array<i64: 2>, scalar_prefetch = 0 : i64, scratch_operands = 1 : i64, tpu.core_type = #tpu.core_type<tc>, window_params = [{transform_indices = @transform_0, window_bounds = array<i64: 1, 8, 1280>}, {pipeline_mode = #tpu.pipeline_mode<synchronous>, transform_indices = @transform_1, window_bounds = array<i64: 8, 72>}, {pipeline_mode = #tpu.pipeline_mode<synchronous>, transform_indices = @transform_2, window_bounds = array<i64: 8, 1>}, {pipeline_mode = #tpu.pipeline_mode<synchronous>, transform_indices = @transform_3, window_bounds = array<i64: 8, 1>}, {pipeline_mode = #tpu.pipeline_mode<synchronous>, transform_indices = @transform_4, window_bounds = array<i64: 8, 1>}, {transform_indices = @transform_5, window_bounds = array<i64: 1, 8, 1088>}]} {
    %c0 = arith.constant 0 : index
    %c0_0 = arith.constant 0 : index
    %c0_1 = arith.constant 0 : index
    %0 = vector.load %arg1[%c0, %c0_0, %c0_1] : memref<1x8x1280xf32, #tpu.memory_space<vmem>>, vector<1x8x1088xf32>
    %1 = vector.shape_cast %0 : vector<1x8x1088xf32> to vector<8x1088xf32>
    %c0_2 = arith.constant 0 : index
    %c0_3 = arith.constant 0 : index
    %2 = vector.load %arg7[%c0_2, %c0_3] : memref<72x1088xf32, #tpu.memory_space<vmem>>, vector<8x1088xf32>
    tpu.vector_store %arg7[%c0_2, %c0_3], %1 {strides = array<i32>} : memref<72x1088xf32, #tpu.memory_space<vmem>>, vector<8x1088xf32>,
    %c0_4 = arith.constant 0 : index
    %c0_5 = arith.constant 0 : index
    %c1 = arith.constant 1 : index
    %3 = vector.load %arg1[%c0_4, %c0_5, %c1] : memref<1x8x1280xf32, #tpu.memory_space<vmem>>, vector<1x8x1088xf32>
    %4 = vector.shape_cast %3 : vector<1x8x1088xf32> to vector<8x1088xf32>
    %c8 = arith.constant 8 : index
    %c0_6 = arith.constant 0 : index
    %5 = vector.load %arg7[%c8, %c0_6] : memref<72x1088xf32, #tpu.memory_space<vmem>>, vector<8x1088xf32>
    tpu.vector_store %arg7[%c8, %c0_6], %4 {strides = array<i32>} : memref<72x1088xf32, #tpu.memory_space<vmem>>, vector<8x1088xf32>,
    %c0_7 = arith.constant 0 : index
    %c0_8 = arith.constant 0 : index
    %c2 = arith.constant 2 : index
    %6 = vector.load %arg1[%c0_7, %c0_8, %c2] : memref<1x8x1280xf32, #tpu.memory_space<vmem>>, vector<1x8x1088xf32>
    %7 = vector.shape_cast %6 : vector<1x8x1088xf32> to vector<8x1088xf32>
    %c16 = arith.constant 16 : index
    %c0_9 = arith.constant 0 : index
    %8 = vector.load %arg7[%c16, %c0_9] : memref<72x1088xf32, #tpu.memory_space<vmem>>, vector<8x1088xf32>
    tpu.vector_store %arg7[%c16, %c0_9], %7 {strides = array<i32>} : memref<72x1088xf32, #tpu.memory_space<vmem>>, vector<8x1088xf32>,
    %c0_10 = arith.constant 0 : index
    %c0_11 = arith.constant 0 : index
    %c34 = arith.constant 34 : index
    %9 = vector.load %arg1[%c0_10, %c0_11, %c34] : memref<1x8x1280xf32, #tpu.memory_space<vmem>>, vector<1x8x1088xf32>
    %10 = vector.shape_cast %9 : vector<1x8x1088xf32> to vector<8x1088xf32>
    %c24 = arith.constant 24 : index
    %c0_12 = arith.constant 0 : index
    %11 = vector.load %arg7[%c24, %c0_12] : memref<72x1088xf32, #tpu.memory_space<vmem>>, vector<8x1088xf32>
    tpu.vector_store %arg7[%c24, %c0_12], %10 {strides = array<i32>} : memref<72x1088xf32, #tpu.memory_space<vmem>>, vector<8x1088xf32>,
    %c0_13 = arith.constant 0 : index
    %c0_14 = arith.constant 0 : index
    %c35 = arith.constant 35 : index
    %12 = vector.load %arg1[%c0_13, %c0_14, %c35] : memref<1x8x1280xf32, #tpu.memory_space<vmem>>, vector<1x8x1088xf32>
    %13 = vector.shape_cast %12 : vector<1x8x1088xf32> to vector<8x1088xf32>
    %c32 = arith.constant 32 : index
    %c0_15 = arith.constant 0 : index
    %14 = vector.load %arg7[%c32, %c0_15] : memref<72x1088xf32, #tpu.memory_space<vmem>>, vector<8x1088xf32>
    tpu.vector_store %arg7[%c32, %c0_15], %13 {strides = array<i32>} : memref<72x1088xf32, #tpu.memory_space<vmem>>, vector<8x1088xf32>,
    %c0_16 = arith.constant 0 : index
    %c0_17 = arith.constant 0 : index
    %c36 = arith.constant 36 : index
    %15 = vector.load %arg1[%c0_16, %c0_17, %c36] : memref<1x8x1280xf32, #tpu.memory_space<vmem>>, vector<1x8x1088xf32>
    %16 = vector.shape_cast %15 : vector<1x8x1088xf32> to vector<8x1088xf32>
    %c40 = arith.constant 40 : index
    %c0_18 = arith.constant 0 : index
    %17 = vector.load %arg7[%c40, %c0_18] : memref<72x1088xf32, #tpu.memory_space<vmem>>, vector<8x1088xf32>
    tpu.vector_store %arg7[%c40, %c0_18], %16 {strides = array<i32>} : memref<72x1088xf32, #tpu.memory_space<vmem>>, vector<8x1088xf32>,
    %c0_19 = arith.constant 0 : index
    %c0_20 = arith.constant 0 : index
    %c68 = arith.constant 68 : index
    %18 = vector.load %arg1[%c0_19, %c0_20, %c68] : memref<1x8x1280xf32, #tpu.memory_space<vmem>>, vector<1x8x1088xf32>
    %19 = vector.shape_cast %18 : vector<1x8x1088xf32> to vector<8x1088xf32>
    %c48 = arith.constant 48 : index
    %c0_21 = arith.constant 0 : index
    %20 = vector.load %arg7[%c48, %c0_21] : memref<72x1088xf32, #tpu.memory_space<vmem>>, vector<8x1088xf32>
    tpu.vector_store %arg7[%c48, %c0_21], %19 {strides = array<i32>} : memref<72x1088xf32, #tpu.memory_space<vmem>>, vector<8x1088xf32>,
    %c0_22 = arith.constant 0 : index
    %c0_23 = arith.constant 0 : index
    %c69 = arith.constant 69 : index
    %21 = vector.load %arg1[%c0_22, %c0_23, %c69] : memref<1x8x1280xf32, #tpu.memory_space<vmem>>, vector<1x8x1088xf32>
    %22 = vector.shape_cast %21 : vector<1x8x1088xf32> to vector<8x1088xf32>
    %c56 = arith.constant 56 : index
    %c0_24 = arith.constant 0 : index
    %23 = vector.load %arg7[%c56, %c0_24] : memref<72x1088xf32, #tpu.memory_space<vmem>>, vector<8x1088xf32>
    tpu.vector_store %arg7[%c56, %c0_24], %22 {strides = array<i32>} : memref<72x1088xf32, #tpu.memory_space<vmem>>, vector<8x1088xf32>,
    %c0_25 = arith.constant 0 : index
    %c0_26 = arith.constant 0 : index
    %c70 = arith.constant 70 : index
    %24 = vector.load %arg1[%c0_25, %c0_26, %c70] : memref<1x8x1280xf32, #tpu.memory_space<vmem>>, vector<1x8x1088xf32>
    %25 = vector.shape_cast %24 : vector<1x8x1088xf32> to vector<8x1088xf32>
    %c64 = arith.constant 64 : index
    %c0_27 = arith.constant 0 : index
    %26 = vector.load %arg7[%c64, %c0_27] : memref<72x1088xf32, #tpu.memory_space<vmem>>, vector<8x1088xf32>
    tpu.vector_store %arg7[%c64, %c0_27], %25 {strides = array<i32>} : memref<72x1088xf32, #tpu.memory_space<vmem>>, vector<8x1088xf32>,
    %c0_28 = arith.constant 0 : index
    %c0_29 = arith.constant 0 : index
    %27 = vector.load %arg2[%c0_28, %c0_29] : memref<8x72xf32, #tpu.memory_space<vmem>>, vector<8x72xf32>
    %c0_30 = arith.constant 0 : index
    %c0_31 = arith.constant 0 : index
    %28 = vector.load %arg7[%c0_30, %c0_31] : memref<72x1088xf32, #tpu.memory_space<vmem>>, vector<72x1088xf32>
    %cst = arith.constant dense<0.000000e+00> : vector<8x1088xf32>
    %29 = tpu.matmul %27, %28, %cst {dimension_numbers = #tpu.dot_dimension_numbers<[1], [0], [0], [1], [0, 0, 1, 1], [], []>} : vector<8x72xf32>, vector<72x1088xf32>, vector<8x1088xf32> -> vector<8x1088xf32>
    %c0_32 = arith.constant 0 : index
    %c0_33 = arith.constant 0 : index
    %30 = vector.load %arg3[%c0_32, %c0_33] : memref<8x1xf32, #tpu.memory_space<vmem>>, vector<8x1xf32>
    %31 = vector.broadcast %30 : vector<8x1xf32> to vector<8x1088xf32>
    %32 = arith.addf %29, %31 : vector<8x1088xf32>
    %c0_34 = arith.constant 0 : index
    %c0_35 = arith.constant 0 : index
    %33 = vector.load %arg4[%c0_34, %c0_35] : memref<8x1xf32, #tpu.memory_space<vmem>>, vector<8x1xf32>
    %34 = vector.broadcast %33 : vector<8x1xf32> to vector<8x1088xf32>
    %35 = arith.mulf %32, %34 : vector<8x1088xf32>
    %c0_36 = arith.constant 0 : index
    %c0_37 = arith.constant 0 : index
    %36 = vector.load %arg5[%c0_36, %c0_37] : memref<8x1xf32, #tpu.memory_space<vmem>>, vector<8x1xf32>
    %37 = vector.broadcast %36 : vector<8x1xf32> to vector<8x1088xf32>
    %38 = arith.addf %35, %37 : vector<8x1088xf32>
    %cst_38 = arith.constant 0.000000e+00 : f32
    %39 = vector.broadcast %cst_38 : f32 to vector<8x1088xf32>
    %40 = arith.maximumf %38, %39 : vector<8x1088xf32>
    %c0_39 = arith.constant 0 : index
    %c0_40 = arith.constant 0 : index
    %c0_41 = arith.constant 0 : index
    %41 = vector.load %arg6[%c0_39, %c0_40, %c0_41] : memref<1x8x1088xf32, #tpu.memory_space<vmem>>, vector<1x8x1088xf32>
    %42 = vector.shape_cast %41 : vector<1x8x1088xf32> to vector<8x1088xf32>
    %43 = vector.shape_cast %40 : vector<8x1088xf32> to vector<1x8x1088xf32>
    tpu.vector_store %arg6[%c0_39, %c0_40, %c0_41], %43 {strides = array<i32>} : memref<1x8x1088xf32, #tpu.memory_space<vmem>>, vector<1x8x1088xf32>,
    return
  }
  func.func @transform_0(%arg0: i32) -> (i32, i32, i32) {
    %c0_i32 = arith.constant 0 : i32
    %c0_i32_0 = arith.constant 0 : i32
    %c0_i32_1 = arith.constant 0 : i32
    return %arg0, %c0_i32, %c0_i32_0 : i32, i32, i32
  }
  func.func @transform_1(%arg0: i32) -> (i32, i32) {
    %c0_i32 = arith.constant 0 : i32
    %c0_i32_0 = arith.constant 0 : i32
    %c0_i32_1 = arith.constant 0 : i32
    return %c0_i32, %c0_i32_0 : i32, i32
  }
  func.func @transform_2(%arg0: i32) -> (i32, i32) {
    %c0_i32 = arith.constant 0 : i32
    %c0_i32_0 = arith.constant 0 : i32
    %c0_i32_1 = arith.constant 0 : i32
    return %c0_i32, %c0_i32_0 : i32, i32
  }
  func.func @transform_3(%arg0: i32) -> (i32, i32) {
    %c0_i32 = arith.constant 0 : i32
    %c0_i32_0 = arith.constant 0 : i32
    %c0_i32_1 = arith.constant 0 : i32
    return %c0_i32, %c0_i32_0 : i32, i32
  }
  func.func @transform_4(%arg0: i32) -> (i32, i32) {
    %c0_i32 = arith.constant 0 : i32
    %c0_i32_0 = arith.constant 0 : i32
    %c0_i32_1 = arith.constant 0 : i32
    return %c0_i32, %c0_i32_0 : i32, i32
  }
  func.func @transform_5(%arg0: i32) -> (i32, i32, i32) {
    %c0_i32 = arith.constant 0 : i32
    %c0_i32_0 = arith.constant 0 : i32
    %c0_i32_1 = arith.constant 0 : i32
    return %arg0, %c0_i32, %c0_i32_0 : i32, i32, i32
  }
}

</mosaic_0001>

<llo_original>
// kernel: decoder_forward.6
$region0: #{decoder_forward.6}
  #allocation0 [shape = 'u32[]', space=smem, size = 0x4, offset = 0x4, fixed_abs, tag = 'smem constant byte address 0x4 - core index']
  #allocation1 [shape = 'u32[72,128]{1,0:T(1,128)}', space=vmem, size = 0x9000, scoped, tag = 'internal scratch']
  %s0 = inlined_call_operand.vmem [shape: f32[2,32,64], index: 0, kind: input, shape index: {}]
  %s1 = inlined_call_operand.vmem [shape: f32[32,1], index: 1, kind: input, shape index: {}]
  %s2 = inlined_call_operand.vmem [shape: f32[32,1], index: 2, kind: input, shape index: {}]
  %s3 = inlined_call_operand.vmem [shape: f32[4,16,32], index: 3, kind: input, shape index: {}]
  %s4 = inlined_call_operand.vmem [shape: f32[16,1], index: 4, kind: input, shape index: {}]
  %s5 = inlined_call_operand.vmem [shape: f32[2,4,16,64], index: 5, kind: output, shape index: {}]
  %s6 = sld [smem:[#allocation0]]
  $region53: #{decoder_forward.6} parent=0
    _
  %s8 = ssub.s32 1, %s6
  %s9 = scalar_select 0, %s8, %s6
  loop: start=0, step=1, limit=4
  $region2: #{decoder_forward.6} parent=0 // loop_pre_header
    _
  $region3: #{decoder_forward.6} parent=0 // loop_header
    %s11 = sphi 0, %s15
    %p12 = scmp.ge.s32.totalorder %s11, 4
    %s21 = sphi 0, %s23
    %s24 = sphi 0, %s21
    %s25 = sphi 0, %s24
    %s41 = sphi 0, %s25
    %s45 = sphi 0, %s45
    %s47 = sphi 0, %s45
    %s48 = sphi 0, %s47
    %s62 = sphi 0, %s48
    %s66 = sphi 0, %s66
    %s68 = sphi 0, %s66
    %s69 = sphi 0, %s68
    %s83 = sphi 0, %s69
    %s87 = sphi 0, %s87
    %s89 = sphi 0, %s87
    %s90 = sphi 0, %s89
    %s104 = sphi 0, %s90
    %s108 = sphi 0, %s108
    %s110 = sphi 0, %s108
    %s111 = sphi 0, %s110
    %s125 = sphi 0, %s111
    %s131 = sphi 0, %s133
    %s134 = sphi 0, %s131
    %s135 = sphi 0, %s134
    %s151 = sphi 0, %s135
  $region4: #{decoder_forward.6} parent=0 // loop_header_branch
    %14 = sbr.rel (%p12) target = $region8
  $region5: #{decoder_forward.6} parent=0 // loop_body
    %s16 = ssub.s32 %s11, 1
    %s17 = ssub.s32 %s11, 2
    %s18 = sadd.s32 %s11, 1
    %s19 = ssub.s32 %s11, %s18
    %p20 = scmp.eq.s32.totalorder %s19, 0
    %s22 = sadd.s32 %s21, 1
    %s23 = scalar_select %p20, %s21, %s22
    %p26 = pneg %p20
    %p27 = scmp.eq.s32.totalorder %s11, 1
    %p28 = por %p26, %p27
    %p29 = scmp.ne.s32.totalorder %s21, %s24
    %p30 = scmp.eq.s32.totalorder %s11, 0
    %p31 = por %p29, %p30
    %p32 = scmp.ne.s32.totalorder %s21, %s24
    %p33 = scmp.eq.s32.totalorder %s16, 1
    %p34 = por %p32, %p33
    %p35 = scmp.ne.s32.totalorder %s24, %s25
    %p36 = scmp.eq.s32.totalorder %s16, 0
    %p37 = por %p35, %p36
    %p38 = scmp.ne.s32.totalorder %s24, %s25
    %p39 = scmp.eq.s32.totalorder %s17, 1
    %p40 = por %p38, %p39
    %p42 = scmp.ne.s32.totalorder %s25, %s41
    %p43 = scmp.eq.s32.totalorder %s17, 0
    %p44 = por %p42, %p43
    %s46 = sadd.s32 %s45, 1
    %p49 = scmp.eq.s32.totalorder %s11, 1
    %p50 = scmp.ne.s32.totalorder %s45, %s47
    %p51 = scmp.eq.s32.totalorder %s11, 0
    %p52 = por %p50, %p51
    %p53 = scmp.ne.s32.totalorder %s45, %s47
    %p54 = scmp.eq.s32.totalorder %s16, 1
    %p55 = por %p53, %p54
    %p56 = scmp.ne.s32.totalorder %s47, %s48
    %p57 = scmp.eq.s32.totalorder %s16, 0
    %p58 = por %p56, %p57
    %p59 = scmp.ne.s32.totalorder %s47, %s48
    %p60 = scmp.eq.s32.totalorder %s17, 1
    %p61 = por %p59, %p60
    %p63 = scmp.ne.s32.totalorder %s48, %s62
    %p64 = scmp.eq.s32.totalorder %s17, 0
    %p65 = por %p63, %p64
    %s67 = sadd.s32 %s66, 1
    %p70 = scmp.eq.s32.totalorder %s11, 1
    %p71 = scmp.ne.s32.totalorder %s66, %s68
    %p72 = scmp.eq.s32.totalorder %s11, 0
    %p73 = por %p71, %p72
    %p74 = scmp.ne.s32.totalorder %s66, %s68
    %p75 = scmp.eq.s32.totalorder %s16, 1
    %p76 = por %p74, %p75
    %p77 = scmp.ne.s32.totalorder %s68, %s69
    %p78 = scmp.eq.s32.totalorder %s16, 0
    %p79 = por %p77, %p78
    %p80 = scmp.ne.s32.totalorder %s68, %s69
    %p81 = scmp.eq.s32.totalorder %s17, 1
    %p82 = por %p80, %p81
    %p84 = scmp.ne.s32.totalorder %s69, %s83
    %p85 = scmp.eq.s32.totalorder %s17, 0
    %p86 = por %p84, %p85
    %s88 = sadd.s32 %s87, 1
    %p91 = scmp.eq.s32.totalorder %s11, 1
    %p92 = scmp.ne.s32.totalorder %s87, %s89
    %p93 = scmp.eq.s32.totalorder %s11, 0
    %p94 = por %p92, %p93
    %p95 = scmp.ne.s32.totalorder %s87, %s89
    %p96 = scmp.eq.s32.totalorder %s16, 1
    %p97 = por %p95, %p96
    %p98 = scmp.ne.s32.totalorder %s89, %s90
    %p99 = scmp.eq.s32.totalorder %s16, 0
    %p100 = por %p98, %p99
    %p101 = scmp.ne.s32.totalorder %s89, %s90
    %p102 = scmp.eq.s32.totalorder %s17, 1
    %p103 = por %p101, %p102
    %p105 = scmp.ne.s32.totalorder %s90, %s104
    %p106 = scmp.eq.s32.totalorder %s17, 0
    %p107 = por %p105, %p106
    %s109 = sadd.s32 %s108, 1
    %p112 = scmp.eq.s32.totalorder %s11, 1
    %p113 = scmp.ne.s32.totalorder %s108, %s110
    %p114 = scmp.eq.s32.totalorder %s11, 0
    %p115 = por %p113, %p114
    %p116 = scmp.ne.s32.totalorder %s108, %s110
    %p117 = scmp.eq.s32.totalorder %s16, 1
    %p118 = por %p116, %p117
    %p119 = scmp.ne.s32.totalorder %s110, %s111
    %p120 = scmp.eq.s32.totalorder %s16, 0
    %p121 = por %p119, %p120
    %p122 = scmp.ne.s32.totalorder %s110, %s111
    %p123 = scmp.eq.s32.totalorder %s17, 1
    %p124 = por %p122, %p123
    %p126 = scmp.ne.s32.totalorder %s111, %s125
    %p127 = scmp.eq.s32.totalorder %s17, 0
    %p128 = por %p126, %p127
    %s129 = ssub.s32 %s11, %s18
    %p130 = scmp.eq.s32.totalorder %s129, 0
    %s132 = sadd.s32 %s131, 1
    %s133 = scalar_select %p130, %s131, %s132
    %p136 = pneg %p130
    %p137 = scmp.eq.s32.totalorder %s11, 1
    %p138 = por %p136, %p137
    %p139 = scmp.ne.s32.totalorder %s131, %s134
    %p140 = scmp.eq.s32.totalorder %s11, 0
    %p141 = por %p139, %p140
    %p142 = scmp.ne.s32.totalorder %s131, %s134
    %p143 = scmp.eq.s32.totalorder %s16, 1
    %p144 = por %p142, %p143
    %p145 = scmp.ne.s32.totalorder %s134, %s135
    %p146 = scmp.eq.s32.totalorder %s16, 0
    %p147 = por %p145, %p146
    %p148 = scmp.ne.s32.totalorder %s134, %s135
    %p149 = scmp.eq.s32.totalorder %s17, 1
    %p150 = por %p148, %p149
    %p152 = scmp.ne.s32.totalorder %s135, %s151
    %p153 = scmp.eq.s32.totalorder %s17, 0
    %p154 = por %p152, %p153
    %p155 = scmp.le.s32.totalorder 1, %s11
    %p156 = scmp.lt.s32.totalorder %s11, 3
    %p157 = pnand %p155, %p156
    %p158 = pneg %p157
    // Predicated region
    $region9: #{decoder_forward.6} parent=5 // pred_check
      _
    $region10: #{decoder_forward.6} parent=5 // pred_check_branch
      %160 = sbr.rel (%p157) target = $region12
    $region11: #{decoder_forward.6} parent=5 // pred_region
      %s161 = ssub.s32 %s11, 1
      // Predicated region
      $region13: #{decoder_forward.6} parent=11 // pred_check
        %p162 = pneg %p58
      $region14: #{decoder_forward.6} parent=11 // pred_check_branch
        %164 = sbr.rel (%p162) target = $region16
      $region15: #{decoder_forward.6} parent=11 // pred_region
        _
      $region16: #{decoder_forward.6} parent=11 // pred_fallthru
        _
      // Predicated region
      $region17: #{decoder_forward.6} parent=11 // pred_check
        %p165 = pneg %p79
      $region18: #{decoder_forward.6} parent=11 // pred_check_branch
        %167 = sbr.rel (%p165) target = $region20
      $region19: #{decoder_forward.6} parent=11 // pred_region
        _
      $region20: #{decoder_forward.6} parent=11 // pred_fallthru
        _
      // Predicated region
      $region21: #{decoder_forward.6} parent=11 // pred_check
        %p168 = pneg %p100
      $region22: #{decoder_forward.6} parent=11 // pred_check_branch
        %170 = sbr.rel (%p168) target = $region24
      $region23: #{decoder_forward.6} parent=11 // pred_region
        _
      $region24: #{decoder_forward.6} parent=11 // pred_fallthru
        _
      // Predicated region
      $region25: #{decoder_forward.6} parent=11 // pred_check
        %p171 = pneg %p121
      $region26: #{decoder_forward.6} parent=11 // pred_check_branch
        %173 = sbr.rel (%p171) target = $region28
      $region27: #{decoder_forward.6} parent=11 // pred_region
        _
      $region28: #{decoder_forward.6} parent=11 // pred_fallthru
        _
    $region12: #{decoder_forward.6} parent=5 // pred_fallthru
      _
    %p174 = scmp.lt.s32.totalorder %s11, 2
    // Predicated region
    $region29: #{decoder_forward.6} parent=5 // pred_check
      %p175 = pneg %p174
    $region30: #{decoder_forward.6} parent=5 // pred_check_branch
      %177 = sbr.rel (%p175) target = $region32
    $region31: #{decoder_forward.6} parent=5 // pred_region
      // Predicated region
      $region33: #{decoder_forward.6} parent=31 // pred_check
        %p178 = pneg %p31
      $region34: #{decoder_forward.6} parent=31 // pred_check_branch
        %180 = sbr.rel (%p178) target = $region36
      $region35: #{decoder_forward.6} parent=31 // pred_region
        %p181 = scmp.lt.s32.totalorder %s11, 1
        %s182 = scalar_select %p181, %s11, 1
        %s183 = smul.addr %s182, 4
        %s184 = smul.addr %s183, 8
        %s185 = scalar_lea.vmem %s0, %s184
      $region36: #{decoder_forward.6} parent=31 // pred_fallthru
        _
    $region32: #{decoder_forward.6} parent=5 // pred_fallthru
      _
    %p186 = scmp.le.s32.totalorder 1, %s11
    %p187 = scmp.lt.s32.totalorder %s11, 3
    %p188 = pnand %p186, %p187
    %p189 = pneg %p188
    // Predicated region
    $region37: #{decoder_forward.6} parent=5 // pred_check
      _
    $region38: #{decoder_forward.6} parent=5 // pred_check_branch
      %191 = sbr.rel (%p188) target = $region40
    $region39: #{decoder_forward.6} parent=5 // pred_region
      %s192 = ssub.s32 %s11, 1
      %p193 = scmp.lt.s32.totalorder %s16, 1
      %s194 = scalar_select %p193, %s16, 1
      %s195 = smul.addr %s194, 4
      %s196 = smul.addr %s195, 8
      %s197 = scalar_lea.vmem %s0, %s196
      %p198 = pneg %p37
      %p199 = pneg %p34
      %p200 = pneg %p58
      %p201 = pneg %p55
      %p202 = pneg %p79
      %p203 = pneg %p76
      %p204 = pneg %p100
      %p205 = pneg %p97
      %p206 = pneg %p121
      %p207 = pneg %p118
      %p208 = pneg %p147
      %p209 = pneg %p144
      %p210 = scmp.lt.s32.totalorder %s16, 1
      %s211 = scalar_select %p210, %s16, 1
      %s212 = smul.addr %s211, 8
      %s213 = smul.addr %s212, 8
      %s214 = scalar_lea.vmem %s5, %s213
      %p215 = scmp.lt.s32.totalorder %s16, 1
      %s216 = scalar_select %p215, %s16, 1
      %s217 = smul.addr %s216, 4
      %s218 = smul.addr %s217, 8
      %s219 = scalar_lea.vmem %s0, %s218
      %p220 = scmp.lt.s32.totalorder %s16, 1
      %s221 = scalar_select %p220, %s16, 1
      %s222 = smul.addr %s221, 8
      %s223 = smul.addr %s222, 8
      %s224 = scalar_lea.vmem %s5, %s223
      %v225 = vld [vmem:[%s219] sm:$0xff]
      %v226 = vld [vmem:[%s219 + $0x8] sm:$0xff]
      %v227 = vld [vmem:[%s219 + $0x10] sm:$0xff]
      %v228 = vld [vmem:[%s219 + $0x18] sm:$0xff]
      %vm229 = vcmask 523264
      %v230 = vsel %vm229, %v225, 0.0
      %v231 = vsel %vm229, %v226, 0.0
      %v232 = vadd.f32 %v230, %v231
      %v233 = vsel %vm229, %v227, 0.0
      %v234 = vadd.f32 %v232, %v233
      %v235 = vsel %vm229, %v228, 0.0
      %v236 = vadd.f32 %v234, %v235
      %v237 = vrot.slane %v236, 4
      %v238 = vadd.f32 %v236, %v237
      %v239 = vrot.slane %v238, 2
      %v240 = vadd.f32 %v238, %v239
      %v241 = vrot.slane %v240, 1
      %v242 = vadd.f32 %v240, %v241
      %v243 = vrcp.pop 32.0
      %v244 = vmul.f32 32.0, %v243
      %v245 = vsub.f32 1.0, %v244
      %v246 = vmul.f32 %v243, %v245
      %v247 = vadd.f32 %v243, %v246
      %vm248 = vweird.f32 %v243
      %v249 = vsel %vm248, %v243, %v247
      %v250 = vmul.f32 %v242, %v249
      %v251 = vsub.f32 %v225, %v250
      %v252 = vsub.f32 %v226, %v250
      %v253 = vsub.f32 %v227, %v250
      %v254 = vsub.f32 %v228, %v250
      %v255 = vmul.f32 %v251, %v251
      %v256 = vmul.f32 %v252, %v252
      %v257 = vmul.f32 %v253, %v253
      %v258 = vmul.f32 %v254, %v254
      %v259 = vsel %vm229, %v255, 0.0
      %v260 = vsel %vm229, %v256, 0.0
      %v261 = vadd.f32 %v259, %v260
      %v262 = vsel %vm229, %v257, 0.0
      %v263 = vadd.f32 %v261, %v262
      %v264 = vsel %vm229, %v258, 0.0
      %v265 = vadd.f32 %v263, %v264
      %v266 = vrot.slane %v265, 4
      %v267 = vadd.f32 %v265, %v266
      %v268 = vrot.slane %v267, 2
      %v269 = vadd.f32 %v267, %v268
      %v270 = vrot.slane %v269, 1
      %v271 = vadd.f32 %v269, %v270
      %v272 = vmul.f32 %v271, %v249
      %v273 = vadd.f32 %v272, 1e-05
      %v274 = vrsqrt.pop %v273
      %v275 = vmul.f32 %v274, %v273
      %v276 = vmul.f32 %v275, %v274
      %v277 = vmul.f32 0.5, %v276
      %v278 = vsub.f32 1.5, %v277
      %v279 = vmul.f32 %v274, %v278
      %vm280 = vweird.f32 %v273
      %vm281 = vweird.f32 %v274
      %vm282 = vmor %vm280, %vm281
      %v283 = vsel %vm282, %v274, %v279
      %v284 = vmul.f32 %v251, %v283
      %v285 = vmul.f32 %v252, %v283
      %v286 = vmul.f32 %v253, %v283
      %v287 = vmul.f32 %v254, %v283
      %v288 = vld [vmem:[%s1] sm:$0xff]
      %v289 = vld [vmem:[%s1 + $0x8] sm:$0xff]
      %v290 = vld [vmem:[%s1 + $0x10] sm:$0xff]
      %v291 = vld [vmem:[%s1 + $0x18] sm:$0xff]
      %293 = vset.pattern.permute.xlu0 0
      %294 = vperm.xlu0 %293, %v288
      %v295 = vpop.permute.xlu0 %294
      %298 = vset.pattern.permute.xlu0 0
      %299 = vperm.xlu0 %298, %v289
      %v300 = vpop.permute.xlu0 %299
      %303 = vset.pattern.permute.xlu0 0
      %304 = vperm.xlu0 %303, %v290
      %v305 = vpop.permute.xlu0 %304
      %308 = vset.pattern.permute.xlu0 0
      %309 = vperm.xlu0 %308, %v291
      %v310 = vpop.permute.xlu0 %309
      %v312 = vmul.f32 %v284, %v295
      %v313 = vmul.f32 %v285, %v300
      %v314 = vmul.f32 %v286, %v305
      %v315 = vmul.f32 %v287, %v310
      %v316 = vld [vmem:[%s2] sm:$0xff]
      %v317 = vld [vmem:[%s2 + $0x8] sm:$0xff]
      %v318 = vld [vmem:[%s2 + $0x10] sm:$0xff]
      %v319 = vld [vmem:[%s2 + $0x18] sm:$0xff]
      %321 = vset.pattern.permute.xlu0 0
      %322 = vperm.xlu0 %321, %v316
      %v323 = vpop.permute.xlu0 %322
      %326 = vset.pattern.permute.xlu0 0
      %327 = vperm.xlu0 %326, %v317
      %v328 = vpop.permute.xlu0 %327
      %331 = vset.pattern.permute.xlu0 0
      %332 = vperm.xlu0 %331, %v318
      %v333 = vpop.permute.xlu0 %332
      %336 = vset.pattern.permute.xlu0 0
      %337 = vperm.xlu0 %336, %v319
      %v338 = vpop.permute.xlu0 %337
      %v340 = vadd.f32 %v312, %v323
      %v341 = vadd.f32 %v313, %v328
      %v342 = vadd.f32 %v314, %v333
      %v343 = vadd.f32 %v315, %v338
      %v344 = vld [vmem:[%s3] sm:$0xff]
      %v345 = vld [vmem:[%s3 + $0x8] sm:$0xff]
      %v346 = vld [vmem:[%s4] sm:$0xff]
      %v347 = vld [vmem:[%s4 + $0x8] sm:$0xff]
      %349 = vset.pattern.permute.xlu0 0
      %350 = vperm.xlu0 %349, %v346
      %v351 = vpop.permute.xlu0 %350
      %354 = vset.pattern.permute.xlu0 0
      %355 = vperm.xlu0 %354, %v347
      %v356 = vpop.permute.xlu0 %355
      %vm358 = vcmask 261120
      %v360 = vsel %vm358, %v344, 0
      %v363 = vsel %vm358, %v345, 0
      %365 = vmatpush.msra.mxu0 0.0
      %366 = vmatpush.msra.mxu0 0.0
      %367 = vmatpush.msra.mxu0 0.0
      %368 = vmatpush.msra.mxu0 0.0
      %369 = vmatpush.msra.mxu0 0.0
      %370 = vmatpush.msra.mxu0 0.0
      %371 = vmatpush.msra.mxu0 0.0
      %372 = vmatpush.msra.mxu0 0.0
      %373 = vmatpush.msra.mxu0 0.0
      %374 = vmatpush.msra.mxu0 0.0
      %375 = vmatpush.msra.mxu0 0.0
      %376 = vmatpush.msra.mxu0 0.0
      %377 = vmatpush.msra.mxu0 %v343
      %378 = vmatpush.msra.mxu0 %v342
      %379 = vmatpush.msra.mxu0 %v341
      %380 = vmatpush.msra.mxu0 %v340
      %381 = vmatmul.f32.gmra.mxu0 %v360
      %v382 = vpop.f32.mrf.mxu0
      %v383 = vadd.f32 %v351, %v382
      %384 = vmatmul.f32.gmra.mxu0 %v363
      %v385 = vpop.f32.mrf.mxu0
      %v386 = vadd.f32 %v356, %v385
      %387 = vdwg.mxu0
      %388 = vst.msk [vmem:[%s224] sm:$0xff] %vm229, %v383
      %389 = vst.msk [vmem:[%s224 + $0x8] sm:$0xff] %vm229, %v386
      %s390 = scalar_lea.vmem %s3, 16
      %v391 = vld [vmem:[%s390] sm:$0xff]
      %v392 = vld [vmem:[%s390 + $0x8] sm:$0xff]
      %v393 = vld [vmem:[%s4] sm:$0xff]
      %v394 = vld [vmem:[%s4 + $0x8] sm:$0xff]
      %396 = vset.pattern.permute.xlu0 0
      %397 = vperm.xlu0 %396, %v393
      %v398 = vpop.permute.xlu0 %397
      %401 = vset.pattern.permute.xlu0 0
      %402 = vperm.xlu0 %401, %v394
      %v403 = vpop.permute.xlu0 %402
      %v406 = vsel %vm358, %v391, 0
      %v409 = vsel %vm358, %v392, 0
      %411 = vmatpush.msra.mxu0 0.0
      %412 = vmatpush.msra.mxu0 0.0
      %413 = vmatpush.msra.mxu0 0.0
      %414 = vmatpush.msra.mxu0 0.0
      %415 = vmatpush.msra.mxu0 0.0
      %416 = vmatpush.msra.mxu0 0.0
      %417 = vmatpush.msra.mxu0 0.0
      %418 = vmatpush.msra.mxu0 0.0
      %419 = vmatpush.msra.mxu0 0.0
      %420 = vmatpush.msra.mxu0 0.0
      %421 = vmatpush.msra.mxu0 0.0
      %422 = vmatpush.msra.mxu0 0.0
      %423 = vmatpush.msra.mxu0 %v343
      %424 = vmatpush.msra.mxu0 %v342
      %425 = vmatpush.msra.mxu0 %v341
      %426 = vmatpush.msra.mxu0 %v340
      %427 = vmatmul.f32.gmra.mxu0 %v406
      %v428 = vpop.f32.mrf.mxu0
      %v429 = vadd.f32 %v398, %v428
      %430 = vmatmul.f32.gmra.mxu0 %v409
      %v431 = vpop.f32.mrf.mxu0
      %v432 = vadd.f32 %v403, %v431
      %433 = vdwg.mxu0
      %s434 = scalar_lea.vmem %s224, 16
      %435 = vst.msk [vmem:[%s434] sm:$0xff] %vm229, %v429
      %436 = vst.msk [vmem:[%s434 + $0x8] sm:$0xff] %vm229, %v432
      %s437 = scalar_lea.vmem %s3, 32
      %v438 = vld [vmem:[%s437] sm:$0xff]
      %v439 = vld [vmem:[%s437 + $0x8] sm:$0xff]
      %v440 = vld [vmem:[%s4] sm:$0xff]
      %v441 = vld [vmem:[%s4 + $0x8] sm:$0xff]
      %443 = vset.pattern.permute.xlu0 0
      %444 = vperm.xlu0 %443, %v440
      %v445 = vpop.permute.xlu0 %444
      %448 = vset.pattern.permute.xlu0 0
      %449 = vperm.xlu0 %448, %v441
      %v450 = vpop.permute.xlu0 %449
      %v453 = vsel %vm358, %v438, 0
      %v456 = vsel %vm358, %v439, 0
      %458 = vmatpush.msra.mxu0 0.0
      %459 = vmatpush.msra.mxu0 0.0
      %460 = vmatpush.msra.mxu0 0.0
      %461 = vmatpush.msra.mxu0 0.0
      %462 = vmatpush.msra.mxu0 0.0
      %463 = vmatpush.msra.mxu0 0.0
      %464 = vmatpush.msra.mxu0 0.0
      %465 = vmatpush.msra.mxu0 0.0
      %466 = vmatpush.msra.mxu0 0.0
      %467 = vmatpush.msra.mxu0 0.0
      %468 = vmatpush.msra.mxu0 0.0
      %469 = vmatpush.msra.mxu0 0.0
      %470 = vmatpush.msra.mxu0 %v343
      %471 = vmatpush.msra.mxu0 %v342
      %472 = vmatpush.msra.mxu0 %v341
      %473 = vmatpush.msra.mxu0 %v340
      %474 = vmatmul.f32.gmra.mxu0 %v453
      %v475 = vpop.f32.mrf.mxu0
      %v476 = vadd.f32 %v445, %v475
      %477 = vmatmul.f32.gmra.mxu0 %v456
      %v478 = vpop.f32.mrf.mxu0
      %v479 = vadd.f32 %v450, %v478
      %480 = vdwg.mxu0
      %s481 = scalar_lea.vmem %s224, 32
      %482 = vst.msk [vmem:[%s481] sm:$0xff] %vm229, %v476
      %483 = vst.msk [vmem:[%s481 + $0x8] sm:$0xff] %vm229, %v479
      %s484 = scalar_lea.vmem %s3, 48
      %v485 = vld [vmem:[%s484] sm:$0xff]
      %v486 = vld [vmem:[%s484 + $0x8] sm:$0xff]
      %v487 = vld [vmem:[%s4] sm:$0xff]
      %v488 = vld [vmem:[%s4 + $0x8] sm:$0xff]
      %490 = vset.pattern.permute.xlu0 0
      %491 = vperm.xlu0 %490, %v487
      %v492 = vpop.permute.xlu0 %491
      %495 = vset.pattern.permute.xlu0 0
      %496 = vperm.xlu0 %495, %v488
      %v497 = vpop.permute.xlu0 %496
      %v500 = vsel %vm358, %v485, 0
      %v503 = vsel %vm358, %v486, 0
      %505 = vmatpush.msra.mxu0 0.0
      %506 = vmatpush.msra.mxu0 0.0
      %507 = vmatpush.msra.mxu0 0.0
      %508 = vmatpush.msra.mxu0 0.0
      %509 = vmatpush.msra.mxu0 0.0
      %510 = vmatpush.msra.mxu0 0.0
      %511 = vmatpush.msra.mxu0 0.0
      %512 = vmatpush.msra.mxu0 0.0
      %513 = vmatpush.msra.mxu0 0.0
      %514 = vmatpush.msra.mxu0 0.0
      %515 = vmatpush.msra.mxu0 0.0
      %516 = vmatpush.msra.mxu0 0.0
      %517 = vmatpush.msra.mxu0 %v343
      %518 = vmatpush.msra.mxu0 %v342
      %519 = vmatpush.msra.mxu0 %v341
      %520 = vmatpush.msra.mxu0 %v340
      %521 = vmatmul.f32.gmra.mxu0 %v500
      %v522 = vpop.f32.mrf.mxu0
      %v523 = vadd.f32 %v492, %v522
      %524 = vmatmul.f32.gmra.mxu0 %v503
      %v525 = vpop.f32.mrf.mxu0
      %v526 = vadd.f32 %v497, %v525
      %527 = vdwg.mxu0
      %s528 = scalar_lea.vmem %s224, 48
      %529 = vst.msk [vmem:[%s528] sm:$0xff] %vm229, %v523
      %530 = vst.msk [vmem:[%s528 + $0x8] sm:$0xff] %vm229, %v526
      %p531 = scmp.lt.s32.totalorder %s16, 1
      %s532 = scalar_select %p531, %s16, 1
      %s533 = smul.addr %s532, 8
      %s534 = smul.addr %s533, 8
      %s535 = scalar_lea.vmem %s5, %s534
      // Predicated region
      $region41: #{decoder_forward.6} parent=39 // pred_check
        %p536 = pneg %p144
      $region42: #{decoder_forward.6} parent=39 // pred_check_branch
        %538 = sbr.rel (%p536) target = $region44
      $region43: #{decoder_forward.6} parent=39 // pred_region
        _
      $region44: #{decoder_forward.6} parent=39 // pred_fallthru
        _
    $region40: #{decoder_forward.6} parent=5 // pred_fallthru
      _
    %p539 = scmp.le.s32.totalorder 2, %s11
    // Predicated region
    $region45: #{decoder_forward.6} parent=5 // pred_check
      %p540 = pneg %p539
    $region46: #{decoder_forward.6} parent=5 // pred_check_branch
      %542 = sbr.rel (%p540) target = $region48
    $region47: #{decoder_forward.6} parent=5 // pred_region
      %s543 = ssub.s32 %s11, 2
      // Predicated region
      $region49: #{decoder_forward.6} parent=47 // pred_check
        %p544 = pneg %p150
      $region50: #{decoder_forward.6} parent=47 // pred_check_branch
        %546 = sbr.rel (%p544) target = $region52
      $region51: #{decoder_forward.6} parent=47 // pred_region
        %p547 = scmp.lt.s32.totalorder %s17, 1
        %s548 = scalar_select %p547, %s17, 1
        %s549 = smul.addr %s548, 8
        %s550 = smul.addr %s549, 8
        %s551 = scalar_lea.vmem %s5, %s550
      $region52: #{decoder_forward.6} parent=47 // pred_fallthru
        _
    $region48: #{decoder_forward.6} parent=5 // pred_fallthru
      _
  $region6: #{decoder_forward.6} parent=0 // loop_footer
    %s15 = sadd.s32 1, %s11
  $region7: #{decoder_forward.6} parent=0 // loop_footer_branch
    %10 = sbr.rel target = $region3
  $region8: #{decoder_forward.6} parent=0 // loop_exit
    _

// kernel: decoder_forward.7
$region0: #{decoder_forward.7}
  #allocation0 [shape = 'u32[]', space=smem, size = 0x4, offset = 0x4, fixed_abs, tag = 'smem constant byte address 0x4 - core index']
  #allocation1 [shape = 'u32[72,128]{1,0:T(1,128)}', space=vmem, size = 0x9000, scoped, tag = 'internal scratch']
  #allocation2 [shape = 'f32[144,288]{1,0:T(8,128)}', space=vmem, size = 0x36000, scoped, tag = 'scratch operand']
  %s0 = inlined_call_operand.vmem [shape: f32[2,16,384], index: 0, kind: input, shape index: {}]
  %s1 = inlined_call_operand.vmem [shape: f32[16,144], index: 1, kind: input, shape index: {}]
  %s2 = inlined_call_operand.vmem [shape: f32[16,1], index: 2, kind: input, shape index: {}]
  %s3 = inlined_call_operand.vmem [shape: f32[16,1], index: 3, kind: input, shape index: {}]
  %s4 = inlined_call_operand.vmem [shape: f32[16,1], index: 4, kind: input, shape index: {}]
  %s5 = inlined_call_operand.vmem [shape: f32[2,16,288], index: 5, kind: output, shape index: {}]
  %s6 = sld [smem:[#allocation0]]
  $region53: #{decoder_forward.7} parent=0
    _
  %s8 = ssub.s32 1, %s6
  %s9 = scalar_select 0, %s8, %s6
  loop: start=0, step=1, limit=4
  $region2: #{decoder_forward.7} parent=0 // loop_pre_header
    _
  $region3: #{decoder_forward.7} parent=0 // loop_header
    %s11 = sphi 0, %s15
    %p12 = scmp.ge.s32.totalorder %s11, 4
    %s21 = sphi 0, %s23
    %s24 = sphi 0, %s21
    %s25 = sphi 0, %s24
    %s41 = sphi 0, %s25
    %s45 = sphi 0, %s45
    %s47 = sphi 0, %s45
    %s48 = sphi 0, %s47
    %s62 = sphi 0, %s48
    %s66 = sphi 0, %s66
    %s68 = sphi 0, %s66
    %s69 = sphi 0, %s68
    %s83 = sphi 0, %s69
    %s87 = sphi 0, %s87
    %s89 = sphi 0, %s87
    %s90 = sphi 0, %s89
    %s104 = sphi 0, %s90
    %s108 = sphi 0, %s108
    %s110 = sphi 0, %s108
    %s111 = sphi 0, %s110
    %s125 = sphi 0, %s111
    %s131 = sphi 0, %s133
    %s134 = sphi 0, %s131
    %s135 = sphi 0, %s134
    %s151 = sphi 0, %s135
  $region4: #{decoder_forward.7} parent=0 // loop_header_branch
    %14 = sbr.rel (%p12) target = $region8
  $region5: #{decoder_forward.7} parent=0 // loop_body
    %s16 = ssub.s32 %s11, 1
    %s17 = ssub.s32 %s11, 2
    %s18 = sadd.s32 %s11, 1
    %s19 = ssub.s32 %s11, %s18
    %p20 = scmp.eq.s32.totalorder %s19, 0
    %s22 = sadd.s32 %s21, 1
    %s23 = scalar_select %p20, %s21, %s22
    %p26 = pneg %p20
    %p27 = scmp.eq.s32.totalorder %s11, 1
    %p28 = por %p26, %p27
    %p29 = scmp.ne.s32.totalorder %s21, %s24
    %p30 = scmp.eq.s32.totalorder %s11, 0
    %p31 = por %p29, %p30
    %p32 = scmp.ne.s32.totalorder %s21, %s24
    %p33 = scmp.eq.s32.totalorder %s16, 1
    %p34 = por %p32, %p33
    %p35 = scmp.ne.s32.totalorder %s24, %s25
    %p36 = scmp.eq.s32.totalorder %s16, 0
    %p37 = por %p35, %p36
    %p38 = scmp.ne.s32.totalorder %s24, %s25
    %p39 = scmp.eq.s32.totalorder %s17, 1
    %p40 = por %p38, %p39
    %p42 = scmp.ne.s32.totalorder %s25, %s41
    %p43 = scmp.eq.s32.totalorder %s17, 0
    %p44 = por %p42, %p43
    %s46 = sadd.s32 %s45, 1
    %p49 = scmp.eq.s32.totalorder %s11, 1
    %p50 = scmp.ne.s32.totalorder %s45, %s47
    %p51 = scmp.eq.s32.totalorder %s11, 0
    %p52 = por %p50, %p51
    %p53 = scmp.ne.s32.totalorder %s45, %s47
    %p54 = scmp.eq.s32.totalorder %s16, 1
    %p55 = por %p53, %p54
    %p56 = scmp.ne.s32.totalorder %s47, %s48
    %p57 = scmp.eq.s32.totalorder %s16, 0
    %p58 = por %p56, %p57
    %p59 = scmp.ne.s32.totalorder %s47, %s48
    %p60 = scmp.eq.s32.totalorder %s17, 1
    %p61 = por %p59, %p60
    %p63 = scmp.ne.s32.totalorder %s48, %s62
    %p64 = scmp.eq.s32.totalorder %s17, 0
    %p65 = por %p63, %p64
    %s67 = sadd.s32 %s66, 1
    %p70 = scmp.eq.s32.totalorder %s11, 1
    %p71 = scmp.ne.s32.totalorder %s66, %s68
    %p72 = scmp.eq.s32.totalorder %s11, 0
    %p73 = por %p71, %p72
    %p74 = scmp.ne.s32.totalorder %s66, %s68
    %p75 = scmp.eq.s32.totalorder %s16, 1
    %p76 = por %p74, %p75
    %p77 = scmp.ne.s32.totalorder %s68, %s69
    %p78 = scmp.eq.s32.totalorder %s16, 0
    %p79 = por %p77, %p78
    %p80 = scmp.ne.s32.totalorder %s68, %s69
    %p81 = scmp.eq.s32.totalorder %s17, 1
    %p82 = por %p80, %p81
    %p84 = scmp.ne.s32.totalorder %s69, %s83
    %p85 = scmp.eq.s32.totalorder %s17, 0
    %p86 = por %p84, %p85
    %s88 = sadd.s32 %s87, 1
    %p91 = scmp.eq.s32.totalorder %s11, 1
    %p92 = scmp.ne.s32.totalorder %s87, %s89
    %p93 = scmp.eq.s32.totalorder %s11, 0
    %p94 = por %p92, %p93
    %p95 = scmp.ne.s32.totalorder %s87, %s89
    %p96 = scmp.eq.s32.totalorder %s16, 1
    %p97 = por %p95, %p96
    %p98 = scmp.ne.s32.totalorder %s89, %s90
    %p99 = scmp.eq.s32.totalorder %s16, 0
    %p100 = por %p98, %p99
    %p101 = scmp.ne.s32.totalorder %s89, %s90
    %p102 = scmp.eq.s32.totalorder %s17, 1
    %p103 = por %p101, %p102
    %p105 = scmp.ne.s32.totalorder %s90, %s104
    %p106 = scmp.eq.s32.totalorder %s17, 0
    %p107 = por %p105, %p106
    %s109 = sadd.s32 %s108, 1
    %p112 = scmp.eq.s32.totalorder %s11, 1
    %p113 = scmp.ne.s32.totalorder %s108, %s110
    %p114 = scmp.eq.s32.totalorder %s11, 0
    %p115 = por %p113, %p114
    %p116 = scmp.ne.s32.totalorder %s108, %s110
    %p117 = scmp.eq.s32.totalorder %s16, 1
    %p118 = por %p116, %p117
    %p119 = scmp.ne.s32.totalorder %s110, %s111
    %p120 = scmp.eq.s32.totalorder %s16, 0
    %p121 = por %p119, %p120
    %p122 = scmp.ne.s32.totalorder %s110, %s111
    %p123 = scmp.eq.s32.totalorder %s17, 1
    %p124 = por %p122, %p123
    %p126 = scmp.ne.s32.totalorder %s111, %s125
    %p127 = scmp.eq.s32.totalorder %s17, 0
    %p128 = por %p126, %p127
    %s129 = ssub.s32 %s11, %s18
    %p130 = scmp.eq.s32.totalorder %s129, 0
    %s132 = sadd.s32 %s131, 1
    %s133 = scalar_select %p130, %s131, %s132
    %p136 = pneg %p130
    %p137 = scmp.eq.s32.totalorder %s11, 1
    %p138 = por %p136, %p137
    %p139 = scmp.ne.s32.totalorder %s131, %s134
    %p140 = scmp.eq.s32.totalorder %s11, 0
    %p141 = por %p139, %p140
    %p142 = scmp.ne.s32.totalorder %s131, %s134
    %p143 = scmp.eq.s32.totalorder %s16, 1
    %p144 = por %p142, %p143
    %p145 = scmp.ne.s32.totalorder %s134, %s135
    %p146 = scmp.eq.s32.totalorder %s16, 0
    %p147 = por %p145, %p146
    %p148 = scmp.ne.s32.totalorder %s134, %s135
    %p149 = scmp.eq.s32.totalorder %s17, 1
    %p150 = por %p148, %p149
    %p152 = scmp.ne.s32.totalorder %s135, %s151
    %p153 = scmp.eq.s32.totalorder %s17, 0
    %p154 = por %p152, %p153
    %p155 = scmp.le.s32.totalorder 1, %s11
    %p156 = scmp.lt.s32.totalorder %s11, 3
    %p157 = pnand %p155, %p156
    %p158 = pneg %p157
    // Predicated region
    $region9: #{decoder_forward.7} parent=5 // pred_check
      _
    $region10: #{decoder_forward.7} parent=5 // pred_check_branch
      %160 = sbr.rel (%p157) target = $region12
    $region11: #{decoder_forward.7} parent=5 // pred_region
      %s161 = ssub.s32 %s11, 1
      // Predicated region
      $region13: #{decoder_forward.7} parent=11 // pred_check
        %p162 = pneg %p58
      $region14: #{decoder_forward.7} parent=11 // pred_check_branch
        %164 = sbr.rel (%p162) target = $region16
      $region15: #{decoder_forward.7} parent=11 // pred_region
        _
      $region16: #{decoder_forward.7} parent=11 // pred_fallthru
        _
      // Predicated region
      $region17: #{decoder_forward.7} parent=11 // pred_check
        %p165 = pneg %p79
      $region18: #{decoder_forward.7} parent=11 // pred_check_branch
        %167 = sbr.rel (%p165) target = $region20
      $region19: #{decoder_forward.7} parent=11 // pred_region
        _
      $region20: #{decoder_forward.7} parent=11 // pred_fallthru
        _
      // Predicated region
      $region21: #{decoder_forward.7} parent=11 // pred_check
        %p168 = pneg %p100
      $region22: #{decoder_forward.7} parent=11 // pred_check_branch
        %170 = sbr.rel (%p168) target = $region24
      $region23: #{decoder_forward.7} parent=11 // pred_region
        _
      $region24: #{decoder_forward.7} parent=11 // pred_fallthru
        _
      // Predicated region
      $region25: #{decoder_forward.7} parent=11 // pred_check
        %p171 = pneg %p121
      $region26: #{decoder_forward.7} parent=11 // pred_check_branch
        %173 = sbr.rel (%p171) target = $region28
      $region27: #{decoder_forward.7} parent=11 // pred_region
        _
      $region28: #{decoder_forward.7} parent=11 // pred_fallthru
        _
    $region12: #{decoder_forward.7} parent=5 // pred_fallthru
      _
    %p174 = scmp.lt.s32.totalorder %s11, 2
    // Predicated region
    $region29: #{decoder_forward.7} parent=5 // pred_check
      %p175 = pneg %p174
    $region30: #{decoder_forward.7} parent=5 // pred_check_branch
      %177 = sbr.rel (%p175) target = $region32
    $region31: #{decoder_forward.7} parent=5 // pred_region
      // Predicated region
      $region33: #{decoder_forward.7} parent=31 // pred_check
        %p178 = pneg %p31
      $region34: #{decoder_forward.7} parent=31 // pred_check_branch
        %180 = sbr.rel (%p178) target = $region36
      $region35: #{decoder_forward.7} parent=31 // pred_region
        %p181 = scmp.lt.s32.totalorder %s11, 1
        %s182 = scalar_select %p181, %s11, 1
        %s183 = smul.addr %s182, 6
        %s184 = smul.addr %s183, 8
        %s185 = scalar_lea.vmem %s0, %s184
      $region36: #{decoder_forward.7} parent=31 // pred_fallthru
        _
    $region32: #{decoder_forward.7} parent=5 // pred_fallthru
      _
    %p186 = scmp.le.s32.totalorder 1, %s11
    %p187 = scmp.lt.s32.totalorder %s11, 3
    %p188 = pnand %p186, %p187
    %p189 = pneg %p188
    // Predicated region
    $region37: #{decoder_forward.7} parent=5 // pred_check
      _
    $region38: #{decoder_forward.7} parent=5 // pred_check_branch
      %191 = sbr.rel (%p188) target = $region40
    $region39: #{decoder_forward.7} parent=5 // pred_region
      %s192 = ssub.s32 %s11, 1
      %p193 = scmp.lt.s32.totalorder %s16, 1
      %s194 = scalar_select %p193, %s16, 1
      %s195 = smul.addr %s194, 6
      %s196 = smul.addr %s195, 8
      %s197 = scalar_lea.vmem %s0, %s196
      %p198 = pneg %p37
      %p199 = pneg %p34
      %p200 = pneg %p58
      %p201 = pneg %p55
      %p202 = pneg %p79
      %p203 = pneg %p76
      %p204 = pneg %p100
      %p205 = pneg %p97
      %p206 = pneg %p121
      %p207 = pneg %p118
      %p208 = pneg %p147
      %p209 = pneg %p144
      %p210 = scmp.lt.s32.totalorder %s16, 1
      %s211 = scalar_select %p210, %s16, 1
      %s212 = smul.addr %s211, 6
      %s213 = smul.addr %s212, 8
      %s214 = scalar_lea.vmem %s5, %s213
      %p215 = scmp.lt.s32.totalorder %s16, 1
      %s216 = scalar_select %p215, %s16, 1
      %s217 = smul.addr %s216, 6
      %s218 = smul.addr %s217, 8
      %s219 = scalar_lea.vmem %s0, %s218
      %p220 = scmp.lt.s32.totalorder %s16, 1
      %s221 = scalar_select %p220, %s16, 1
      %s222 = smul.addr %s221, 6
      %s223 = smul.addr %s222, 8
      %s224 = scalar_lea.vmem %s5, %s223
      %v225 = vld [vmem:[%s219] sm:$0xff]
      %v226 = vld [vmem:[%s219 + $0x8] sm:$0xff]
      %v227 = vld [vmem:[%s219 + $0x10] sm:$0xff]
      %v228 = vld [vmem:[%s219 + $0x18] sm:$0xff]
      %v229 = vld [vmem:[%s219 + $0x20] sm:$0xff]
      %v230 = vld [vmem:[%s219 + $0x28] sm:$0xff]
      %231 = vst [vmem:[#allocation2] sm:$0xff] %v225
      %232 = vst [vmem:[#allocation2 + $0x8] sm:$0xff] %v226
      %vm233 = vcmask 261120
      %234 = vst.msk [vmem:[#allocation2 + $0x10] sm:$0xff] %vm233, %v227
      %235 = vst [vmem:[#allocation2 + $0x18] sm:$0xff] %v228
      %236 = vst [vmem:[#allocation2 + $0x20] sm:$0xff] %v229
      %237 = vst.msk [vmem:[#allocation2 + $0x28] sm:$0xff] %vm233, %v230
      %v238 = vld [vmem:[%s219] sm:$0xff]
      %v239 = vld [vmem:[%s219 + $0x8] sm:$0xff]
      %v240 = vld [vmem:[%s219 + $0x10] sm:$0xff]
      %v241 = vld [vmem:[%s219 + $0x18] sm:$0xff]
      %v242 = vld [vmem:[%s219 + $0x20] sm:$0xff]
      %v243 = vld [vmem:[%s219 + $0x28] sm:$0xff]
      %250 = vrot.lane.b32.xlu0 %v238, 127
      %v251 = vpop.permute.xlu0 %250
      %252 = vrot.lane.b32.xlu0 %v239, 127
      %v253 = vpop.permute.xlu0 %252
      %254 = vrot.lane.b32.xlu0 %v240, 127
      %v255 = vpop.permute.xlu0 %254
      %256 = vrot.lane.b32.xlu0 %v241, 127
      %v257 = vpop.permute.xlu0 %256
      %258 = vrot.lane.b32.xlu0 %v242, 127
      %v259 = vpop.permute.xlu0 %258
      %260 = vrot.lane.b32.xlu0 %v243, 127
      %v261 = vpop.permute.xlu0 %260
      %vm262 = vcmask 1039360
      %v263 = vsel %vm262, %v251, %v253
      %v264 = vsel %vm262, %v253, %v255
      %v265 = vsel %vm262, %v257, %v259
      %v266 = vsel %vm262, %v259, %v261
      %273 = vst [vmem:[#allocation2 + $0x30] sm:$0xff] %v263
      %274 = vst [vmem:[#allocation2 + $0x38] sm:$0xff] %v264
      %275 = vst.msk [vmem:[#allocation2 + $0x40] sm:$0xff] %vm233, %v255
      %276 = vst [vmem:[#allocation2 + $0x48] sm:$0xff] %v265
      %277 = vst [vmem:[#allocation2 + $0x50] sm:$0xff] %v266
      %278 = vst.msk [vmem:[#allocation2 + $0x58] sm:$0xff] %vm233, %v261
      %v279 = vld [vmem:[%s219] sm:$0xff]
      %v280 = vld [vmem:[%s219 + $0x8] sm:$0xff]
      %v281 = vld [vmem:[%s219 + $0x10] sm:$0xff]
      %v282 = vld [vmem:[%s219 + $0x18] sm:$0xff]
      %v283 = vld [vmem:[%s219 + $0x20] sm:$0xff]
      %v284 = vld [vmem:[%s219 + $0x28] sm:$0xff]
      %291 = vrot.lane.b32.xlu0 %v279, 126
      %v292 = vpop.permute.xlu0 %291
      %293 = vrot.lane.b32.xlu0 %v280, 126
      %v294 = vpop.permute.xlu0 %293
      %295 = vrot.lane.b32.xlu0 %v281, 126
      %v296 = vpop.permute.xlu0 %295
      %297 = vrot.lane.b32.xlu0 %v282, 126
      %v298 = vpop.permute.xlu0 %297
      %299 = vrot.lane.b32.xlu0 %v283, 126
      %v300 = vpop.permute.xlu0 %299
      %301 = vrot.lane.b32.xlu0 %v284, 126
      %v302 = vpop.permute.xlu0 %301
      %vm303 = vcmask 1031168
      %v304 = vsel %vm303, %v292, %v294
      %v305 = vsel %vm303, %v294, %v296
      %v306 = vsel %vm303, %v298, %v300
      %v307 = vsel %vm303, %v300, %v302
      %314 = vst [vmem:[#allocation2 + $0x60] sm:$0xff] %v304
      %315 = vst [vmem:[#allocation2 + $0x68] sm:$0xff] %v305
      %316 = vst.msk [vmem:[#allocation2 + $0x70] sm:$0xff] %vm233, %v296
      %317 = vst [vmem:[#allocation2 + $0x78] sm:$0xff] %v306
      %318 = vst [vmem:[#allocation2 + $0x80] sm:$0xff] %v307
      %319 = vst.msk [vmem:[#allocation2 + $0x88] sm:$0xff] %vm233, %v302
      %v320 = vld [vmem:[%s219] sm:$0xff]
      %v321 = vld [vmem:[%s219 + $0x8] sm:$0xff]
      %v322 = vld [vmem:[%s219 + $0x10] sm:$0xff]
      %v323 = vld [vmem:[%s219 + $0x18] sm:$0xff]
      %v324 = vld [vmem:[%s219 + $0x20] sm:$0xff]
      %v325 = vld [vmem:[%s219 + $0x28] sm:$0xff]
      %332 = vrot.lane.b32.xlu0 %v320, 110
      %v333 = vpop.permute.xlu0 %332
      %334 = vrot.lane.b32.xlu0 %v321, 110
      %v335 = vpop.permute.xlu0 %334
      %336 = vrot.lane.b32.xlu0 %v322, 110
      %v337 = vpop.permute.xlu0 %336
      %338 = vrot.lane.b32.xlu0 %v323, 110
      %v339 = vpop.permute.xlu0 %338
      %340 = vrot.lane.b32.xlu0 %v324, 110
      %v341 = vpop.permute.xlu0 %340
      %342 = vrot.lane.b32.xlu0 %v325, 110
      %v343 = vpop.permute.xlu0 %342
      %vm344 = vcmask 900096
      %v345 = vsel %vm344, %v333, %v335
      %v346 = vsel %vm344, %v335, %v337
      %v347 = vsel %vm344, %v339, %v341
      %v348 = vsel %vm344, %v341, %v343
      %355 = vst [vmem:[#allocation2 + $0x90] sm:$0xff] %v345
      %356 = vst [vmem:[#allocation2 + $0x98] sm:$0xff] %v346
      %357 = vst.msk [vmem:[#allocation2 + $0xa0] sm:$0xff] %vm233, %v337
      %358 = vst [vmem:[#allocation2 + $0xa8] sm:$0xff] %v347
      %359 = vst [vmem:[#allocation2 + $0xb0] sm:$0xff] %v348
      %360 = vst.msk [vmem:[#allocation2 + $0xb8] sm:$0xff] %vm233, %v343
      %v361 = vld [vmem:[%s219] sm:$0xff]
      %v362 = vld [vmem:[%s219 + $0x8] sm:$0xff]
      %v363 = vld [vmem:[%s219 + $0x10] sm:$0xff]
      %v364 = vld [vmem:[%s219 + $0x18] sm:$0xff]
      %v365 = vld [vmem:[%s219 + $0x20] sm:$0xff]
      %v366 = vld [vmem:[%s219 + $0x28] sm:$0xff]
      %373 = vrot.lane.b32.xlu0 %v361, 109
      %v374 = vpop.permute.xlu0 %373
      %375 = vrot.lane.b32.xlu0 %v362, 109
      %v376 = vpop.permute.xlu0 %375
      %377 = vrot.lane.b32.xlu0 %v363, 109
      %v378 = vpop.permute.xlu0 %377
      %379 = vrot.lane.b32.xlu0 %v364, 109
      %v380 = vpop.permute.xlu0 %379
      %381 = vrot.lane.b32.xlu0 %v365, 109
      %v382 = vpop.permute.xlu0 %381
      %383 = vrot.lane.b32.xlu0 %v366, 109
      %v384 = vpop.permute.xlu0 %383
      %vm385 = vcmask 891904
      %v386 = vsel %vm385, %v374, %v376
      %v387 = vsel %vm385, %v376, %v378
      %v388 = vsel %vm385, %v380, %v382
      %v389 = vsel %vm385, %v382, %v384
      %396 = vst [vmem:[#allocation2 + $0xc0] sm:$0xff] %v386
      %397 = vst [vmem:[#allocation2 + $0xc8] sm:$0xff] %v387
      %398 = vst.msk [vmem:[#allocation2 + $0xd0] sm:$0xff] %vm233, %v378
      %399 = vst [vmem:[#allocation2 + $0xd8] sm:$0xff] %v388
      %400 = vst [vmem:[#allocation2 + $0xe0] sm:$0xff] %v389
      %401 = vst.msk [vmem:[#allocation2 + $0xe8] sm:$0xff] %vm233, %v384
      %v402 = vld [vmem:[%s219] sm:$0xff]
      %v403 = vld [vmem:[%s219 + $0x8] sm:$0xff]
      %v404 = vld [vmem:[%s219 + $0x10] sm:$0xff]
      %v405 = vld [vmem:[%s219 + $0x18] sm:$0xff]
      %v406 = vld [vmem:[%s219 + $0x20] sm:$0xff]
      %v407 = vld [vmem:[%s219 + $0x28] sm:$0xff]
      %414 = vrot.lane.b32.xlu0 %v402, 108
      %v415 = vpop.permute.xlu0 %414
      %416 = vrot.lane.b32.xlu0 %v403, 108
      %v417 = vpop.permute.xlu0 %416
      %418 = vrot.lane.b32.xlu0 %v404, 108
      %v419 = vpop.permute.xlu0 %418
      %420 = vrot.lane.b32.xlu0 %v405, 108
      %v421 = vpop.permute.xlu0 %420
      %422 = vrot.lane.b32.xlu0 %v406, 108
      %v423 = vpop.permute.xlu0 %422
      %424 = vrot.lane.b32.xlu0 %v407, 108
      %v425 = vpop.permute.xlu0 %424
      %vm426 = vcmask 883712
      %v427 = vsel %vm426, %v415, %v417
      %v428 = vsel %vm426, %v417, %v419
      %v429 = vsel %vm426, %v421, %v423
      %v430 = vsel %vm426, %v423, %v425
      %437 = vst [vmem:[#allocation2 + $0xf0] sm:$0xff] %v427
      %438 = vst [vmem:[#allocation2 + $0xf8] sm:$0xff] %v428
      %439 = vst.msk [vmem:[#allocation2 + $0x100] sm:$0xff] %vm233, %v419
      %440 = vst [vmem:[#allocation2 + $0x108] sm:$0xff] %v429
      %441 = vst [vmem:[#allocation2 + $0x110] sm:$0xff] %v430
      %442 = vst.msk [vmem:[#allocation2 + $0x118] sm:$0xff] %vm233, %v425
      %v443 = vld [vmem:[%s219] sm:$0xff]
      %v444 = vld [vmem:[%s219 + $0x8] sm:$0xff]
      %v445 = vld [vmem:[%s219 + $0x10] sm:$0xff]
      %v446 = vld [vmem:[%s219 + $0x18] sm:$0xff]
      %v447 = vld [vmem:[%s219 + $0x20] sm:$0xff]
      %v448 = vld [vmem:[%s219 + $0x28] sm:$0xff]
      %455 = vrot.lane.b32.xlu0 %v443, 92
      %v456 = vpop.permute.xlu0 %455
      %457 = vrot.lane.b32.xlu0 %v444, 92
      %v458 = vpop.permute.xlu0 %457
      %459 = vrot.lane.b32.xlu0 %v445, 92
      %v460 = vpop.permute.xlu0 %459
      %461 = vrot.lane.b32.xlu0 %v446, 92
      %v462 = vpop.permute.xlu0 %461
      %463 = vrot.lane.b32.xlu0 %v447, 92
      %v464 = vpop.permute.xlu0 %463
      %465 = vrot.lane.b32.xlu0 %v448, 92
      %v466 = vpop.permute.xlu0 %465
      %vm467 = vcmask 752640
      %v468 = vsel %vm467, %v456, %v458
      %v469 = vsel %vm467, %v458, %v460
      %v470 = vsel %vm467, %v462, %v464
      %v471 = vsel %vm467, %v464, %v466
      %478 = vst [vmem:[#allocation2 + $0x120] sm:$0xff] %v468
      %479 = vst [vmem:[#allocation2 + $0x128] sm:$0xff] %v469
      %480 = vst.msk [vmem:[#allocation2 + $0x130] sm:$0xff] %vm233, %v460
      %481 = vst [vmem:[#allocation2 + $0x138] sm:$0xff] %v470
      %482 = vst [vmem:[#allocation2 + $0x140] sm:$0xff] %v471
      %483 = vst.msk [vmem:[#allocation2 + $0x148] sm:$0xff] %vm233, %v466
      %v484 = vld [vmem:[%s219] sm:$0xff]
      %v485 = vld [vmem:[%s219 + $0x8] sm:$0xff]
      %v486 = vld [vmem:[%s219 + $0x10] sm:$0xff]
      %v487 = vld [vmem:[%s219 + $0x18] sm:$0xff]
      %v488 = vld [vmem:[%s219 + $0x20] sm:$0xff]
      %v489 = vld [vmem:[%s219 + $0x28] sm:$0xff]
      %496 = vrot.lane.b32.xlu0 %v484, 91
      %v497 = vpop.permute.xlu0 %496
      %498 = vrot.lane.b32.xlu0 %v485, 91
      %v499 = vpop.permute.xlu0 %498
      %500 = vrot.lane.b32.xlu0 %v486, 91
      %v501 = vpop.permute.xlu0 %500
      %502 = vrot.lane.b32.xlu0 %v487, 91
      %v503 = vpop.permute.xlu0 %502
      %504 = vrot.lane.b32.xlu0 %v488, 91
      %v505 = vpop.permute.xlu0 %504
      %506 = vrot.lane.b32.xlu0 %v489, 91
      %v507 = vpop.permute.xlu0 %506
      %vm508 = vcmask 744448
      %v509 = vsel %vm508, %v497, %v499
      %v510 = vsel %vm508, %v499, %v501
      %v511 = vsel %vm508, %v503, %v505
      %v512 = vsel %vm508, %v505, %v507
      %519 = vst [vmem:[#allocation2 + $0x150] sm:$0xff] %v509
      %520 = vst [vmem:[#allocation2 + $0x158] sm:$0xff] %v510
      %521 = vst.msk [vmem:[#allocation2 + $0x160] sm:$0xff] %vm233, %v501
      %522 = vst [vmem:[#allocation2 + $0x168] sm:$0xff] %v511
      %523 = vst [vmem:[#allocation2 + $0x170] sm:$0xff] %v512
      %524 = vst.msk [vmem:[#allocation2 + $0x178] sm:$0xff] %vm233, %v507
      %v525 = vld [vmem:[%s219] sm:$0xff]
      %v526 = vld [vmem:[%s219 + $0x8] sm:$0xff]
      %v527 = vld [vmem:[%s219 + $0x10] sm:$0xff]
      %v528 = vld [vmem:[%s219 + $0x18] sm:$0xff]
      %v529 = vld [vmem:[%s219 + $0x20] sm:$0xff]
      %v530 = vld [vmem:[%s219 + $0x28] sm:$0xff]
      %537 = vrot.lane.b32.xlu0 %v525, 90
      %v538 = vpop.permute.xlu0 %537
      %539 = vrot.lane.b32.xlu0 %v526, 90
      %v540 = vpop.permute.xlu0 %539
      %541 = vrot.lane.b32.xlu0 %v527, 90
      %v542 = vpop.permute.xlu0 %541
      %543 = vrot.lane.b32.xlu0 %v528, 90
      %v544 = vpop.permute.xlu0 %543
      %545 = vrot.lane.b32.xlu0 %v529, 90
      %v546 = vpop.permute.xlu0 %545
      %547 = vrot.lane.b32.xlu0 %v530, 90
      %v548 = vpop.permute.xlu0 %547
      %vm549 = vcmask 736256
      %v550 = vsel %vm549, %v538, %v540
      %v551 = vsel %vm549, %v540, %v542
      %v552 = vsel %vm549, %v544, %v546
      %v553 = vsel %vm549, %v546, %v548
      %560 = vst [vmem:[#allocation2 + $0x180] sm:$0xff] %v550
      %561 = vst [vmem:[#allocation2 + $0x188] sm:$0xff] %v551
      %562 = vst.msk [vmem:[#allocation2 + $0x190] sm:$0xff] %vm233, %v542
      %563 = vst [vmem:[#allocation2 + $0x198] sm:$0xff] %v552
      %564 = vst [vmem:[#allocation2 + $0x1a0] sm:$0xff] %v553
      %565 = vst.msk [vmem:[#allocation2 + $0x1a8] sm:$0xff] %vm233, %v548
      %v566 = vld [vmem:[%s1] sm:$0xff]
      %v567 = vld [vmem:[%s1 + $0x8] sm:$0xff]
      %v568 = vld [vmem:[%s1 + $0x10] sm:$0xff]
      %v569 = vld [vmem:[%s1 + $0x18] sm:$0xff]
      %v570 = vld [vmem:[#allocation2] sm:$0xff]
      %v571 = vld [vmem:[#allocation2 + $0x8] sm:$0xff]
      %v572 = vld [vmem:[#allocation2 + $0x10] sm:$0xff]
      %v573 = vld [vmem:[#allocation2 + $0x18] sm:$0xff]
      %v574 = vld [vmem:[#allocation2 + $0x20] sm:$0xff]
      %v575 = vld [vmem:[#allocation2 + $0x28] sm:$0xff]
      %v576 = vld [vmem:[#allocation2 + $0x30] sm:$0xff]
      %v577 = vld [vmem:[#allocation2 + $0x38] sm:$0xff]
      %v578 = vld [vmem:[#allocation2 + $0x40] sm:$0xff]
      %v579 = vld [vmem:[#allocation2 + $0x48] sm:$0xff]
      %v580 = vld [vmem:[#allocation2 + $0x50] sm:$0xff]
      %v581 = vld [vmem:[#allocation2 + $0x58] sm:$0xff]
      %v582 = vld [vmem:[#allocation2 + $0x60] sm:$0xff]
      %v583 = vld [vmem:[#allocation2 + $0x68] sm:$0xff]
      %v584 = vld [vmem:[#allocation2 + $0x70] sm:$0xff]
      %v585 = vld [vmem:[#allocation2 + $0x78] sm:$0xff]
      %v586 = vld [vmem:[#allocation2 + $0x80] sm:$0xff]
      %v587 = vld [vmem:[#allocation2 + $0x88] sm:$0xff]
      %v588 = vld [vmem:[#allocation2 + $0x90] sm:$0xff]
      %v589 = vld [vmem:[#allocation2 + $0x98] sm:$0xff]
      %v590 = vld [vmem:[#allocation2 + $0xa0] sm:$0xff]
      %v591 = vld [vmem:[#allocation2 + $0xa8] sm:$0xff]
      %v592 = vld [vmem:[#allocation2 + $0xb0] sm:$0xff]
      %v593 = vld [vmem:[#allocation2 + $0xb8] sm:$0xff]
      %v594 = vld [vmem:[#allocation2 + $0xc0] sm:$0xff]
      %v595 = vld [vmem:[#allocation2 + $0xc8] sm:$0xff]
      %v596 = vld [vmem:[#allocation2 + $0xd0] sm:$0xff]
      %v597 = vld [vmem:[#allocation2 + $0xd8] sm:$0xff]
      %v598 = vld [vmem:[#allocation2 + $0xe0] sm:$0xff]
      %v599 = vld [vmem:[#allocation2 + $0xe8] sm:$0xff]
      %v600 = vld [vmem:[#allocation2 + $0xf0] sm:$0xff]
      %v601 = vld [vmem:[#allocation2 + $0xf8] sm:$0xff]
      %v602 = vld [vmem:[#allocation2 + $0x100] sm:$0xff]
      %v603 = vld [vmem:[#allocation2 + $0x108] sm:$0xff]
      %v604 = vld [vmem:[#allocation2 + $0x110] sm:$0xff]
      %v605 = vld [vmem:[#allocation2 + $0x118] sm:$0xff]
      %v606 = vld [vmem:[#allocation2 + $0x120] sm:$0xff]
      %v607 = vld [vmem:[#allocation2 + $0x128] sm:$0xff]
      %v608 = vld [vmem:[#allocation2 + $0x130] sm:$0xff]
      %v609 = vld [vmem:[#allocation2 + $0x138] sm:$0xff]
      %v610 = vld [vmem:[#allocation2 + $0x140] sm:$0xff]
      %v611 = vld [vmem:[#allocation2 + $0x148] sm:$0xff]
      %v612 = vld [vmem:[#allocation2 + $0x150] sm:$0xff]
      %v613 = vld [vmem:[#allocation2 + $0x158] sm:$0xff]
      %v614 = vld [vmem:[#allocation2 + $0x160] sm:$0xff]
      %v615 = vld [vmem:[#allocation2 + $0x168] sm:$0xff]
      %v616 = vld [vmem:[#allocation2 + $0x170] sm:$0xff]
      %v617 = vld [vmem:[#allocation2 + $0x178] sm:$0xff]
      %v618 = vld [vmem:[#allocation2 + $0x180] sm:$0xff]
      %v619 = vld [vmem:[#allocation2 + $0x188] sm:$0xff]
      %v620 = vld [vmem:[#allocation2 + $0x190] sm:$0xff]
      %v621 = vld [vmem:[#allocation2 + $0x198] sm:$0xff]
      %v622 = vld [vmem:[#allocation2 + $0x1a0] sm:$0xff]
      %v623 = vld [vmem:[#allocation2 + $0x1a8] sm:$0xff]
      %v624 = vld [vmem:[%s2] sm:$0xff]
      %v625 = vld [vmem:[%s2 + $0x8] sm:$0xff]
      %627 = vset.pattern.permute.xlu0 0
      %628 = vperm.xlu0 %627, %v624
      %v629 = vpop.permute.xlu0 %628
      %632 = vset.pattern.permute.xlu0 0
      %633 = vperm.xlu0 %632, %v625
      %v634 = vpop.permute.xlu0 %633
      %vm636 = vcmask 130048
      %v638 = vsel %vm636, %v567, 0
      %v641 = vsel %vm636, %v569, 0
      %643 = vmatpush.msra.mxu0 %v615
      %644 = vmatpush.msra.mxu0 %v612
      %645 = vmatpush.msra.mxu0 %v609
      %646 = vmatpush.msra.mxu0 %v606
      %647 = vmatpush.msra.mxu0 %v603
      %648 = vmatpush.msra.mxu0 %v600
      %649 = vmatpush.msra.mxu0 %v597
      %650 = vmatpush.msra.mxu0 %v594
      %651 = vmatpush.msra.mxu0 %v591
      %652 = vmatpush.msra.mxu0 %v588
      %653 = vmatpush.msra.mxu0 %v585
      %654 = vmatpush.msra.mxu0 %v582
      %655 = vmatpush.msra.mxu0 %v579
      %656 = vmatpush.msra.mxu0 %v576
      %657 = vmatpush.msra.mxu0 %v573
      %658 = vmatpush.msra.mxu0 %v570
      %659 = vmatmul.f32.gmra.mxu0 %v566
      %v660 = vpop.f32.mrf.mxu0
      %v661 = vadd.f32 %v629, %v660
      %662 = vmatmul.f32.gmra.mxu0 %v568
      %v663 = vpop.f32.mrf.mxu0
      %v664 = vadd.f32 %v634, %v663
      %665 = vdwg.mxu0
      %666 = vmatpush.msra.mxu0 0.0
      %667 = vmatpush.msra.mxu0 0.0
      %668 = vmatpush.msra.mxu0 0.0
      %669 = vmatpush.msra.mxu0 0.0
      %670 = vmatpush.msra.mxu0 0.0
      %671 = vmatpush.msra.mxu0 0.0
      %672 = vmatpush.msra.mxu0 0.0
      %673 = vmatpush.msra.mxu0 0.0
      %674 = vmatpush.msra.mxu0 0.0
      %675 = vmatpush.msra.mxu0 0.0
      %676 = vmatpush.msra.mxu0 0.0
      %677 = vmatpush.msra.mxu0 0.0
      %678 = vmatpush.msra.mxu0 0.0
      %679 = vmatpush.msra.mxu0 0.0
      %680 = vmatpush.msra.mxu0 %v621
      %681 = vmatpush.msra.mxu0 %v618
      %682 = vmatmul.f32.gmra.mxu0 %v638
      %v683 = vpop.f32.mrf.mxu0
      %v684 = vadd.f32 %v661, %v683
      %685 = vmatmul.f32.gmra.mxu0 %v641
      %v686 = vpop.f32.mrf.mxu0
      %v687 = vadd.f32 %v664, %v686
      %688 = vdwg.mxu0
      %689 = vmatpush.msra.mxu0 %v616
      %690 = vmatpush.msra.mxu0 %v613
      %691 = vmatpush.msra.mxu0 %v610
      %692 = vmatpush.msra.mxu0 %v607
      %693 = vmatpush.msra.mxu0 %v604
      %694 = vmatpush.msra.mxu0 %v601
      %695 = vmatpush.msra.mxu0 %v598
      %696 = vmatpush.msra.mxu0 %v595
      %697 = vmatpush.msra.mxu0 %v592
      %698 = vmatpush.msra.mxu0 %v589
      %699 = vmatpush.msra.mxu0 %v586
      %700 = vmatpush.msra.mxu0 %v583
      %701 = vmatpush.msra.mxu0 %v580
      %702 = vmatpush.msra.mxu0 %v577
      %703 = vmatpush.msra.mxu0 %v574
      %704 = vmatpush.msra.mxu0 %v571
      %705 = vmatmul.f32.gmra.mxu0 %v566
      %v706 = vpop.f32.mrf.mxu0
      %v707 = vadd.f32 %v629, %v706
      %708 = vmatmul.f32.gmra.mxu0 %v568
      %v709 = vpop.f32.mrf.mxu0
      %v710 = vadd.f32 %v634, %v709
      %711 = vdwg.mxu0
      %712 = vmatpush.msra.mxu0 0.0
      %713 = vmatpush.msra.mxu0 0.0
      %714 = vmatpush.msra.mxu0 0.0
      %715 = vmatpush.msra.mxu0 0.0
      %716 = vmatpush.msra.mxu0 0.0
      %717 = vmatpush.msra.mxu0 0.0
      %718 = vmatpush.msra.mxu0 0.0
      %719 = vmatpush.msra.mxu0 0.0
      %720 = vmatpush.msra.mxu0 0.0
      %721 = vmatpush.msra.mxu0 0.0
      %722 = vmatpush.msra.mxu0 0.0
      %723 = vmatpush.msra.mxu0 0.0
      %724 = vmatpush.msra.mxu0 0.0
      %725 = vmatpush.msra.mxu0 0.0
      %726 = vmatpush.msra.mxu0 %v622
      %727 = vmatpush.msra.mxu0 %v619
      %728 = vmatmul.f32.gmra.mxu0 %v638
      %v729 = vpop.f32.mrf.mxu0
      %v730 = vadd.f32 %v707, %v729
      %731 = vmatmul.f32.gmra.mxu0 %v641
      %v732 = vpop.f32.mrf.mxu0
      %v733 = vadd.f32 %v710, %v732
      %734 = vdwg.mxu0
      %735 = vmatpush.msra.mxu0 %v617
      %736 = vmatpush.msra.mxu0 %v614
      %737 = vmatpush.msra.mxu0 %v611
      %738 = vmatpush.msra.mxu0 %v608
      %739 = vmatpush.msra.mxu0 %v605
      %740 = vmatpush.msra.mxu0 %v602
      %741 = vmatpush.msra.mxu0 %v599
      %742 = vmatpush.msra.mxu0 %v596
      %743 = vmatpush.msra.mxu0 %v593
      %744 = vmatpush.msra.mxu0 %v590
      %745 = vmatpush.msra.mxu0 %v587
      %746 = vmatpush.msra.mxu0 %v584
      %747 = vmatpush.msra.mxu0 %v581
      %748 = vmatpush.msra.mxu0 %v578
      %749 = vmatpush.msra.mxu0 %v575
      %750 = vmatpush.msra.mxu0 %v572
      %751 = vmatmul.f32.gmra.mxu0 %v566
      %v752 = vpop.f32.mrf.mxu0
      %v753 = vadd.f32 %v629, %v752
      %754 = vmatmul.f32.gmra.mxu0 %v568
      %v755 = vpop.f32.mrf.mxu0
      %v756 = vadd.f32 %v634, %v755
      %757 = vdwg.mxu0
      %758 = vmatpush.msra.mxu0 0.0
      %759 = vmatpush.msra.mxu0 0.0
      %760 = vmatpush.msra.mxu0 0.0
      %761 = vmatpush.msra.mxu0 0.0
      %762 = vmatpush.msra.mxu0 0.0
      %763 = vmatpush.msra.mxu0 0.0
      %764 = vmatpush.msra.mxu0 0.0
      %765 = vmatpush.msra.mxu0 0.0
      %766 = vmatpush.msra.mxu0 0.0
      %767 = vmatpush.msra.mxu0 0.0
      %768 = vmatpush.msra.mxu0 0.0
      %769 = vmatpush.msra.mxu0 0.0
      %770 = vmatpush.msra.mxu0 0.0
      %771 = vmatpush.msra.mxu0 0.0
      %772 = vmatpush.msra.mxu0 %v623
      %773 = vmatpush.msra.mxu0 %v620
      %774 = vmatmul.f32.gmra.mxu0 %v638
      %v775 = vpop.f32.mrf.mxu0
      %v776 = vadd.f32 %v753, %v775
      %777 = vmatmul.f32.gmra.mxu0 %v641
      %v778 = vpop.f32.mrf.mxu0
      %v779 = vadd.f32 %v756, %v778
      %780 = vdwg.mxu0
      %v781 = vld [vmem:[%s3] sm:$0xff]
      %v782 = vld [vmem:[%s3 + $0x8] sm:$0xff]
      %784 = vset.pattern.permute.xlu0 0
      %785 = vperm.xlu0 %784, %v781
      %v786 = vpop.permute.xlu0 %785
      %789 = vset.pattern.permute.xlu0 0
      %790 = vperm.xlu0 %789, %v782
      %v791 = vpop.permute.xlu0 %790
      %v793 = vmul.f32 %v684, %v786
      %v794 = vmul.f32 %v730, %v786
      %v795 = vmul.f32 %v776, %v786
      %v796 = vmul.f32 %v687, %v791
      %v797 = vmul.f32 %v733, %v791
      %v798 = vmul.f32 %v779, %v791
      %v799 = vld [vmem:[%s4] sm:$0xff]
      %v800 = vld [vmem:[%s4 + $0x8] sm:$0xff]
      %802 = vset.pattern.permute.xlu0 0
      %803 = vperm.xlu0 %802, %v799
      %v804 = vpop.permute.xlu0 %803
      %807 = vset.pattern.permute.xlu0 0
      %808 = vperm.xlu0 %807, %v800
      %v809 = vpop.permute.xlu0 %808
      %v811 = vadd.f32 %v793, %v804
      %v812 = vadd.f32 %v794, %v804
      %v813 = vadd.f32 %v795, %v804
      %v814 = vadd.f32 %v796, %v809
      %v815 = vadd.f32 %v797, %v809
      %v816 = vadd.f32 %v798, %v809
      %v817 = vmax.f32 %v811, 0.0
      %v818 = vmax.f32 %v812, 0.0
      %v819 = vmax.f32 %v813, 0.0
      %v820 = vmax.f32 %v814, 0.0
      %v821 = vmax.f32 %v815, 0.0
      %v822 = vmax.f32 %v816, 0.0
      %823 = vst [vmem:[%s224] sm:$0xff] %v817
      %824 = vst [vmem:[%s224 + $0x8] sm:$0xff] %v818
      %825 = vst.msk [vmem:[%s224 + $0x10] sm:$0xff] %vm233, %v819
      %826 = vst [vmem:[%s224 + $0x18] sm:$0xff] %v820
      %827 = vst [vmem:[%s224 + $0x20] sm:$0xff] %v821
      %828 = vst.msk [vmem:[%s224 + $0x28] sm:$0xff] %vm233, %v822
      %p829 = scmp.lt.s32.totalorder %s16, 1
      %s830 = scalar_select %p829, %s16, 1
      %s831 = smul.addr %s830, 6
      %s832 = smul.addr %s831, 8
      %s833 = scalar_lea.vmem %s5, %s832
      // Predicated region
      $region41: #{decoder_forward.7} parent=39 // pred_check
        %p834 = pneg %p144
      $region42: #{decoder_forward.7} parent=39 // pred_check_branch
        %836 = sbr.rel (%p834) target = $region44
      $region43: #{decoder_forward.7} parent=39 // pred_region
        _
      $region44: #{decoder_forward.7} parent=39 // pred_fallthru
        _
    $region40: #{decoder_forward.7} parent=5 // pred_fallthru
      _
    %p837 = scmp.le.s32.totalorder 2, %s11
    // Predicated region
    $region45: #{decoder_forward.7} parent=5 // pred_check
      %p838 = pneg %p837
    $region46: #{decoder_forward.7} parent=5 // pred_check_branch
      %840 = sbr.rel (%p838) target = $region48
    $region47: #{decoder_forward.7} parent=5 // pred_region
      %s841 = ssub.s32 %s11, 2
      // Predicated region
      $region49: #{decoder_forward.7} parent=47 // pred_check
        %p842 = pneg %p150
      $region50: #{decoder_forward.7} parent=47 // pred_check_branch
        %844 = sbr.rel (%p842) target = $region52
      $region51: #{decoder_forward.7} parent=47 // pred_region
        %p845 = scmp.lt.s32.totalorder %s17, 1
        %s846 = scalar_select %p845, %s17, 1
        %s847 = smul.addr %s846, 6
        %s848 = smul.addr %s847, 8
        %s849 = scalar_lea.vmem %s5, %s848
      $region52: #{decoder_forward.7} parent=47 // pred_fallthru
        _
    $region48: #{decoder_forward.7} parent=5 // pred_fallthru
      _
  $region6: #{decoder_forward.7} parent=0 // loop_footer
    %s15 = sadd.s32 1, %s11
  $region7: #{decoder_forward.7} parent=0 // loop_footer_branch
    %10 = sbr.rel target = $region3
  $region8: #{decoder_forward.7} parent=0 // loop_exit
    _

// kernel: decoder_forward.9
$region0: #{decoder_forward.9}
  #allocation0 [shape = 'u32[]', space=smem, size = 0x4, offset = 0x4, fixed_abs, tag = 'smem constant byte address 0x4 - core index']
  #allocation1 [shape = 'u32[72,128]{1,0:T(1,128)}', space=vmem, size = 0x9000, scoped, tag = 'internal scratch']
  %s0 = inlined_call_operand.vmem [shape: f32[2,16,256], index: 0, kind: input, shape index: {}]
  %s1 = inlined_call_operand.vmem [shape: f32[16,1], index: 1, kind: input, shape index: {}]
  %s2 = inlined_call_operand.vmem [shape: f32[16,1], index: 2, kind: input, shape index: {}]
  %s3 = inlined_call_operand.vmem [shape: f32[4,8,16], index: 3, kind: input, shape index: {}]
  %s4 = inlined_call_operand.vmem [shape: f32[8,1], index: 4, kind: input, shape index: {}]
  %s5 = inlined_call_operand.vmem [shape: f32[2,4,8,256], index: 5, kind: output, shape index: {}]
  %s6 = sld [smem:[#allocation0]]
  $region53: #{decoder_forward.9} parent=0
    _
  %s8 = ssub.s32 1, %s6
  %s9 = scalar_select 0, %s8, %s6
  loop: start=0, step=1, limit=4
  $region2: #{decoder_forward.9} parent=0 // loop_pre_header
    _
  $region3: #{decoder_forward.9} parent=0 // loop_header
    %s11 = sphi 0, %s15
    %p12 = scmp.ge.s32.totalorder %s11, 4
    %s21 = sphi 0, %s23
    %s24 = sphi 0, %s21
    %s25 = sphi 0, %s24
    %s41 = sphi 0, %s25
    %s45 = sphi 0, %s45
    %s47 = sphi 0, %s45
    %s48 = sphi 0, %s47
    %s62 = sphi 0, %s48
    %s66 = sphi 0, %s66
    %s68 = sphi 0, %s66
    %s69 = sphi 0, %s68
    %s83 = sphi 0, %s69
    %s87 = sphi 0, %s87
    %s89 = sphi 0, %s87
    %s90 = sphi 0, %s89
    %s104 = sphi 0, %s90
    %s108 = sphi 0, %s108
    %s110 = sphi 0, %s108
    %s111 = sphi 0, %s110
    %s125 = sphi 0, %s111
    %s131 = sphi 0, %s133
    %s134 = sphi 0, %s131
    %s135 = sphi 0, %s134
    %s151 = sphi 0, %s135
  $region4: #{decoder_forward.9} parent=0 // loop_header_branch
    %14 = sbr.rel (%p12) target = $region8
  $region5: #{decoder_forward.9} parent=0 // loop_body
    %s16 = ssub.s32 %s11, 1
    %s17 = ssub.s32 %s11, 2
    %s18 = sadd.s32 %s11, 1
    %s19 = ssub.s32 %s11, %s18
    %p20 = scmp.eq.s32.totalorder %s19, 0
    %s22 = sadd.s32 %s21, 1
    %s23 = scalar_select %p20, %s21, %s22
    %p26 = pneg %p20
    %p27 = scmp.eq.s32.totalorder %s11, 1
    %p28 = por %p26, %p27
    %p29 = scmp.ne.s32.totalorder %s21, %s24
    %p30 = scmp.eq.s32.totalorder %s11, 0
    %p31 = por %p29, %p30
    %p32 = scmp.ne.s32.totalorder %s21, %s24
    %p33 = scmp.eq.s32.totalorder %s16, 1
    %p34 = por %p32, %p33
    %p35 = scmp.ne.s32.totalorder %s24, %s25
    %p36 = scmp.eq.s32.totalorder %s16, 0
    %p37 = por %p35, %p36
    %p38 = scmp.ne.s32.totalorder %s24, %s25
    %p39 = scmp.eq.s32.totalorder %s17, 1
    %p40 = por %p38, %p39
    %p42 = scmp.ne.s32.totalorder %s25, %s41
    %p43 = scmp.eq.s32.totalorder %s17, 0
    %p44 = por %p42, %p43
    %s46 = sadd.s32 %s45, 1
    %p49 = scmp.eq.s32.totalorder %s11, 1
    %p50 = scmp.ne.s32.totalorder %s45, %s47
    %p51 = scmp.eq.s32.totalorder %s11, 0
    %p52 = por %p50, %p51
    %p53 = scmp.ne.s32.totalorder %s45, %s47
    %p54 = scmp.eq.s32.totalorder %s16, 1
    %p55 = por %p53, %p54
    %p56 = scmp.ne.s32.totalorder %s47, %s48
    %p57 = scmp.eq.s32.totalorder %s16, 0
    %p58 = por %p56, %p57
    %p59 = scmp.ne.s32.totalorder %s47, %s48
    %p60 = scmp.eq.s32.totalorder %s17, 1
    %p61 = por %p59, %p60
    %p63 = scmp.ne.s32.totalorder %s48, %s62
    %p64 = scmp.eq.s32.totalorder %s17, 0
    %p65 = por %p63, %p64
    %s67 = sadd.s32 %s66, 1
    %p70 = scmp.eq.s32.totalorder %s11, 1
    %p71 = scmp.ne.s32.totalorder %s66, %s68
    %p72 = scmp.eq.s32.totalorder %s11, 0
    %p73 = por %p71, %p72
    %p74 = scmp.ne.s32.totalorder %s66, %s68
    %p75 = scmp.eq.s32.totalorder %s16, 1
    %p76 = por %p74, %p75
    %p77 = scmp.ne.s32.totalorder %s68, %s69
    %p78 = scmp.eq.s32.totalorder %s16, 0
    %p79 = por %p77, %p78
    %p80 = scmp.ne.s32.totalorder %s68, %s69
    %p81 = scmp.eq.s32.totalorder %s17, 1
    %p82 = por %p80, %p81
    %p84 = scmp.ne.s32.totalorder %s69, %s83
    %p85 = scmp.eq.s32.totalorder %s17, 0
    %p86 = por %p84, %p85
    %s88 = sadd.s32 %s87, 1
    %p91 = scmp.eq.s32.totalorder %s11, 1
    %p92 = scmp.ne.s32.totalorder %s87, %s89
    %p93 = scmp.eq.s32.totalorder %s11, 0
    %p94 = por %p92, %p93
    %p95 = scmp.ne.s32.totalorder %s87, %s89
    %p96 = scmp.eq.s32.totalorder %s16, 1
    %p97 = por %p95, %p96
    %p98 = scmp.ne.s32.totalorder %s89, %s90
    %p99 = scmp.eq.s32.totalorder %s16, 0
    %p100 = por %p98, %p99
    %p101 = scmp.ne.s32.totalorder %s89, %s90
    %p102 = scmp.eq.s32.totalorder %s17, 1
    %p103 = por %p101, %p102
    %p105 = scmp.ne.s32.totalorder %s90, %s104
    %p106 = scmp.eq.s32.totalorder %s17, 0
    %p107 = por %p105, %p106
    %s109 = sadd.s32 %s108, 1
    %p112 = scmp.eq.s32.totalorder %s11, 1
    %p113 = scmp.ne.s32.totalorder %s108, %s110
    %p114 = scmp.eq.s32.totalorder %s11, 0
    %p115 = por %p113, %p114
    %p116 = scmp.ne.s32.totalorder %s108, %s110
    %p117 = scmp.eq.s32.totalorder %s16, 1
    %p118 = por %p116, %p117
    %p119 = scmp.ne.s32.totalorder %s110, %s111
    %p120 = scmp.eq.s32.totalorder %s16, 0
    %p121 = por %p119, %p120
    %p122 = scmp.ne.s32.totalorder %s110, %s111
    %p123 = scmp.eq.s32.totalorder %s17, 1
    %p124 = por %p122, %p123
    %p126 = scmp.ne.s32.totalorder %s111, %s125
    %p127 = scmp.eq.s32.totalorder %s17, 0
    %p128 = por %p126, %p127
    %s129 = ssub.s32 %s11, %s18
    %p130 = scmp.eq.s32.totalorder %s129, 0
    %s132 = sadd.s32 %s131, 1
    %s133 = scalar_select %p130, %s131, %s132
    %p136 = pneg %p130
    %p137 = scmp.eq.s32.totalorder %s11, 1
    %p138 = por %p136, %p137
    %p139 = scmp.ne.s32.totalorder %s131, %s134
    %p140 = scmp.eq.s32.totalorder %s11, 0
    %p141 = por %p139, %p140
    %p142 = scmp.ne.s32.totalorder %s131, %s134
    %p143 = scmp.eq.s32.totalorder %s16, 1
    %p144 = por %p142, %p143
    %p145 = scmp.ne.s32.totalorder %s134, %s135
    %p146 = scmp.eq.s32.totalorder %s16, 0
    %p147 = por %p145, %p146
    %p148 = scmp.ne.s32.totalorder %s134, %s135
    %p149 = scmp.eq.s32.totalorder %s17, 1
    %p150 = por %p148, %p149
    %p152 = scmp.ne.s32.totalorder %s135, %s151
    %p153 = scmp.eq.s32.totalorder %s17, 0
    %p154 = por %p152, %p153
    %p155 = scmp.le.s32.totalorder 1, %s11
    %p156 = scmp.lt.s32.totalorder %s11, 3
    %p157 = pnand %p155, %p156
    %p158 = pneg %p157
    // Predicated region
    $region9: #{decoder_forward.9} parent=5 // pred_check
      _
    $region10: #{decoder_forward.9} parent=5 // pred_check_branch
      %160 = sbr.rel (%p157) target = $region12
    $region11: #{decoder_forward.9} parent=5 // pred_region
      %s161 = ssub.s32 %s11, 1
      // Predicated region
      $region13: #{decoder_forward.9} parent=11 // pred_check
        %p162 = pneg %p58
      $region14: #{decoder_forward.9} parent=11 // pred_check_branch
        %164 = sbr.rel (%p162) target = $region16
      $region15: #{decoder_forward.9} parent=11 // pred_region
        _
      $region16: #{decoder_forward.9} parent=11 // pred_fallthru
        _
      // Predicated region
      $region17: #{decoder_forward.9} parent=11 // pred_check
        %p165 = pneg %p79
      $region18: #{decoder_forward.9} parent=11 // pred_check_branch
        %167 = sbr.rel (%p165) target = $region20
      $region19: #{decoder_forward.9} parent=11 // pred_region
        _
      $region20: #{decoder_forward.9} parent=11 // pred_fallthru
        _
      // Predicated region
      $region21: #{decoder_forward.9} parent=11 // pred_check
        %p168 = pneg %p100
      $region22: #{decoder_forward.9} parent=11 // pred_check_branch
        %170 = sbr.rel (%p168) target = $region24
      $region23: #{decoder_forward.9} parent=11 // pred_region
        _
      $region24: #{decoder_forward.9} parent=11 // pred_fallthru
        _
      // Predicated region
      $region25: #{decoder_forward.9} parent=11 // pred_check
        %p171 = pneg %p121
      $region26: #{decoder_forward.9} parent=11 // pred_check_branch
        %173 = sbr.rel (%p171) target = $region28
      $region27: #{decoder_forward.9} parent=11 // pred_region
        _
      $region28: #{decoder_forward.9} parent=11 // pred_fallthru
        _
    $region12: #{decoder_forward.9} parent=5 // pred_fallthru
      _
    %p174 = scmp.lt.s32.totalorder %s11, 2
    // Predicated region
    $region29: #{decoder_forward.9} parent=5 // pred_check
      %p175 = pneg %p174
    $region30: #{decoder_forward.9} parent=5 // pred_check_branch
      %177 = sbr.rel (%p175) target = $region32
    $region31: #{decoder_forward.9} parent=5 // pred_region
      // Predicated region
      $region33: #{decoder_forward.9} parent=31 // pred_check
        %p178 = pneg %p31
      $region34: #{decoder_forward.9} parent=31 // pred_check_branch
        %180 = sbr.rel (%p178) target = $region36
      $region35: #{decoder_forward.9} parent=31 // pred_region
        %p181 = scmp.lt.s32.totalorder %s11, 1
        %s182 = scalar_select %p181, %s11, 1
        %s183 = smul.addr %s182, 4
        %s184 = smul.addr %s183, 8
        %s185 = scalar_lea.vmem %s0, %s184
      $region36: #{decoder_forward.9} parent=31 // pred_fallthru
        _
    $region32: #{decoder_forward.9} parent=5 // pred_fallthru
      _
    %p186 = scmp.le.s32.totalorder 1, %s11
    %p187 = scmp.lt.s32.totalorder %s11, 3
    %p188 = pnand %p186, %p187
    %p189 = pneg %p188
    // Predicated region
    $region37: #{decoder_forward.9} parent=5 // pred_check
      _
    $region38: #{decoder_forward.9} parent=5 // pred_check_branch
      %191 = sbr.rel (%p188) target = $region40
    $region39: #{decoder_forward.9} parent=5 // pred_region
      %s192 = ssub.s32 %s11, 1
      %p193 = scmp.lt.s32.totalorder %s16, 1
      %s194 = scalar_select %p193, %s16, 1
      %s195 = smul.addr %s194, 4
      %s196 = smul.addr %s195, 8
      %s197 = scalar_lea.vmem %s0, %s196
      %p198 = pneg %p37
      %p199 = pneg %p34
      %p200 = pneg %p58
      %p201 = pneg %p55
      %p202 = pneg %p79
      %p203 = pneg %p76
      %p204 = pneg %p100
      %p205 = pneg %p97
      %p206 = pneg %p121
      %p207 = pneg %p118
      %p208 = pneg %p147
      %p209 = pneg %p144
      %p210 = scmp.lt.s32.totalorder %s16, 1
      %s211 = scalar_select %p210, %s16, 1
      %s212 = smul.addr %s211, 8
      %s213 = smul.addr %s212, 8
      %s214 = scalar_lea.vmem %s5, %s213
      %p215 = scmp.lt.s32.totalorder %s16, 1
      %s216 = scalar_select %p215, %s16, 1
      %s217 = smul.addr %s216, 4
      %s218 = smul.addr %s217, 8
      %s219 = scalar_lea.vmem %s0, %s218
      %p220 = scmp.lt.s32.totalorder %s16, 1
      %s221 = scalar_select %p220, %s16, 1
      %s222 = smul.addr %s221, 8
      %s223 = smul.addr %s222, 8
      %s224 = scalar_lea.vmem %s5, %s223
      %v225 = vld [vmem:[%s219] sm:$0xff]
      %v226 = vld [vmem:[%s219 + $0x8] sm:$0xff]
      %v227 = vld [vmem:[%s219 + $0x10] sm:$0xff]
      %v228 = vld [vmem:[%s219 + $0x18] sm:$0xff]
      %v229 = vadd.f32 %v225, %v227
      %v230 = vrot.slane %v229, 4
      %v231 = vadd.f32 %v229, %v230
      %v232 = vrot.slane %v231, 2
      %v233 = vadd.f32 %v231, %v232
      %v234 = vrot.slane %v233, 1
      %v235 = vadd.f32 %v233, %v234
      %v236 = vadd.f32 %v226, %v228
      %v237 = vrot.slane %v236, 4
      %v238 = vadd.f32 %v236, %v237
      %v239 = vrot.slane %v238, 2
      %v240 = vadd.f32 %v238, %v239
      %v241 = vrot.slane %v240, 1
      %v242 = vadd.f32 %v240, %v241
      %v243 = vrcp.pop 16.0
      %v244 = vmul.f32 16.0, %v243
      %v245 = vsub.f32 1.0, %v244
      %v246 = vmul.f32 %v243, %v245
      %v247 = vadd.f32 %v243, %v246
      %vm248 = vweird.f32 %v243
      %v249 = vsel %vm248, %v243, %v247
      %v250 = vmul.f32 %v235, %v249
      %v251 = vmul.f32 %v242, %v249
      %v252 = vsub.f32 %v225, %v250
      %v253 = vsub.f32 %v226, %v251
      %v254 = vsub.f32 %v227, %v250
      %v255 = vsub.f32 %v228, %v251
      %v256 = vmul.f32 %v252, %v252
      %v257 = vmul.f32 %v253, %v253
      %v258 = vmul.f32 %v254, %v254
      %v259 = vmul.f32 %v255, %v255
      %v260 = vadd.f32 %v256, %v258
      %v261 = vrot.slane %v260, 4
      %v262 = vadd.f32 %v260, %v261
      %v263 = vrot.slane %v262, 2
      %v264 = vadd.f32 %v262, %v263
      %v265 = vrot.slane %v264, 1
      %v266 = vadd.f32 %v264, %v265
      %v267 = vadd.f32 %v257, %v259
      %v268 = vrot.slane %v267, 4
      %v269 = vadd.f32 %v267, %v268
      %v270 = vrot.slane %v269, 2
      %v271 = vadd.f32 %v269, %v270
      %v272 = vrot.slane %v271, 1
      %v273 = vadd.f32 %v271, %v272
      %v274 = vmul.f32 %v266, %v249
      %v275 = vmul.f32 %v273, %v249
      %v276 = vadd.f32 %v274, 1e-05
      %v277 = vadd.f32 %v275, 1e-05
      %v278 = vrsqrt.pop %v276
      %v279 = vmul.f32 %v278, %v276
      %v280 = vmul.f32 %v279, %v278
      %v281 = vmul.f32 0.5, %v280
      %v282 = vsub.f32 1.5, %v281
      %v283 = vmul.f32 %v278, %v282
      %vm284 = vweird.f32 %v276
      %vm285 = vweird.f32 %v278
      %vm286 = vmor %vm284, %vm285
      %v287 = vsel %vm286, %v278, %v283
      %v288 = vrsqrt.pop %v277
      %v289 = vmul.f32 %v288, %v277
      %v290 = vmul.f32 %v289, %v288
      %v291 = vmul.f32 0.5, %v290
      %v292 = vsub.f32 1.5, %v291
      %v293 = vmul.f32 %v288, %v292
      %vm294 = vweird.f32 %v277
      %vm295 = vweird.f32 %v288
      %vm296 = vmor %vm294, %vm295
      %v297 = vsel %vm296, %v288, %v293
      %v298 = vmul.f32 %v252, %v287
      %v299 = vmul.f32 %v253, %v297
      %v300 = vmul.f32 %v254, %v287
      %v301 = vmul.f32 %v255, %v297
      %v302 = vld [vmem:[%s1] sm:$0xff]
      %v303 = vld [vmem:[%s1 + $0x8] sm:$0xff]
      %305 = vset.pattern.permute.xlu0 0
      %306 = vperm.xlu0 %305, %v302
      %v307 = vpop.permute.xlu0 %306
      %310 = vset.pattern.permute.xlu0 0
      %311 = vperm.xlu0 %310, %v303
      %v312 = vpop.permute.xlu0 %311
      %v314 = vmul.f32 %v298, %v307
      %v315 = vmul.f32 %v299, %v307
      %v316 = vmul.f32 %v300, %v312
      %v317 = vmul.f32 %v301, %v312
      %v318 = vld [vmem:[%s2] sm:$0xff]
      %v319 = vld [vmem:[%s2 + $0x8] sm:$0xff]
      %321 = vset.pattern.permute.xlu0 0
      %322 = vperm.xlu0 %321, %v318
      %v323 = vpop.permute.xlu0 %322
      %326 = vset.pattern.permute.xlu0 0
      %327 = vperm.xlu0 %326, %v319
      %v328 = vpop.permute.xlu0 %327
      %v330 = vadd.f32 %v314, %v323
      %v331 = vadd.f32 %v315, %v323
      %v332 = vadd.f32 %v316, %v328
      %v333 = vadd.f32 %v317, %v328
      %v334 = vld [vmem:[%s3] sm:$0xff]
      %v335 = vld [vmem:[%s4] sm:$0xff]
      %337 = vset.pattern.permute.xlu0 0
      %338 = vperm.xlu0 %337, %v335
      %v339 = vpop.permute.xlu0 %338
      %vm341 = vcmask 130048
      %v343 = vsel %vm341, %v334, 0
      %345 = vmatpush.msra.mxu0 0.0
      %346 = vmatpush.msra.mxu0 0.0
      %347 = vmatpush.msra.mxu0 0.0
      %348 = vmatpush.msra.mxu0 0.0
      %349 = vmatpush.msra.mxu0 0.0
      %350 = vmatpush.msra.mxu0 0.0
      %351 = vmatpush.msra.mxu0 0.0
      %352 = vmatpush.msra.mxu0 0.0
      %353 = vmatpush.msra.mxu0 0.0
      %354 = vmatpush.msra.mxu0 0.0
      %355 = vmatpush.msra.mxu0 0.0
      %356 = vmatpush.msra.mxu0 0.0
      %357 = vmatpush.msra.mxu0 0.0
      %358 = vmatpush.msra.mxu0 0.0
      %359 = vmatpush.msra.mxu0 %v332
      %360 = vmatpush.msra.mxu0 %v330
      %361 = vmatmul.f32.gmra.mxu0 %v343
      %v362 = vpop.f32.mrf.mxu0
      %v363 = vadd.f32 %v339, %v362
      %364 = vdwg.mxu0
      %365 = vmatpush.msra.mxu0 0.0
      %366 = vmatpush.msra.mxu0 0.0
      %367 = vmatpush.msra.mxu0 0.0
      %368 = vmatpush.msra.mxu0 0.0
      %369 = vmatpush.msra.mxu0 0.0
      %370 = vmatpush.msra.mxu0 0.0
      %371 = vmatpush.msra.mxu0 0.0
      %372 = vmatpush.msra.mxu0 0.0
      %373 = vmatpush.msra.mxu0 0.0
      %374 = vmatpush.msra.mxu0 0.0
      %375 = vmatpush.msra.mxu0 0.0
      %376 = vmatpush.msra.mxu0 0.0
      %377 = vmatpush.msra.mxu0 0.0
      %378 = vmatpush.msra.mxu0 0.0
      %379 = vmatpush.msra.mxu0 %v333
      %380 = vmatpush.msra.mxu0 %v331
      %381 = vmatmul.f32.gmra.mxu0 %v343
      %v382 = vpop.f32.mrf.mxu0
      %v383 = vadd.f32 %v339, %v382
      %384 = vdwg.mxu0
      %385 = vst [vmem:[%s224] sm:$0xff] %v363
      %386 = vst [vmem:[%s224 + $0x8] sm:$0xff] %v383
      %s387 = scalar_lea.vmem %s3, 8
      %v388 = vld [vmem:[%s387] sm:$0xff]
      %v389 = vld [vmem:[%s4] sm:$0xff]
      %391 = vset.pattern.permute.xlu0 0
      %392 = vperm.xlu0 %391, %v389
      %v393 = vpop.permute.xlu0 %392
      %v396 = vsel %vm341, %v388, 0
      %398 = vmatpush.msra.mxu0 0.0
      %399 = vmatpush.msra.mxu0 0.0
      %400 = vmatpush.msra.mxu0 0.0
      %401 = vmatpush.msra.mxu0 0.0
      %402 = vmatpush.msra.mxu0 0.0
      %403 = vmatpush.msra.mxu0 0.0
      %404 = vmatpush.msra.mxu0 0.0
      %405 = vmatpush.msra.mxu0 0.0
      %406 = vmatpush.msra.mxu0 0.0
      %407 = vmatpush.msra.mxu0 0.0
      %408 = vmatpush.msra.mxu0 0.0
      %409 = vmatpush.msra.mxu0 0.0
      %410 = vmatpush.msra.mxu0 0.0
      %411 = vmatpush.msra.mxu0 0.0
      %412 = vmatpush.msra.mxu0 %v332
      %413 = vmatpush.msra.mxu0 %v330
      %414 = vmatmul.f32.gmra.mxu0 %v396
      %v415 = vpop.f32.mrf.mxu0
      %v416 = vadd.f32 %v393, %v415
      %417 = vdwg.mxu0
      %418 = vmatpush.msra.mxu0 0.0
      %419 = vmatpush.msra.mxu0 0.0
      %420 = vmatpush.msra.mxu0 0.0
      %421 = vmatpush.msra.mxu0 0.0
      %422 = vmatpush.msra.mxu0 0.0
      %423 = vmatpush.msra.mxu0 0.0
      %424 = vmatpush.msra.mxu0 0.0
      %425 = vmatpush.msra.mxu0 0.0
      %426 = vmatpush.msra.mxu0 0.0
      %427 = vmatpush.msra.mxu0 0.0
      %428 = vmatpush.msra.mxu0 0.0
      %429 = vmatpush.msra.mxu0 0.0
      %430 = vmatpush.msra.mxu0 0.0
      %431 = vmatpush.msra.mxu0 0.0
      %432 = vmatpush.msra.mxu0 %v333
      %433 = vmatpush.msra.mxu0 %v331
      %434 = vmatmul.f32.gmra.mxu0 %v396
      %v435 = vpop.f32.mrf.mxu0
      %v436 = vadd.f32 %v393, %v435
      %437 = vdwg.mxu0
      %s438 = scalar_lea.vmem %s224, 16
      %439 = vst [vmem:[%s438] sm:$0xff] %v416
      %440 = vst [vmem:[%s438 + $0x8] sm:$0xff] %v436
      %s441 = scalar_lea.vmem %s3, 16
      %v442 = vld [vmem:[%s441] sm:$0xff]
      %v443 = vld [vmem:[%s4] sm:$0xff]
      %445 = vset.pattern.permute.xlu0 0
      %446 = vperm.xlu0 %445, %v443
      %v447 = vpop.permute.xlu0 %446
      %v450 = vsel %vm341, %v442, 0
      %452 = vmatpush.msra.mxu0 0.0
      %453 = vmatpush.msra.mxu0 0.0
      %454 = vmatpush.msra.mxu0 0.0
      %455 = vmatpush.msra.mxu0 0.0
      %456 = vmatpush.msra.mxu0 0.0
      %457 = vmatpush.msra.mxu0 0.0
      %458 = vmatpush.msra.mxu0 0.0
      %459 = vmatpush.msra.mxu0 0.0
      %460 = vmatpush.msra.mxu0 0.0
      %461 = vmatpush.msra.mxu0 0.0
      %462 = vmatpush.msra.mxu0 0.0
      %463 = vmatpush.msra.mxu0 0.0
      %464 = vmatpush.msra.mxu0 0.0
      %465 = vmatpush.msra.mxu0 0.0
      %466 = vmatpush.msra.mxu0 %v332
      %467 = vmatpush.msra.mxu0 %v330
      %468 = vmatmul.f32.gmra.mxu0 %v450
      %v469 = vpop.f32.mrf.mxu0
      %v470 = vadd.f32 %v447, %v469
      %471 = vdwg.mxu0
      %472 = vmatpush.msra.mxu0 0.0
      %473 = vmatpush.msra.mxu0 0.0
      %474 = vmatpush.msra.mxu0 0.0
      %475 = vmatpush.msra.mxu0 0.0
      %476 = vmatpush.msra.mxu0 0.0
      %477 = vmatpush.msra.mxu0 0.0
      %478 = vmatpush.msra.mxu0 0.0
      %479 = vmatpush.msra.mxu0 0.0
      %480 = vmatpush.msra.mxu0 0.0
      %481 = vmatpush.msra.mxu0 0.0
      %482 = vmatpush.msra.mxu0 0.0
      %483 = vmatpush.msra.mxu0 0.0
      %484 = vmatpush.msra.mxu0 0.0
      %485 = vmatpush.msra.mxu0 0.0
      %486 = vmatpush.msra.mxu0 %v333
      %487 = vmatpush.msra.mxu0 %v331
      %488 = vmatmul.f32.gmra.mxu0 %v450
      %v489 = vpop.f32.mrf.mxu0
      %v490 = vadd.f32 %v447, %v489
      %491 = vdwg.mxu0
      %s492 = scalar_lea.vmem %s224, 32
      %493 = vst [vmem:[%s492] sm:$0xff] %v470
      %494 = vst [vmem:[%s492 + $0x8] sm:$0xff] %v490
      %s495 = scalar_lea.vmem %s3, 24
      %v496 = vld [vmem:[%s495] sm:$0xff]
      %v497 = vld [vmem:[%s4] sm:$0xff]
      %499 = vset.pattern.permute.xlu0 0
      %500 = vperm.xlu0 %499, %v497
      %v501 = vpop.permute.xlu0 %500
      %v504 = vsel %vm341, %v496, 0
      %506 = vmatpush.msra.mxu0 0.0
      %507 = vmatpush.msra.mxu0 0.0
      %508 = vmatpush.msra.mxu0 0.0
      %509 = vmatpush.msra.mxu0 0.0
      %510 = vmatpush.msra.mxu0 0.0
      %511 = vmatpush.msra.mxu0 0.0
      %512 = vmatpush.msra.mxu0 0.0
      %513 = vmatpush.msra.mxu0 0.0
      %514 = vmatpush.msra.mxu0 0.0
      %515 = vmatpush.msra.mxu0 0.0
      %516 = vmatpush.msra.mxu0 0.0
      %517 = vmatpush.msra.mxu0 0.0
      %518 = vmatpush.msra.mxu0 0.0
      %519 = vmatpush.msra.mxu0 0.0
      %520 = vmatpush.msra.mxu0 %v332
      %521 = vmatpush.msra.mxu0 %v330
      %522 = vmatmul.f32.gmra.mxu0 %v504
      %v523 = vpop.f32.mrf.mxu0
      %v524 = vadd.f32 %v501, %v523
      %525 = vdwg.mxu0
      %526 = vmatpush.msra.mxu0 0.0
      %527 = vmatpush.msra.mxu0 0.0
      %528 = vmatpush.msra.mxu0 0.0
      %529 = vmatpush.msra.mxu0 0.0
      %530 = vmatpush.msra.mxu0 0.0
      %531 = vmatpush.msra.mxu0 0.0
      %532 = vmatpush.msra.mxu0 0.0
      %533 = vmatpush.msra.mxu0 0.0
      %534 = vmatpush.msra.mxu0 0.0
      %535 = vmatpush.msra.mxu0 0.0
      %536 = vmatpush.msra.mxu0 0.0
      %537 = vmatpush.msra.mxu0 0.0
      %538 = vmatpush.msra.mxu0 0.0
      %539 = vmatpush.msra.mxu0 0.0
      %540 = vmatpush.msra.mxu0 %v333
      %541 = vmatpush.msra.mxu0 %v331
      %542 = vmatmul.f32.gmra.mxu0 %v504
      %v543 = vpop.f32.mrf.mxu0
      %v544 = vadd.f32 %v501, %v543
      %545 = vdwg.mxu0
      %s546 = scalar_lea.vmem %s224, 48
      %547 = vst [vmem:[%s546] sm:$0xff] %v524
      %548 = vst [vmem:[%s546 + $0x8] sm:$0xff] %v544
      %p549 = scmp.lt.s32.totalorder %s16, 1
      %s550 = scalar_select %p549, %s16, 1
      %s551 = smul.addr %s550, 8
      %s552 = smul.addr %s551, 8
      %s553 = scalar_lea.vmem %s5, %s552
      // Predicated region
      $region41: #{decoder_forward.9} parent=39 // pred_check
        %p554 = pneg %p144
      $region42: #{decoder_forward.9} parent=39 // pred_check_branch
        %556 = sbr.rel (%p554) target = $region44
      $region43: #{decoder_forward.9} parent=39 // pred_region
        _
      $region44: #{decoder_forward.9} parent=39 // pred_fallthru
        _
    $region40: #{decoder_forward.9} parent=5 // pred_fallthru
      _
    %p557 = scmp.le.s32.totalorder 2, %s11
    // Predicated region
    $region45: #{decoder_forward.9} parent=5 // pred_check
      %p558 = pneg %p557
    $region46: #{decoder_forward.9} parent=5 // pred_check_branch
      %560 = sbr.rel (%p558) target = $region48
    $region47: #{decoder_forward.9} parent=5 // pred_region
      %s561 = ssub.s32 %s11, 2
      // Predicated region
      $region49: #{decoder_forward.9} parent=47 // pred_check
        %p562 = pneg %p150
      $region50: #{decoder_forward.9} parent=47 // pred_check_branch
        %564 = sbr.rel (%p562) target = $region52
      $region51: #{decoder_forward.9} parent=47 // pred_region
        %p565 = scmp.lt.s32.totalorder %s17, 1
        %s566 = scalar_select %p565, %s17, 1
        %s567 = smul.addr %s566, 8
        %s568 = smul.addr %s567, 8
        %s569 = scalar_lea.vmem %s5, %s568
      $region52: #{decoder_forward.9} parent=47 // pred_fallthru
        _
    $region48: #{decoder_forward.9} parent=5 // pred_fallthru
      _
  $region6: #{decoder_forward.9} parent=0 // loop_footer
    %s15 = sadd.s32 1, %s11
  $region7: #{decoder_forward.9} parent=0 // loop_footer_branch
    %10 = sbr.rel target = $region3
  $region8: #{decoder_forward.9} parent=0 // loop_exit
    _

// kernel: decoder_forward.10
$region0: #{decoder_forward.10}
  #allocation0 [shape = 'u32[]', space=smem, size = 0x4, offset = 0x4, fixed_abs, tag = 'smem constant byte address 0x4 - core index']
  #allocation1 [shape = 'u32[72,128]{1,0:T(1,128)}', space=vmem, size = 0x9000, scoped, tag = 'internal scratch']
  #allocation2 [shape = 'f32[72,1088]{1,0:T(8,128)}', space=vmem, size = 0x51000, scoped, tag = 'scratch operand']
  %s0 = inlined_call_operand.vmem [shape: f32[2,8,1280], index: 0, kind: input, shape index: {}]
  %s1 = inlined_call_operand.vmem [shape: f32[8,72], index: 1, kind: input, shape index: {}]
  %s2 = inlined_call_operand.vmem [shape: f32[8,1], index: 2, kind: input, shape index: {}]
  %s3 = inlined_call_operand.vmem [shape: f32[8,1], index: 3, kind: input, shape index: {}]
  %s4 = inlined_call_operand.vmem [shape: f32[8,1], index: 4, kind: input, shape index: {}]
  %s5 = inlined_call_operand.vmem [shape: f32[2,8,1088], index: 5, kind: output, shape index: {}]
  %s6 = sld [smem:[#allocation0]]
  $region53: #{decoder_forward.10} parent=0
    _
  %s8 = ssub.s32 1, %s6
  %s9 = scalar_select 0, %s8, %s6
  loop: start=0, step=1, limit=4
  $region2: #{decoder_forward.10} parent=0 // loop_pre_header
    _
  $region3: #{decoder_forward.10} parent=0 // loop_header
    %s11 = sphi 0, %s15
    %p12 = scmp.ge.s32.totalorder %s11, 4
    %s21 = sphi 0, %s23
    %s24 = sphi 0, %s21
    %s25 = sphi 0, %s24
    %s41 = sphi 0, %s25
    %s45 = sphi 0, %s45
    %s47 = sphi 0, %s45
    %s48 = sphi 0, %s47
    %s62 = sphi 0, %s48
    %s66 = sphi 0, %s66
    %s68 = sphi 0, %s66
    %s69 = sphi 0, %s68
    %s83 = sphi 0, %s69
    %s87 = sphi 0, %s87
    %s89 = sphi 0, %s87
    %s90 = sphi 0, %s89
    %s104 = sphi 0, %s90
    %s108 = sphi 0, %s108
    %s110 = sphi 0, %s108
    %s111 = sphi 0, %s110
    %s125 = sphi 0, %s111
    %s131 = sphi 0, %s133
    %s134 = sphi 0, %s131
    %s135 = sphi 0, %s134
    %s151 = sphi 0, %s135
  $region4: #{decoder_forward.10} parent=0 // loop_header_branch
    %14 = sbr.rel (%p12) target = $region8
  $region5: #{decoder_forward.10} parent=0 // loop_body
    %s16 = ssub.s32 %s11, 1
    %s17 = ssub.s32 %s11, 2
    %s18 = sadd.s32 %s11, 1
    %s19 = ssub.s32 %s11, %s18
    %p20 = scmp.eq.s32.totalorder %s19, 0
    %s22 = sadd.s32 %s21, 1
    %s23 = scalar_select %p20, %s21, %s22
    %p26 = pneg %p20
    %p27 = scmp.eq.s32.totalorder %s11, 1
    %p28 = por %p26, %p27
    %p29 = scmp.ne.s32.totalorder %s21, %s24
    %p30 = scmp.eq.s32.totalorder %s11, 0
    %p31 = por %p29, %p30
    %p32 = scmp.ne.s32.totalorder %s21, %s24
    %p33 = scmp.eq.s32.totalorder %s16, 1
    %p34 = por %p32, %p33
    %p35 = scmp.ne.s32.totalorder %s24, %s25
    %p36 = scmp.eq.s32.totalorder %s16, 0
    %p37 = por %p35, %p36
    %p38 = scmp.ne.s32.totalorder %s24, %s25
    %p39 = scmp.eq.s32.totalorder %s17, 1
    %p40 = por %p38, %p39
    %p42 = scmp.ne.s32.totalorder %s25, %s41
    %p43 = scmp.eq.s32.totalorder %s17, 0
    %p44 = por %p42, %p43
    %s46 = sadd.s32 %s45, 1
    %p49 = scmp.eq.s32.totalorder %s11, 1
    %p50 = scmp.ne.s32.totalorder %s45, %s47
    %p51 = scmp.eq.s32.totalorder %s11, 0
    %p52 = por %p50, %p51
    %p53 = scmp.ne.s32.totalorder %s45, %s47
    %p54 = scmp.eq.s32.totalorder %s16, 1
    %p55 = por %p53, %p54
    %p56 = scmp.ne.s32.totalorder %s47, %s48
    %p57 = scmp.eq.s32.totalorder %s16, 0
    %p58 = por %p56, %p57
    %p59 = scmp.ne.s32.totalorder %s47, %s48
    %p60 = scmp.eq.s32.totalorder %s17, 1
    %p61 = por %p59, %p60
    %p63 = scmp.ne.s32.totalorder %s48, %s62
    %p64 = scmp.eq.s32.totalorder %s17, 0
    %p65 = por %p63, %p64
    %s67 = sadd.s32 %s66, 1
    %p70 = scmp.eq.s32.totalorder %s11, 1
    %p71 = scmp.ne.s32.totalorder %s66, %s68
    %p72 = scmp.eq.s32.totalorder %s11, 0
    %p73 = por %p71, %p72
    %p74 = scmp.ne.s32.totalorder %s66, %s68
    %p75 = scmp.eq.s32.totalorder %s16, 1
    %p76 = por %p74, %p75
    %p77 = scmp.ne.s32.totalorder %s68, %s69
    %p78 = scmp.eq.s32.totalorder %s16, 0
    %p79 = por %p77, %p78
    %p80 = scmp.ne.s32.totalorder %s68, %s69
    %p81 = scmp.eq.s32.totalorder %s17, 1
    %p82 = por %p80, %p81
    %p84 = scmp.ne.s32.totalorder %s69, %s83
    %p85 = scmp.eq.s32.totalorder %s17, 0
    %p86 = por %p84, %p85
    %s88 = sadd.s32 %s87, 1
    %p91 = scmp.eq.s32.totalorder %s11, 1
    %p92 = scmp.ne.s32.totalorder %s87, %s89
    %p93 = scmp.eq.s32.totalorder %s11, 0
    %p94 = por %p92, %p93
    %p95 = scmp.ne.s32.totalorder %s87, %s89
    %p96 = scmp.eq.s32.totalorder %s16, 1
    %p97 = por %p95, %p96
    %p98 = scmp.ne.s32.totalorder %s89, %s90
    %p99 = scmp.eq.s32.totalorder %s16, 0
    %p100 = por %p98, %p99
    %p101 = scmp.ne.s32.totalorder %s89, %s90
    %p102 = scmp.eq.s32.totalorder %s17, 1
    %p103 = por %p101, %p102
    %p105 = scmp.ne.s32.totalorder %s90, %s104
    %p106 = scmp.eq.s32.totalorder %s17, 0
    %p107 = por %p105, %p106
    %s109 = sadd.s32 %s108, 1
    %p112 = scmp.eq.s32.totalorder %s11, 1
    %p113 = scmp.ne.s32.totalorder %s108, %s110
    %p114 = scmp.eq.s32.totalorder %s11, 0
    %p115 = por %p113, %p114
    %p116 = scmp.ne.s32.totalorder %s108, %s110
    %p117 = scmp.eq.s32.totalorder %s16, 1
    %p118 = por %p116, %p117
    %p119 = scmp.ne.s32.totalorder %s110, %s111
    %p120 = scmp.eq.s32.totalorder %s16, 0
    %p121 = por %p119, %p120
    %p122 = scmp.ne.s32.totalorder %s110, %s111
    %p123 = scmp.eq.s32.totalorder %s17, 1
    %p124 = por %p122, %p123
    %p126 = scmp.ne.s32.totalorder %s111, %s125
    %p127 = scmp.eq.s32.totalorder %s17, 0
    %p128 = por %p126, %p127
    %s129 = ssub.s32 %s11, %s18
    %p130 = scmp.eq.s32.totalorder %s129, 0
    %s132 = sadd.s32 %s131, 1
    %s133 = scalar_select %p130, %s131, %s132
    %p136 = pneg %p130
    %p137 = scmp.eq.s32.totalorder %s11, 1
    %p138 = por %p136, %p137
    %p139 = scmp.ne.s32.totalorder %s131, %s134
    %p140 = scmp.eq.s32.totalorder %s11, 0
    %p141 = por %p139, %p140
    %p142 = scmp.ne.s32.totalorder %s131, %s134
    %p143 = scmp.eq.s32.totalorder %s16, 1
    %p144 = por %p142, %p143
    %p145 = scmp.ne.s32.totalorder %s134, %s135
    %p146 = scmp.eq.s32.totalorder %s16, 0
    %p147 = por %p145, %p146
    %p148 = scmp.ne.s32.totalorder %s134, %s135
    %p149 = scmp.eq.s32.totalorder %s17, 1
    %p150 = por %p148, %p149
    %p152 = scmp.ne.s32.totalorder %s135, %s151
    %p153 = scmp.eq.s32.totalorder %s17, 0
    %p154 = por %p152, %p153
    %p155 = scmp.le.s32.totalorder 1, %s11
    %p156 = scmp.lt.s32.totalorder %s11, 3
    %p157 = pnand %p155, %p156
    %p158 = pneg %p157
    // Predicated region
    $region9: #{decoder_forward.10} parent=5 // pred_check
      _
    $region10: #{decoder_forward.10} parent=5 // pred_check_branch
      %160 = sbr.rel (%p157) target = $region12
    $region11: #{decoder_forward.10} parent=5 // pred_region
      %s161 = ssub.s32 %s11, 1
      // Predicated region
      $region13: #{decoder_forward.10} parent=11 // pred_check
        %p162 = pneg %p58
      $region14: #{decoder_forward.10} parent=11 // pred_check_branch
        %164 = sbr.rel (%p162) target = $region16
      $region15: #{decoder_forward.10} parent=11 // pred_region
        _
      $region16: #{decoder_forward.10} parent=11 // pred_fallthru
        _
      // Predicated region
      $region17: #{decoder_forward.10} parent=11 // pred_check
        %p165 = pneg %p79
      $region18: #{decoder_forward.10} parent=11 // pred_check_branch
        %167 = sbr.rel (%p165) target = $region20
      $region19: #{decoder_forward.10} parent=11 // pred_region
        _
      $region20: #{decoder_forward.10} parent=11 // pred_fallthru
        _
      // Predicated region
      $region21: #{decoder_forward.10} parent=11 // pred_check
        %p168 = pneg %p100
      $region22: #{decoder_forward.10} parent=11 // pred_check_branch
        %170 = sbr.rel (%p168) target = $region24
      $region23: #{decoder_forward.10} parent=11 // pred_region
        _
      $region24: #{decoder_forward.10} parent=11 // pred_fallthru
        _
      // Predicated region
      $region25: #{decoder_forward.10} parent=11 // pred_check
        %p171 = pneg %p121
      $region26: #{decoder_forward.10} parent=11 // pred_check_branch
        %173 = sbr.rel (%p171) target = $region28
      $region27: #{decoder_forward.10} parent=11 // pred_region
        _
      $region28: #{decoder_forward.10} parent=11 // pred_fallthru
        _
    $region12: #{decoder_forward.10} parent=5 // pred_fallthru
      _
    %p174 = scmp.lt.s32.totalorder %s11, 2
    // Predicated region
    $region29: #{decoder_forward.10} parent=5 // pred_check
      %p175 = pneg %p174
    $region30: #{decoder_forward.10} parent=5 // pred_check_branch
      %177 = sbr.rel (%p175) target = $region32
    $region31: #{decoder_forward.10} parent=5 // pred_region
      // Predicated region
      $region33: #{decoder_forward.10} parent=31 // pred_check
        %p178 = pneg %p31
      $region34: #{decoder_forward.10} parent=31 // pred_check_branch
        %180 = sbr.rel (%p178) target = $region36
      $region35: #{decoder_forward.10} parent=31 // pred_region
        %p181 = scmp.lt.s32.totalorder %s11, 1
        %s182 = scalar_select %p181, %s11, 1
        %s183 = smul.addr %s182, 10
        %s184 = smul.addr %s183, 8
        %s185 = scalar_lea.vmem %s0, %s184
      $region36: #{decoder_forward.10} parent=31 // pred_fallthru
        _
    $region32: #{decoder_forward.10} parent=5 // pred_fallthru
      _
    %p186 = scmp.le.s32.totalorder 1, %s11
    %p187 = scmp.lt.s32.totalorder %s11, 3
    %p188 = pnand %p186, %p187
    %p189 = pneg %p188
    // Predicated region
    $region37: #{decoder_forward.10} parent=5 // pred_check
      _
    $region38: #{decoder_forward.10} parent=5 // pred_check_branch
      %191 = sbr.rel (%p188) target = $region40
    $region39: #{decoder_forward.10} parent=5 // pred_region
      %s192 = ssub.s32 %s11, 1
      %p193 = scmp.lt.s32.totalorder %s16, 1
      %s194 = scalar_select %p193, %s16, 1
      %s195 = smul.addr %s194, 10
      %s196 = smul.addr %s195, 8
      %s197 = scalar_lea.vmem %s0, %s196
      %p198 = pneg %p37
      %p199 = pneg %p34
      %p200 = pneg %p58
      %p201 = pneg %p55
      %p202 = pneg %p79
      %p203 = pneg %p76
      %p204 = pneg %p100
      %p205 = pneg %p97
      %p206 = pneg %p121
      %p207 = pneg %p118
      %p208 = pneg %p147
      %p209 = pneg %p144
      %p210 = scmp.lt.s32.totalorder %s16, 1
      %s211 = scalar_select %p210, %s16, 1
      %s212 = smul.addr %s211, 9
      %s213 = smul.addr %s212, 8
      %s214 = scalar_lea.vmem %s5, %s213
      %p215 = scmp.lt.s32.totalorder %s16, 1
      %s216 = scalar_select %p215, %s16, 1
      %s217 = smul.addr %s216, 10
      %s218 = smul.addr %s217, 8
      %s219 = scalar_lea.vmem %s0, %s218
      %p220 = scmp.lt.s32.totalorder %s16, 1
      %s221 = scalar_select %p220, %s16, 1
      %s222 = smul.addr %s221, 9
      %s223 = smul.addr %s222, 8
      %s224 = scalar_lea.vmem %s5, %s223
      %v225 = vld [vmem:[%s219] sm:$0xff]
      %v226 = vld [vmem:[%s219 + $0x8] sm:$0xff]
      %v227 = vld [vmem:[%s219 + $0x10] sm:$0xff]
      %v228 = vld [vmem:[%s219 + $0x18] sm:$0xff]
      %v229 = vld [vmem:[%s219 + $0x20] sm:$0xff]
      %v230 = vld [vmem:[%s219 + $0x28] sm:$0xff]
      %v231 = vld [vmem:[%s219 + $0x30] sm:$0xff]
      %v232 = vld [vmem:[%s219 + $0x38] sm:$0xff]
      %v233 = vld [vmem:[%s219 + $0x40] sm:$0xff]
      %234 = vst [vmem:[#allocation2] sm:$0xff] %v225
      %235 = vst [vmem:[#allocation2 + $0x8] sm:$0xff] %v226
      %236 = vst [vmem:[#allocation2 + $0x10] sm:$0xff] %v227
      %237 = vst [vmem:[#allocation2 + $0x18] sm:$0xff] %v228
      %238 = vst [vmem:[#allocation2 + $0x20] sm:$0xff] %v229
      %239 = vst [vmem:[#allocation2 + $0x28] sm:$0xff] %v230
      %240 = vst [vmem:[#allocation2 + $0x30] sm:$0xff] %v231
      %241 = vst [vmem:[#allocation2 + $0x38] sm:$0xff] %v232
      %vm242 = vcmask 523264
      %243 = vst.msk [vmem:[#allocation2 + $0x40] sm:$0xff] %vm242, %v233
      %v244 = vld [vmem:[%s219] sm:$0xff]
      %v245 = vld [vmem:[%s219 + $0x8] sm:$0xff]
      %v246 = vld [vmem:[%s219 + $0x10] sm:$0xff]
      %v247 = vld [vmem:[%s219 + $0x18] sm:$0xff]
      %v248 = vld [vmem:[%s219 + $0x20] sm:$0xff]
      %v249 = vld [vmem:[%s219 + $0x28] sm:$0xff]
      %v250 = vld [vmem:[%s219 + $0x30] sm:$0xff]
      %v251 = vld [vmem:[%s219 + $0x38] sm:$0xff]
      %v252 = vld [vmem:[%s219 + $0x40] sm:$0xff]
      %262 = vrot.lane.b32.xlu0 %v244, 127
      %v263 = vpop.permute.xlu0 %262
      %264 = vrot.lane.b32.xlu0 %v245, 127
      %v265 = vpop.permute.xlu0 %264
      %266 = vrot.lane.b32.xlu0 %v246, 127
      %v267 = vpop.permute.xlu0 %266
      %268 = vrot.lane.b32.xlu0 %v247, 127
      %v269 = vpop.permute.xlu0 %268
      %270 = vrot.lane.b32.xlu0 %v248, 127
      %v271 = vpop.permute.xlu0 %270
      %272 = vrot.lane.b32.xlu0 %v249, 127
      %v273 = vpop.permute.xlu0 %272
      %274 = vrot.lane.b32.xlu0 %v250, 127
      %v275 = vpop.permute.xlu0 %274
      %276 = vrot.lane.b32.xlu0 %v251, 127
      %v277 = vpop.permute.xlu0 %276
      %278 = vrot.lane.b32.xlu0 %v252, 127
      %v279 = vpop.permute.xlu0 %278
      %vm280 = vcmask 1039360
      %v281 = vsel %vm280, %v263, %v265
      %v282 = vsel %vm280, %v265, %v267
      %v283 = vsel %vm280, %v267, %v269
      %v284 = vsel %vm280, %v269, %v271
      %v285 = vsel %vm280, %v271, %v273
      %v286 = vsel %vm280, %v273, %v275
      %v287 = vsel %vm280, %v275, %v277
      %v288 = vsel %vm280, %v277, %v279
      %298 = vst [vmem:[#allocation2 + $0x48] sm:$0xff] %v281
      %299 = vst [vmem:[#allocation2 + $0x50] sm:$0xff] %v282
      %300 = vst [vmem:[#allocation2 + $0x58] sm:$0xff] %v283
      %301 = vst [vmem:[#allocation2 + $0x60] sm:$0xff] %v284
      %302 = vst [vmem:[#allocation2 + $0x68] sm:$0xff] %v285
      %303 = vst [vmem:[#allocation2 + $0x70] sm:$0xff] %v286
      %304 = vst [vmem:[#allocation2 + $0x78] sm:$0xff] %v287
      %305 = vst [vmem:[#allocation2 + $0x80] sm:$0xff] %v288
      %306 = vst.msk [vmem:[#allocation2 + $0x88] sm:$0xff] %vm242, %v279
      %v307 = vld [vmem:[%s219] sm:$0xff]
      %v308 = vld [vmem:[%s219 + $0x8] sm:$0xff]
      %v309 = vld [vmem:[%s219 + $0x10] sm:$0xff]
      %v310 = vld [vmem:[%s219 + $0x18] sm:$0xff]
      %v311 = vld [vmem:[%s219 + $0x20] sm:$0xff]
      %v312 = vld [vmem:[%s219 + $0x28] sm:$0xff]
      %v313 = vld [vmem:[%s219 + $0x30] sm:$0xff]
      %v314 = vld [vmem:[%s219 + $0x38] sm:$0xff]
      %v315 = vld [vmem:[%s219 + $0x40] sm:$0xff]
      %325 = vrot.lane.b32.xlu0 %v307, 126
      %v326 = vpop.permute.xlu0 %325
      %327 = vrot.lane.b32.xlu0 %v308, 126
      %v328 = vpop.permute.xlu0 %327
      %329 = vrot.lane.b32.xlu0 %v309, 126
      %v330 = vpop.permute.xlu0 %329
      %331 = vrot.lane.b32.xlu0 %v310, 126
      %v332 = vpop.permute.xlu0 %331
      %333 = vrot.lane.b32.xlu0 %v311, 126
      %v334 = vpop.permute.xlu0 %333
      %335 = vrot.lane.b32.xlu0 %v312, 126
      %v336 = vpop.permute.xlu0 %335
      %337 = vrot.lane.b32.xlu0 %v313, 126
      %v338 = vpop.permute.xlu0 %337
      %339 = vrot.lane.b32.xlu0 %v314, 126
      %v340 = vpop.permute.xlu0 %339
      %341 = vrot.lane.b32.xlu0 %v315, 126
      %v342 = vpop.permute.xlu0 %341
      %vm343 = vcmask 1031168
      %v344 = vsel %vm343, %v326, %v328
      %v345 = vsel %vm343, %v328, %v330
      %v346 = vsel %vm343, %v330, %v332
      %v347 = vsel %vm343, %v332, %v334
      %v348 = vsel %vm343, %v334, %v336
      %v349 = vsel %vm343, %v336, %v338
      %v350 = vsel %vm343, %v338, %v340
      %v351 = vsel %vm343, %v340, %v342
      %361 = vst [vmem:[#allocation2 + $0x90] sm:$0xff] %v344
      %362 = vst [vmem:[#allocation2 + $0x98] sm:$0xff] %v345
      %363 = vst [vmem:[#allocation2 + $0xa0] sm:$0xff] %v346
      %364 = vst [vmem:[#allocation2 + $0xa8] sm:$0xff] %v347
      %365 = vst [vmem:[#allocation2 + $0xb0] sm:$0xff] %v348
      %366 = vst [vmem:[#allocation2 + $0xb8] sm:$0xff] %v349
      %367 = vst [vmem:[#allocation2 + $0xc0] sm:$0xff] %v350
      %368 = vst [vmem:[#allocation2 + $0xc8] sm:$0xff] %v351
      %369 = vst.msk [vmem:[#allocation2 + $0xd0] sm:$0xff] %vm242, %v342
      %v370 = vld [vmem:[%s219] sm:$0xff]
      %v371 = vld [vmem:[%s219 + $0x8] sm:$0xff]
      %v372 = vld [vmem:[%s219 + $0x10] sm:$0xff]
      %v373 = vld [vmem:[%s219 + $0x18] sm:$0xff]
      %v374 = vld [vmem:[%s219 + $0x20] sm:$0xff]
      %v375 = vld [vmem:[%s219 + $0x28] sm:$0xff]
      %v376 = vld [vmem:[%s219 + $0x30] sm:$0xff]
      %v377 = vld [vmem:[%s219 + $0x38] sm:$0xff]
      %v378 = vld [vmem:[%s219 + $0x40] sm:$0xff]
      %388 = vrot.lane.b32.xlu0 %v370, 94
      %v389 = vpop.permute.xlu0 %388
      %390 = vrot.lane.b32.xlu0 %v371, 94
      %v391 = vpop.permute.xlu0 %390
      %392 = vrot.lane.b32.xlu0 %v372, 94
      %v393 = vpop.permute.xlu0 %392
      %394 = vrot.lane.b32.xlu0 %v373, 94
      %v395 = vpop.permute.xlu0 %394
      %396 = vrot.lane.b32.xlu0 %v374, 94
      %v397 = vpop.permute.xlu0 %396
      %398 = vrot.lane.b32.xlu0 %v375, 94
      %v399 = vpop.permute.xlu0 %398
      %400 = vrot.lane.b32.xlu0 %v376, 94
      %v401 = vpop.permute.xlu0 %400
      %402 = vrot.lane.b32.xlu0 %v377, 94
      %v403 = vpop.permute.xlu0 %402
      %404 = vrot.lane.b32.xlu0 %v378, 94
      %v405 = vpop.permute.xlu0 %404
      %vm406 = vcmask 769024
      %v407 = vsel %vm406, %v389, %v391
      %v408 = vsel %vm406, %v391, %v393
      %v409 = vsel %vm406, %v393, %v395
      %v410 = vsel %vm406, %v395, %v397
      %v411 = vsel %vm406, %v397, %v399
      %v412 = vsel %vm406, %v399, %v401
      %v413 = vsel %vm406, %v401, %v403
      %v414 = vsel %vm406, %v403, %v405
      %424 = vst [vmem:[#allocation2 + $0xd8] sm:$0xff] %v407
      %425 = vst [vmem:[#allocation2 + $0xe0] sm:$0xff] %v408
      %426 = vst [vmem:[#allocation2 + $0xe8] sm:$0xff] %v409
      %427 = vst [vmem:[#allocation2 + $0xf0] sm:$0xff] %v410
      %428 = vst [vmem:[#allocation2 + $0xf8] sm:$0xff] %v411
      %429 = vst [vmem:[#allocation2 + $0x100] sm:$0xff] %v412
      %430 = vst [vmem:[#allocation2 + $0x108] sm:$0xff] %v413
      %431 = vst [vmem:[#allocation2 + $0x110] sm:$0xff] %v414
      %432 = vst.msk [vmem:[#allocation2 + $0x118] sm:$0xff] %vm242, %v405
      %v433 = vld [vmem:[%s219] sm:$0xff]
      %v434 = vld [vmem:[%s219 + $0x8] sm:$0xff]
      %v435 = vld [vmem:[%s219 + $0x10] sm:$0xff]
      %v436 = vld [vmem:[%s219 + $0x18] sm:$0xff]
      %v437 = vld [vmem:[%s219 + $0x20] sm:$0xff]
      %v438 = vld [vmem:[%s219 + $0x28] sm:$0xff]
      %v439 = vld [vmem:[%s219 + $0x30] sm:$0xff]
      %v440 = vld [vmem:[%s219 + $0x38] sm:$0xff]
      %v441 = vld [vmem:[%s219 + $0x40] sm:$0xff]
      %451 = vrot.lane.b32.xlu0 %v433, 93
      %v452 = vpop.permute.xlu0 %451
      %453 = vrot.lane.b32.xlu0 %v434, 93
      %v454 = vpop.permute.xlu0 %453
      %455 = vrot.lane.b32.xlu0 %v435, 93
      %v456 = vpop.permute.xlu0 %455
      %457 = vrot.lane.b32.xlu0 %v436, 93
      %v458 = vpop.permute.xlu0 %457
      %459 = vrot.lane.b32.xlu0 %v437, 93
      %v460 = vpop.permute.xlu0 %459
      %461 = vrot.lane.b32.xlu0 %v438, 93
      %v462 = vpop.permute.xlu0 %461
      %463 = vrot.lane.b32.xlu0 %v439, 93
      %v464 = vpop.permute.xlu0 %463
      %465 = vrot.lane.b32.xlu0 %v440, 93
      %v466 = vpop.permute.xlu0 %465
      %467 = vrot.lane.b32.xlu0 %v441, 93
      %v468 = vpop.permute.xlu0 %467
      %vm469 = vcmask 760832
      %v470 = vsel %vm469, %v452, %v454
      %v471 = vsel %vm469, %v454, %v456
      %v472 = vsel %vm469, %v456, %v458
      %v473 = vsel %vm469, %v458, %v460
      %v474 = vsel %vm469, %v460, %v462
      %v475 = vsel %vm469, %v462, %v464
      %v476 = vsel %vm469, %v464, %v466
      %v477 = vsel %vm469, %v466, %v468
      %487 = vst [vmem:[#allocation2 + $0x120] sm:$0xff] %v470
      %488 = vst [vmem:[#allocation2 + $0x128] sm:$0xff] %v471
      %489 = vst [vmem:[#allocation2 + $0x130] sm:$0xff] %v472
      %490 = vst [vmem:[#allocation2 + $0x138] sm:$0xff] %v473
      %491 = vst [vmem:[#allocation2 + $0x140] sm:$0xff] %v474
      %492 = vst [vmem:[#allocation2 + $0x148] sm:$0xff] %v475
      %493 = vst [vmem:[#allocation2 + $0x150] sm:$0xff] %v476
      %494 = vst [vmem:[#allocation2 + $0x158] sm:$0xff] %v477
      %495 = vst.msk [vmem:[#allocation2 + $0x160] sm:$0xff] %vm242, %v468
      %v496 = vld [vmem:[%s219] sm:$0xff]
      %v497 = vld [vmem:[%s219 + $0x8] sm:$0xff]
      %v498 = vld [vmem:[%s219 + $0x10] sm:$0xff]
      %v499 = vld [vmem:[%s219 + $0x18] sm:$0xff]
      %v500 = vld [vmem:[%s219 + $0x20] sm:$0xff]
      %v501 = vld [vmem:[%s219 + $0x28] sm:$0xff]
      %v502 = vld [vmem:[%s219 + $0x30] sm:$0xff]
      %v503 = vld [vmem:[%s219 + $0x38] sm:$0xff]
      %v504 = vld [vmem:[%s219 + $0x40] sm:$0xff]
      %514 = vrot.lane.b32.xlu0 %v496, 92
      %v515 = vpop.permute.xlu0 %514
      %516 = vrot.lane.b32.xlu0 %v497, 92
      %v517 = vpop.permute.xlu0 %516
      %518 = vrot.lane.b32.xlu0 %v498, 92
      %v519 = vpop.permute.xlu0 %518
      %520 = vrot.lane.b32.xlu0 %v499, 92
      %v521 = vpop.permute.xlu0 %520
      %522 = vrot.lane.b32.xlu0 %v500, 92
      %v523 = vpop.permute.xlu0 %522
      %524 = vrot.lane.b32.xlu0 %v501, 92
      %v525 = vpop.permute.xlu0 %524
      %526 = vrot.lane.b32.xlu0 %v502, 92
      %v527 = vpop.permute.xlu0 %526
      %528 = vrot.lane.b32.xlu0 %v503, 92
      %v529 = vpop.permute.xlu0 %528
      %530 = vrot.lane.b32.xlu0 %v504, 92
      %v531 = vpop.permute.xlu0 %530
      %vm532 = vcmask 752640
      %v533 = vsel %vm532, %v515, %v517
      %v534 = vsel %vm532, %v517, %v519
      %v535 = vsel %vm532, %v519, %v521
      %v536 = vsel %vm532, %v521, %v523
      %v537 = vsel %vm532, %v523, %v525
      %v538 = vsel %vm532, %v525, %v527
      %v539 = vsel %vm532, %v527, %v529
      %v540 = vsel %vm532, %v529, %v531
      %550 = vst [vmem:[#allocation2 + $0x168] sm:$0xff] %v533
      %551 = vst [vmem:[#allocation2 + $0x170] sm:$0xff] %v534
      %552 = vst [vmem:[#allocation2 + $0x178] sm:$0xff] %v535
      %553 = vst [vmem:[#allocation2 + $0x180] sm:$0xff] %v536
      %554 = vst [vmem:[#allocation2 + $0x188] sm:$0xff] %v537
      %555 = vst [vmem:[#allocation2 + $0x190] sm:$0xff] %v538
      %556 = vst [vmem:[#allocation2 + $0x198] sm:$0xff] %v539
      %557 = vst [vmem:[#allocation2 + $0x1a0] sm:$0xff] %v540
      %558 = vst.msk [vmem:[#allocation2 + $0x1a8] sm:$0xff] %vm242, %v531
      %v559 = vld [vmem:[%s219] sm:$0xff]
      %v560 = vld [vmem:[%s219 + $0x8] sm:$0xff]
      %v561 = vld [vmem:[%s219 + $0x10] sm:$0xff]
      %v562 = vld [vmem:[%s219 + $0x18] sm:$0xff]
      %v563 = vld [vmem:[%s219 + $0x20] sm:$0xff]
      %v564 = vld [vmem:[%s219 + $0x28] sm:$0xff]
      %v565 = vld [vmem:[%s219 + $0x30] sm:$0xff]
      %v566 = vld [vmem:[%s219 + $0x38] sm:$0xff]
      %v567 = vld [vmem:[%s219 + $0x40] sm:$0xff]
      %v568 = vld [vmem:[%s219 + $0x48] sm:$0xff]
      %579 = vrot.lane.b32.xlu0 %v559, 60
      %v580 = vpop.permute.xlu0 %579
      %581 = vrot.lane.b32.xlu0 %v560, 60
      %v582 = vpop.permute.xlu0 %581
      %583 = vrot.lane.b32.xlu0 %v561, 60
      %v584 = vpop.permute.xlu0 %583
      %585 = vrot.lane.b32.xlu0 %v562, 60
      %v586 = vpop.permute.xlu0 %585
      %587 = vrot.lane.b32.xlu0 %v563, 60
      %v588 = vpop.permute.xlu0 %587
      %589 = vrot.lane.b32.xlu0 %v564, 60
      %v590 = vpop.permute.xlu0 %589
      %591 = vrot.lane.b32.xlu0 %v565, 60
      %v592 = vpop.permute.xlu0 %591
      %593 = vrot.lane.b32.xlu0 %v566, 60
      %v594 = vpop.permute.xlu0 %593
      %595 = vrot.lane.b32.xlu0 %v567, 60
      %v596 = vpop.permute.xlu0 %595
      %597 = vrot.lane.b32.xlu0 %v568, 60
      %v598 = vpop.permute.xlu0 %597
      %vm599 = vcmask 490496
      %v600 = vsel %vm599, %v580, %v582
      %v601 = vsel %vm599, %v582, %v584
      %v602 = vsel %vm599, %v584, %v586
      %v603 = vsel %vm599, %v586, %v588
      %v604 = vsel %vm599, %v588, %v590
      %v605 = vsel %vm599, %v590, %v592
      %v606 = vsel %vm599, %v592, %v594
      %v607 = vsel %vm599, %v594, %v596
      %v608 = vsel %vm599, %v596, %v598
      %618 = vst [vmem:[#allocation2 + $0x1b0] sm:$0xff] %v600
      %619 = vst [vmem:[#allocation2 + $0x1b8] sm:$0xff] %v601
      %620 = vst [vmem:[#allocation2 + $0x1c0] sm:$0xff] %v602
      %621 = vst [vmem:[#allocation2 + $0x1c8] sm:$0xff] %v603
      %622 = vst [vmem:[#allocation2 + $0x1d0] sm:$0xff] %v604
      %623 = vst [vmem:[#allocation2 + $0x1d8] sm:$0xff] %v605
      %624 = vst [vmem:[#allocation2 + $0x1e0] sm:$0xff] %v606
      %625 = vst [vmem:[#allocation2 + $0x1e8] sm:$0xff] %v607
      %626 = vst.msk [vmem:[#allocation2 + $0x1f0] sm:$0xff] %vm242, %v608
      %v627 = vld [vmem:[%s219] sm:$0xff]
      %v628 = vld [vmem:[%s219 + $0x8] sm:$0xff]
      %v629 = vld [vmem:[%s219 + $0x10] sm:$0xff]
      %v630 = vld [vmem:[%s219 + $0x18] sm:$0xff]
      %v631 = vld [vmem:[%s219 + $0x20] sm:$0xff]
      %v632 = vld [vmem:[%s219 + $0x28] sm:$0xff]
      %v633 = vld [vmem:[%s219 + $0x30] sm:$0xff]
      %v634 = vld [vmem:[%s219 + $0x38] sm:$0xff]
      %v635 = vld [vmem:[%s219 + $0x40] sm:$0xff]
      %v636 = vld [vmem:[%s219 + $0x48] sm:$0xff]
      %647 = vrot.lane.b32.xlu0 %v627, 59
      %v648 = vpop.permute.xlu0 %647
      %649 = vrot.lane.b32.xlu0 %v628, 59
      %v650 = vpop.permute.xlu0 %649
      %651 = vrot.lane.b32.xlu0 %v629, 59
      %v652 = vpop.permute.xlu0 %651
      %653 = vrot.lane.b32.xlu0 %v630, 59
      %v654 = vpop.permute.xlu0 %653
      %655 = vrot.lane.b32.xlu0 %v631, 59
      %v656 = vpop.permute.xlu0 %655
      %657 = vrot.lane.b32.xlu0 %v632, 59
      %v658 = vpop.permute.xlu0 %657
      %659 = vrot.lane.b32.xlu0 %v633, 59
      %v660 = vpop.permute.xlu0 %659
      %661 = vrot.lane.b32.xlu0 %v634, 59
      %v662 = vpop.permute.xlu0 %661
      %663 = vrot.lane.b32.xlu0 %v635, 59
      %v664 = vpop.permute.xlu0 %663
      %665 = vrot.lane.b32.xlu0 %v636, 59
      %v666 = vpop.permute.xlu0 %665
      %vm667 = vcmask 482304
      %v668 = vsel %vm667, %v648, %v650
      %v669 = vsel %vm667, %v650, %v652
      %v670 = vsel %vm667, %v652, %v654
      %v671 = vsel %vm667, %v654, %v656
      %v672 = vsel %vm667, %v656, %v658
      %v673 = vsel %vm667, %v658, %v660
      %v674 = vsel %vm667, %v660, %v662
      %v675 = vsel %vm667, %v662, %v664
      %v676 = vsel %vm667, %v664, %v666
      %686 = vst [vmem:[#allocation2 + $0x1f8] sm:$0xff] %v668
      %687 = vst [vmem:[#allocation2 + $0x200] sm:$0xff] %v669
      %688 = vst [vmem:[#allocation2 + $0x208] sm:$0xff] %v670
      %689 = vst [vmem:[#allocation2 + $0x210] sm:$0xff] %v671
      %690 = vst [vmem:[#allocation2 + $0x218] sm:$0xff] %v672
      %691 = vst [vmem:[#allocation2 + $0x220] sm:$0xff] %v673
      %692 = vst [vmem:[#allocation2 + $0x228] sm:$0xff] %v674
      %693 = vst [vmem:[#allocation2 + $0x230] sm:$0xff] %v675
      %694 = vst.msk [vmem:[#allocation2 + $0x238] sm:$0xff] %vm242, %v676
      %v695 = vld [vmem:[%s219] sm:$0xff]
      %v696 = vld [vmem:[%s219 + $0x8] sm:$0xff]
      %v697 = vld [vmem:[%s219 + $0x10] sm:$0xff]
      %v698 = vld [vmem:[%s219 + $0x18] sm:$0xff]
      %v699 = vld [vmem:[%s219 + $0x20] sm:$0xff]
      %v700 = vld [vmem:[%s219 + $0x28] sm:$0xff]
      %v701 = vld [vmem:[%s219 + $0x30] sm:$0xff]
      %v702 = vld [vmem:[%s219 + $0x38] sm:$0xff]
      %v703 = vld [vmem:[%s219 + $0x40] sm:$0xff]
      %v704 = vld [vmem:[%s219 + $0x48] sm:$0xff]
      %715 = vrot.lane.b32.xlu0 %v695, 58
      %v716 = vpop.permute.xlu0 %715
      %717 = vrot.lane.b32.xlu0 %v696, 58
      %v718 = vpop.permute.xlu0 %717
      %719 = vrot.lane.b32.xlu0 %v697, 58
      %v720 = vpop.permute.xlu0 %719
      %721 = vrot.lane.b32.xlu0 %v698, 58
      %v722 = vpop.permute.xlu0 %721
      %723 = vrot.lane.b32.xlu0 %v699, 58
      %v724 = vpop.permute.xlu0 %723
      %725 = vrot.lane.b32.xlu0 %v700, 58
      %v726 = vpop.permute.xlu0 %725
      %727 = vrot.lane.b32.xlu0 %v701, 58
      %v728 = vpop.permute.xlu0 %727
      %729 = vrot.lane.b32.xlu0 %v702, 58
      %v730 = vpop.permute.xlu0 %729
      %731 = vrot.lane.b32.xlu0 %v703, 58
      %v732 = vpop.permute.xlu0 %731
      %733 = vrot.lane.b32.xlu0 %v704, 58
      %v734 = vpop.permute.xlu0 %733
      %vm735 = vcmask 474112
      %v736 = vsel %vm735, %v716, %v718
      %v737 = vsel %vm735, %v718, %v720
      %v738 = vsel %vm735, %v720, %v722
      %v739 = vsel %vm735, %v722, %v724
      %v740 = vsel %vm735, %v724, %v726
      %v741 = vsel %vm735, %v726, %v728
      %v742 = vsel %vm735, %v728, %v730
      %v743 = vsel %vm735, %v730, %v732
      %v744 = vsel %vm735, %v732, %v734
      %754 = vst [vmem:[#allocation2 + $0x240] sm:$0xff] %v736
      %755 = vst [vmem:[#allocation2 + $0x248] sm:$0xff] %v737
      %756 = vst [vmem:[#allocation2 + $0x250] sm:$0xff] %v738
      %757 = vst [vmem:[#allocation2 + $0x258] sm:$0xff] %v739
      %758 = vst [vmem:[#allocation2 + $0x260] sm:$0xff] %v740
      %759 = vst [vmem:[#allocation2 + $0x268] sm:$0xff] %v741
      %760 = vst [vmem:[#allocation2 + $0x270] sm:$0xff] %v742
      %761 = vst [vmem:[#allocation2 + $0x278] sm:$0xff] %v743
      %762 = vst.msk [vmem:[#allocation2 + $0x280] sm:$0xff] %vm242, %v744
      %v763 = vld [vmem:[%s1] sm:$0xff]
      %v764 = vld [vmem:[#allocation2] sm:$0xff]
      %v765 = vld [vmem:[#allocation2 + $0x8] sm:$0xff]
      %v766 = vld [vmem:[#allocation2 + $0x10] sm:$0xff]
      %v767 = vld [vmem:[#allocation2 + $0x18] sm:$0xff]
      %v768 = vld [vmem:[#allocation2 + $0x20] sm:$0xff]
      %v769 = vld [vmem:[#allocation2 + $0x28] sm:$0xff]
      %v770 = vld [vmem:[#allocation2 + $0x30] sm:$0xff]
      %v771 = vld [vmem:[#allocation2 + $0x38] sm:$0xff]
      %v772 = vld [vmem:[#allocation2 + $0x40] sm:$0xff]
      %v773 = vld [vmem:[#allocation2 + $0x48] sm:$0xff]
      %v774 = vld [vmem:[#allocation2 + $0x50] sm:$0xff]
      %v775 = vld [vmem:[#allocation2 + $0x58] sm:$0xff]
      %v776 = vld [vmem:[#allocation2 + $0x60] sm:$0xff]
      %v777 = vld [vmem:[#allocation2 + $0x68] sm:$0xff]
      %v778 = vld [vmem:[#allocation2 + $0x70] sm:$0xff]
      %v779 = vld [vmem:[#allocation2 + $0x78] sm:$0xff]
      %v780 = vld [vmem:[#allocation2 + $0x80] sm:$0xff]
      %v781 = vld [vmem:[#allocation2 + $0x88] sm:$0xff]
      %v782 = vld [vmem:[#allocation2 + $0x90] sm:$0xff]
      %v783 = vld [vmem:[#allocation2 + $0x98] sm:$0xff]
      %v784 = vld [vmem:[#allocation2 + $0xa0] sm:$0xff]
      %v785 = vld [vmem:[#allocation2 + $0xa8] sm:$0xff]
      %v786 = vld [vmem:[#allocation2 + $0xb0] sm:$0xff]
      %v787 = vld [vmem:[#allocation2 + $0xb8] sm:$0xff]
      %v788 = vld [vmem:[#allocation2 + $0xc0] sm:$0xff]
      %v789 = vld [vmem:[#allocation2 + $0xc8] sm:$0xff]
      %v790 = vld [vmem:[#allocation2 + $0xd0] sm:$0xff]
      %v791 = vld [vmem:[#allocation2 + $0xd8] sm:$0xff]
      %v792 = vld [vmem:[#allocation2 + $0xe0] sm:$0xff]
      %v793 = vld [vmem:[#allocation2 + $0xe8] sm:$0xff]
      %v794 = vld [vmem:[#allocation2 + $0xf0] sm:$0xff]
      %v795 = vld [vmem:[#allocation2 + $0xf8] sm:$0xff]
      %v796 = vld [vmem:[#allocation2 + $0x100] sm:$0xff]
      %v797 = vld [vmem:[#allocation2 + $0x108] sm:$0xff]
      %v798 = vld [vmem:[#allocation2 + $0x110] sm:$0xff]
      %v799 = vld [vmem:[#allocation2 + $0x118] sm:$0xff]
      %v800 = vld [vmem:[#allocation2 + $0x120] sm:$0xff]
      %v801 = vld [vmem:[#allocation2 + $0x128] sm:$0xff]
      %v802 = vld [vmem:[#allocation2 + $0x130] sm:$0xff]
      %v803 = vld [vmem:[#allocation2 + $0x138] sm:$0xff]
      %v804 = vld [vmem:[#allocation2 + $0x140] sm:$0xff]
      %v805 = vld [vmem:[#allocation2 + $0x148] sm:$0xff]
      %v806 = vld [vmem:[#allocation2 + $0x150] sm:$0xff]
      %v807 = vld [vmem:[#allocation2 + $0x158] sm:$0xff]
      %v808 = vld [vmem:[#allocation2 + $0x160] sm:$0xff]
      %v809 = vld [vmem:[#allocation2 + $0x168] sm:$0xff]
      %v810 = vld [vmem:[#allocation2 + $0x170] sm:$0xff]
      %v811 = vld [vmem:[#allocation2 + $0x178] sm:$0xff]
      %v812 = vld [vmem:[#allocation2 + $0x180] sm:$0xff]
      %v813 = vld [vmem:[#allocation2 + $0x188] sm:$0xff]
      %v814 = vld [vmem:[#allocation2 + $0x190] sm:$0xff]
      %v815 = vld [vmem:[#allocation2 + $0x198] sm:$0xff]
      %v816 = vld [vmem:[#allocation2 + $0x1a0] sm:$0xff]
      %v817 = vld [vmem:[#allocation2 + $0x1a8] sm:$0xff]
      %v818 = vld [vmem:[#allocation2 + $0x1b0] sm:$0xff]
      %v819 = vld [vmem:[#allocation2 + $0x1b8] sm:$0xff]
      %v820 = vld [vmem:[#allocation2 + $0x1c0] sm:$0xff]
      %v821 = vld [vmem:[#allocation2 + $0x1c8] sm:$0xff]
      %v822 = vld [vmem:[#allocation2 + $0x1d0] sm:$0xff]
      %v823 = vld [vmem:[#allocation2 + $0x1d8] sm:$0xff]
      %v824 = vld [vmem:[#allocation2 + $0x1e0] sm:$0xff]
      %v825 = vld [vmem:[#allocation2 + $0x1e8] sm:$0xff]
      %v826 = vld [vmem:[#allocation2 + $0x1f0] sm:$0xff]
      %v827 = vld [vmem:[#allocation2 + $0x1f8] sm:$0xff]
      %v828 = vld [vmem:[#allocation2 + $0x200] sm:$0xff]
      %v829 = vld [vmem:[#allocation2 + $0x208] sm:$0xff]
      %v830 = vld [vmem:[#allocation2 + $0x210] sm:$0xff]
      %v831 = vld [vmem:[#allocation2 + $0x218] sm:$0xff]
      %v832 = vld [vmem:[#allocation2 + $0x220] sm:$0xff]
      %v833 = vld [vmem:[#allocation2 + $0x228] sm:$0xff]
      %v834 = vld [vmem:[#allocation2 + $0x230] sm:$0xff]
      %v835 = vld [vmem:[#allocation2 + $0x238] sm:$0xff]
      %v836 = vld [vmem:[#allocation2 + $0x240] sm:$0xff]
      %v837 = vld [vmem:[#allocation2 + $0x248] sm:$0xff]
      %v838 = vld [vmem:[#allocation2 + $0x250] sm:$0xff]
      %v839 = vld [vmem:[#allocation2 + $0x258] sm:$0xff]
      %v840 = vld [vmem:[#allocation2 + $0x260] sm:$0xff]
      %v841 = vld [vmem:[#allocation2 + $0x268] sm:$0xff]
      %v842 = vld [vmem:[#allocation2 + $0x270] sm:$0xff]
      %v843 = vld [vmem:[#allocation2 + $0x278] sm:$0xff]
      %v844 = vld [vmem:[#allocation2 + $0x280] sm:$0xff]
      %v845 = vld [vmem:[%s2] sm:$0xff]
      %847 = vset.pattern.permute.xlu0 0
      %848 = vperm.xlu0 %847, %v845
      %v849 = vpop.permute.xlu0 %848
      %vm851 = vcmask 588800
      %v853 = vsel %vm851, %v763, 0
      %855 = vmatpush.msra.mxu0 0.0
      %856 = vmatpush.msra.mxu0 0.0
      %857 = vmatpush.msra.mxu0 0.0
      %858 = vmatpush.msra.mxu0 0.0
      %859 = vmatpush.msra.mxu0 0.0
      %860 = vmatpush.msra.mxu0 0.0
      %861 = vmatpush.msra.mxu0 0.0
      %862 = vmatpush.msra.mxu0 %v836
      %863 = vmatpush.msra.mxu0 %v827
      %864 = vmatpush.msra.mxu0 %v818
      %865 = vmatpush.msra.mxu0 %v809
      %866 = vmatpush.msra.mxu0 %v800
      %867 = vmatpush.msra.mxu0 %v791
      %868 = vmatpush.msra.mxu0 %v782
      %869 = vmatpush.msra.mxu0 %v773
      %870 = vmatpush.msra.mxu0 %v764
      %871 = vmatmul.f32.gmra.mxu0 %v853
      %v872 = vpop.f32.mrf.mxu0
      %v873 = vadd.f32 %v849, %v872
      %874 = vdwg.mxu0
      %875 = vmatpush.msra.mxu0 0.0
      %876 = vmatpush.msra.mxu0 0.0
      %877 = vmatpush.msra.mxu0 0.0
      %878 = vmatpush.msra.mxu0 0.0
      %879 = vmatpush.msra.mxu0 0.0
      %880 = vmatpush.msra.mxu0 0.0
      %881 = vmatpush.msra.mxu0 0.0
      %882 = vmatpush.msra.mxu0 %v837
      %883 = vmatpush.msra.mxu0 %v828
      %884 = vmatpush.msra.mxu0 %v819
      %885 = vmatpush.msra.mxu0 %v810
      %886 = vmatpush.msra.mxu0 %v801
      %887 = vmatpush.msra.mxu0 %v792
      %888 = vmatpush.msra.mxu0 %v783
      %889 = vmatpush.msra.mxu0 %v774
      %890 = vmatpush.msra.mxu0 %v765
      %891 = vmatmul.f32.gmra.mxu0 %v853
      %v892 = vpop.f32.mrf.mxu0
      %v893 = vadd.f32 %v849, %v892
      %894 = vdwg.mxu0
      %895 = vmatpush.msra.mxu0 0.0
      %896 = vmatpush.msra.mxu0 0.0
      %897 = vmatpush.msra.mxu0 0.0
      %898 = vmatpush.msra.mxu0 0.0
      %899 = vmatpush.msra.mxu0 0.0
      %900 = vmatpush.msra.mxu0 0.0
      %901 = vmatpush.msra.mxu0 0.0
      %902 = vmatpush.msra.mxu0 %v838
      %903 = vmatpush.msra.mxu0 %v829
      %904 = vmatpush.msra.mxu0 %v820
      %905 = vmatpush.msra.mxu0 %v811
      %906 = vmatpush.msra.mxu0 %v802
      %907 = vmatpush.msra.mxu0 %v793
      %908 = vmatpush.msra.mxu0 %v784
      %909 = vmatpush.msra.mxu0 %v775
      %910 = vmatpush.msra.mxu0 %v766
      %911 = vmatmul.f32.gmra.mxu0 %v853
      %v912 = vpop.f32.mrf.mxu0
      %v913 = vadd.f32 %v849, %v912
      %914 = vdwg.mxu0
      %915 = vmatpush.msra.mxu0 0.0
      %916 = vmatpush.msra.mxu0 0.0
      %917 = vmatpush.msra.mxu0 0.0
      %918 = vmatpush.msra.mxu0 0.0
      %919 = vmatpush.msra.mxu0 0.0
      %920 = vmatpush.msra.mxu0 0.0
      %921 = vmatpush.msra.mxu0 0.0
      %922 = vmatpush.msra.mxu0 %v839
      %923 = vmatpush.msra.mxu0 %v830
      %924 = vmatpush.msra.mxu0 %v821
      %925 = vmatpush.msra.mxu0 %v812
      %926 = vmatpush.msra.mxu0 %v803
      %927 = vmatpush.msra.mxu0 %v794
      %928 = vmatpush.msra.mxu0 %v785
      %929 = vmatpush.msra.mxu0 %v776
      %930 = vmatpush.msra.mxu0 %v767
      %931 = vmatmul.f32.gmra.mxu0 %v853
      %v932 = vpop.f32.mrf.mxu0
      %v933 = vadd.f32 %v849, %v932
      %934 = vdwg.mxu0
      %935 = vmatpush.msra.mxu0 0.0
      %936 = vmatpush.msra.mxu0 0.0
      %937 = vmatpush.msra.mxu0 0.0
      %938 = vmatpush.msra.mxu0 0.0
      %939 = vmatpush.msra.mxu0 0.0
      %940 = vmatpush.msra.mxu0 0.0
      %941 = vmatpush.msra.mxu0 0.0
      %942 = vmatpush.msra.mxu0 %v840
      %943 = vmatpush.msra.mxu0 %v831
      %944 = vmatpush.msra.mxu0 %v822
      %945 = vmatpush.msra.mxu0 %v813
      %946 = vmatpush.msra.mxu0 %v804
      %947 = vmatpush.msra.mxu0 %v795
      %948 = vmatpush.msra.mxu0 %v786
      %949 = vmatpush.msra.mxu0 %v777
      %950 = vmatpush.msra.mxu0 %v768
      %951 = vmatmul.f32.gmra.mxu0 %v853
      %v952 = vpop.f32.mrf.mxu0
      %v953 = vadd.f32 %v849, %v952
      %954 = vdwg.mxu0
      %955 = vmatpush.msra.mxu0 0.0
      %956 = vmatpush.msra.mxu0 0.0
      %957 = vmatpush.msra.mxu0 0.0
      %958 = vmatpush.msra.mxu0 0.0
      %959 = vmatpush.msra.mxu0 0.0
      %960 = vmatpush.msra.mxu0 0.0
      %961 = vmatpush.msra.mxu0 0.0
      %962 = vmatpush.msra.mxu0 %v841
      %963 = vmatpush.msra.mxu0 %v832
      %964 = vmatpush.msra.mxu0 %v823
      %965 = vmatpush.msra.mxu0 %v814
      %966 = vmatpush.msra.mxu0 %v805
      %967 = vmatpush.msra.mxu0 %v796
      %968 = vmatpush.msra.mxu0 %v787
      %969 = vmatpush.msra.mxu0 %v778
      %970 = vmatpush.msra.mxu0 %v769
      %971 = vmatmul.f32.gmra.mxu0 %v853
      %v972 = vpop.f32.mrf.mxu0
      %v973 = vadd.f32 %v849, %v972
      %974 = vdwg.mxu0
      %975 = vmatpush.msra.mxu0 0.0
      %976 = vmatpush.msra.mxu0 0.0
      %977 = vmatpush.msra.mxu0 0.0
      %978 = vmatpush.msra.mxu0 0.0
      %979 = vmatpush.msra.mxu0 0.0
      %980 = vmatpush.msra.mxu0 0.0
      %981 = vmatpush.msra.mxu0 0.0
      %982 = vmatpush.msra.mxu0 %v842
      %983 = vmatpush.msra.mxu0 %v833
      %984 = vmatpush.msra.mxu0 %v824
      %985 = vmatpush.msra.mxu0 %v815
      %986 = vmatpush.msra.mxu0 %v806
      %987 = vmatpush.msra.mxu0 %v797
      %988 = vmatpush.msra.mxu0 %v788
      %989 = vmatpush.msra.mxu0 %v779
      %990 = vmatpush.msra.mxu0 %v770
      %991 = vmatmul.f32.gmra.mxu0 %v853
      %v992 = vpop.f32.mrf.mxu0
      %v993 = vadd.f32 %v849, %v992
      %994 = vdwg.mxu0
      %995 = vmatpush.msra.mxu0 0.0
      %996 = vmatpush.msra.mxu0 0.0
      %997 = vmatpush.msra.mxu0 0.0
      %998 = vmatpush.msra.mxu0 0.0
      %999 = vmatpush.msra.mxu0 0.0
      %1000 = vmatpush.msra.mxu0 0.0
      %1001 = vmatpush.msra.mxu0 0.0
      %1002 = vmatpush.msra.mxu0 %v843
      %1003 = vmatpush.msra.mxu0 %v834
      %1004 = vmatpush.msra.mxu0 %v825
      %1005 = vmatpush.msra.mxu0 %v816
      %1006 = vmatpush.msra.mxu0 %v807
      %1007 = vmatpush.msra.mxu0 %v798
      %1008 = vmatpush.msra.mxu0 %v789
      %1009 = vmatpush.msra.mxu0 %v780
      %1010 = vmatpush.msra.mxu0 %v771
      %1011 = vmatmul.f32.gmra.mxu0 %v853
      %v1012 = vpop.f32.mrf.mxu0
      %v1013 = vadd.f32 %v849, %v1012
      %1014 = vdwg.mxu0
      %1015 = vmatpush.msra.mxu0 0.0
      %1016 = vmatpush.msra.mxu0 0.0
      %1017 = vmatpush.msra.mxu0 0.0
      %1018 = vmatpush.msra.mxu0 0.0
      %1019 = vmatpush.msra.mxu0 0.0
      %1020 = vmatpush.msra.mxu0 0.0
      %1021 = vmatpush.msra.mxu0 0.0
      %1022 = vmatpush.msra.mxu0 %v844
      %1023 = vmatpush.msra.mxu0 %v835
      %1024 = vmatpush.msra.mxu0 %v826
      %1025 = vmatpush.msra.mxu0 %v817
      %1026 = vmatpush.msra.mxu0 %v808
      %1027 = vmatpush.msra.mxu0 %v799
      %1028 = vmatpush.msra.mxu0 %v790
      %1029 = vmatpush.msra.mxu0 %v781
      %1030 = vmatpush.msra.mxu0 %v772
      %1031 = vmatmul.f32.gmra.mxu0 %v853
      %v1032 = vpop.f32.mrf.mxu0
      %v1033 = vadd.f32 %v849, %v1032
      %1034 = vdwg.mxu0
      %v1035 = vld [vmem:[%s3] sm:$0xff]
      %1037 = vset.pattern.permute.xlu0 0
      %1038 = vperm.xlu0 %1037, %v1035
      %v1039 = vpop.permute.xlu0 %1038
      %v1041 = vmul.f32 %v873, %v1039
      %v1042 = vmul.f32 %v893, %v1039
      %v1043 = vmul.f32 %v913, %v1039
      %v1044 = vmul.f32 %v933, %v1039
      %v1045 = vmul.f32 %v953, %v1039
      %v1046 = vmul.f32 %v973, %v1039
      %v1047 = vmul.f32 %v993, %v1039
      %v1048 = vmul.f32 %v1013, %v1039
      %v1049 = vmul.f32 %v1033, %v1039
      %v1050 = vld [vmem:[%s4] sm:$0xff]
      %1052 = vset.pattern.permute.xlu0 0
      %1053 = vperm.xlu0 %1052, %v1050
      %v1054 = vpop.permute.xlu0 %1053
      %v1056 = vadd.f32 %v1041, %v1054
      %v1057 = vadd.f32 %v1042, %v1054
      %v1058 = vadd.f32 %v1043, %v1054
      %v1059 = vadd.f32 %v1044, %v1054
      %v1060 = vadd.f32 %v1045, %v1054
      %v1061 = vadd.f32 %v1046, %v1054
      %v1062 = vadd.f32 %v1047, %v1054
      %v1063 = vadd.f32 %v1048, %v1054
      %v1064 = vadd.f32 %v1049, %v1054
      %v1065 = vmax.f32 %v1056, 0.0
      %v1066 = vmax.f32 %v1057, 0.0
      %v1067 = vmax.f32 %v1058, 0.0
      %v1068 = vmax.f32 %v1059, 0.0
      %v1069 = vmax.f32 %v1060, 0.0
      %v1070 = vmax.f32 %v1061, 0.0
      %v1071 = vmax.f32 %v1062, 0.0
      %v1072 = vmax.f32 %v1063, 0.0
      %v1073 = vmax.f32 %v1064, 0.0
      %1074 = vst [vmem:[%s224] sm:$0xff] %v1065
      %1075 = vst [vmem:[%s224 + $0x8] sm:$0xff] %v1066
      %1076 = vst [vmem:[%s224 + $0x10] sm:$0xff] %v1067
      %1077 = vst [vmem:[%s224 + $0x18] sm:$0xff] %v1068
      %1078 = vst [vmem:[%s224 + $0x20] sm:$0xff] %v1069
      %1079 = vst [vmem:[%s224 + $0x28] sm:$0xff] %v1070
      %1080 = vst [vmem:[%s224 + $0x30] sm:$0xff] %v1071
      %1081 = vst [vmem:[%s224 + $0x38] sm:$0xff] %v1072
      %1082 = vst.msk [vmem:[%s224 + $0x40] sm:$0xff] %vm242, %v1073
      %p1083 = scmp.lt.s32.totalorder %s16, 1
      %s1084 = scalar_select %p1083, %s16, 1
      %s1085 = smul.addr %s1084, 9
      %s1086 = smul.addr %s1085, 8
      %s1087 = scalar_lea.vmem %s5, %s1086
      // Predicated region
      $region41: #{decoder_forward.10} parent=39 // pred_check
        %p1088 = pneg %p144
      $region42: #{decoder_forward.10} parent=39 // pred_check_branch
        %1090 = sbr.rel (%p1088) target = $region44
      $region43: #{decoder_forward.10} parent=39 // pred_region
        _
      $region44: #{decoder_forward.10} parent=39 // pred_fallthru
        _
    $region40: #{decoder_forward.10} parent=5 // pred_fallthru
      _
    %p1091 = scmp.le.s32.totalorder 2, %s11
    // Predicated region
    $region45: #{decoder_forward.10} parent=5 // pred_check
      %p1092 = pneg %p1091
    $region46: #{decoder_forward.10} parent=5 // pred_check_branch
      %1094 = sbr.rel (%p1092) target = $region48
    $region47: #{decoder_forward.10} parent=5 // pred_region
      %s1095 = ssub.s32 %s11, 2
      // Predicated region
      $region49: #{decoder_forward.10} parent=47 // pred_check
        %p1096 = pneg %p150
      $region50: #{decoder_forward.10} parent=47 // pred_check_branch
        %1098 = sbr.rel (%p1096) target = $region52
      $region51: #{decoder_forward.10} parent=47 // pred_region
        %p1099 = scmp.lt.s32.totalorder %s17, 1
        %s1100 = scalar_select %p1099, %s17, 1
        %s1101 = smul.addr %s1100, 9
        %s1102 = smul.addr %s1101, 8
        %s1103 = scalar_lea.vmem %s5, %s1102
      $region52: #{decoder_forward.10} parent=47 // pred_fallthru
        _
    $region48: #{decoder_forward.10} parent=5 // pred_fallthru
      _
  $region6: #{decoder_forward.10} parent=0 // loop_footer
    %s15 = sadd.s32 1, %s11
  $region7: #{decoder_forward.10} parent=0 // loop_footer_branch
    %10 = sbr.rel target = $region3
  $region8: #{decoder_forward.10} parent=0 // loop_exit
    _

</llo_original>
